<compile_context>
chip_gen: v5e
topology: v5e:2x2
jax: 0.10.0
libtpu: 0.0.40
codegen_flags: <defaults>
</compile_context>

<pallas_src>
import functools

import jax
import jax.numpy as jnp
from jax.experimental import pallas as pl
from jax.experimental.pallas import tpu as pltpu


# ----------------------------------------------------------------------------
# Pallas kernel: one block of Bblk batch elements per grid step.
#   x_ref  : (Bblk*HW, 768)  bf16  input features (channels-last, flattened)
#   w1_ref : (768, 1024)     bf16  conv1 (BN-folded) weight
#   b1_ref : (1, 1024)       f32   conv1 (BN-folded) bias
#   w2_ref : (1024, 256)     bf16  net_local conv (BN-folded) weight
#   b2_ref : (1, 256)        f32   net_local conv (BN-folded) bias
#   w3_ref : (1, 256)        f32   final 1x1 conv weight (out-channels == 1)
#   o_ref  : (Bblk, 1024)    f32   L2-normalized pooled features
# ----------------------------------------------------------------------------
def attention_local_kernel(x_ref, w1_ref, b1_ref, w2_ref, b2_ref, w3_ref,
                           o_ref, *, hw):
    m, _ = x_ref.shape
    bblk = m // hw
    cmid = w1_ref.shape[1]          # 1024

    # conv1_local: 1x1 conv (BN folded) + ReLU   -> (M, 1024), f32 accumulate
    h1 = jnp.dot(x_ref[...], w1_ref[...], preferred_element_type=jnp.float32)
    h1 = jnp.maximum(h1 + b1_ref[...], 0.0)

    # net_local[0:3]: 1x1 conv (BN folded) + ReLU -> (M, 256)
    a1 = jnp.dot(h1.astype(jnp.bfloat16), w2_ref[...],
                 preferred_element_type=jnp.float32)
    a1 = jnp.maximum(a1 + b2_ref[...], 0.0)

    # net_local[3]: 1x1 conv to a single channel (scalar bias is
    # softmax-invariant and omitted) -> (M, 1)
    logits = jnp.sum(a1 * w3_ref[...], axis=-1, keepdims=True)
    logits = logits.reshape(bblk, hw, 1)

    # softmax over the spatial positions, per batch element (f32 epilogue)
    mx = jnp.max(logits, axis=1, keepdims=True)
    e = jnp.exp(logits - mx)
    denom = jnp.sum(e, axis=1, keepdims=True)
    attn = e * pl.reciprocal(denom, approx=True)                 # (bblk, hw, 1)

    # feature = x*attn + x, then AdaptiveMaxPool2d(1) == max over HW
    h1_3d = h1.reshape(bblk, hw, cmid)
    feat = jnp.max(h1_3d * (1.0 + attn), axis=1)                 # (bblk, 1024)

    # F.normalize (L2 over channels, eps=1e-12); single rsqrt on clamped nrm^2
    nrm2 = jnp.sum(feat * feat, axis=-1, keepdims=True)
    o_ref[...] = feat * jax.lax.rsqrt(jnp.maximum(nrm2, 1e-24))


def _choose_block_b(B, HW, C, cmid=1024, chid=256,
                    target_m=256, vmem_budget=24 << 20):
    """Batch elements per grid step: fill the MXU M dim (~256 rows) while
    keeping the per-step working set under a conservative VMEM budget
    (safe for v7x's 64 MiB physical VMEM and v5e's small scoped default).
    If more than one grid step is needed, the block is kept a multiple of 8
    so the output BlockSpec stays sublane-aligned."""
    bblk = max(1, min(B, -(-target_m // HW)))

    def step_bytes(bb):
        m = bb * HW
        x_tile = 2 * m * C * 2          # bf16 input, double-buffered
        h1 = m * cmid * 4               # f32 intermediates
        a1 = m * chid * 4
        out = 2 * bb * cmid * 4         # f32 output, double-buffered
        return x_tile + h1 + a1 + out

    while bblk > 1 and step_bytes(bblk) > vmem_budget:
        bblk -= 1

    if bblk < B:
        # multi-step grid: keep the output block sublane-aligned (multiple of 8)
        bblk = max(8, (bblk // 8) * 8)
    return bblk


@functools.partial(jax.jit, static_argnames=("channels_last",))
def attention_local_pallas(x, w1, b1, w2, b2, w3, channels_last=False):
    """Forward pass of Attention_local.

    x: (B, 768, H, W) f32 (PyTorch NCHW) if channels_last=False,
       else (B, H, W, 768).  Returns (B, 1024) f32.
    """
    if channels_last:
        B, H, W, C = x.shape
        x = x.reshape(B, H * W, C).astype(jnp.bfloat16)
    else:
        B, C, H, W = x.shape
        # Layout change + bf16 cast fused into one HBM pass (bf16 write).
        x = jnp.transpose(x, (0, 2, 3, 1)).reshape(B, H * W, C)
        x = x.astype(jnp.bfloat16)
    HW = H * W
    assert HW % 8 == 0, "spatial size must be a multiple of 8"
    # TODO(synk): pad + mask the spatial axis when H*W is not a multiple of 8.
    # TODO(synk): tile the spatial axis (two-pass softmax + running max-pool)
    #             when a single-batch tile exceeds the VMEM budget (huge H*W).

    cmid = w1.shape[-1]      # 1024
    chid = w2.shape[-1]      # 256

    w1b = w1.astype(jnp.bfloat16)
    w2b = w2.astype(jnp.bfloat16)
    b1f = b1.reshape(1, cmid).astype(jnp.float32)
    b2f = b2.reshape(1, chid).astype(jnp.float32)
    w3f = w3.reshape(1, chid).astype(jnp.float32)

    bblk = _choose_block_b(B, HW, C, cmid, chid)
    n_steps = -(-B // bblk)
    b_pad = n_steps * bblk
    if b_pad != B:
        x = jnp.pad(x, ((0, b_pad - B), (0, 0), (0, 0)))
    x = x.reshape(b_pad * HW, C)

    grid_spec = pltpu.PrefetchScalarGridSpec(
        num_scalar_prefetch=0,
        grid=(n_steps,),
        in_specs=[
            pl.BlockSpec((bblk * HW, C), lambda i: (i, 0)),
            pl.BlockSpec((C, cmid), lambda i: (0, 0)),     # weights: constant
            pl.BlockSpec((1, cmid), lambda i: (0, 0)),     # index maps -> stay
            pl.BlockSpec((cmid, chid), lambda i: (0, 0)),  # resident in VMEM
            pl.BlockSpec((1, chid), lambda i: (0, 0)),
            pl.BlockSpec((1, chid), lambda i: (0, 0)),
        ],
        out_specs=pl.BlockSpec((bblk, cmid), lambda i: (i, 0)),
    )

    out = pl.pallas_call(
        functools.partial(attention_local_kernel, hw=HW),
        out_shape=jax.ShapeDtypeStruct((b_pad, cmid), jnp.float32),
        grid_spec=grid_spec,
        compiler_params=pltpu.CompilerParams(
            dimension_semantics=("parallel",),
            vmem_limit_bytes=48 * 1024 * 1024,
        ),
    )(x, w1b, b1f, w2b, b2f, w3f)
    return out[:B]


# ----------------------------------------------------------------------------
# Deterministic parameter construction + BN folding (plain-JAX glue)
# ----------------------------------------------------------------------------
def fold_bn(w_io, b_o, gamma, beta, mean, var, eps=1e-5):
    """Fold eval-mode BatchNorm into a preceding 1x1 conv (w: (Cin, Cout))."""
    s = gamma / jnp.sqrt(var + eps)
    return w_io * s[None, :], b_o * s + beta - mean * s


def make_params(key):
    ks = jax.random.split(key, 12)
    # conv1_local: Conv2d(768 -> 1024, k=1) + BN(1024)
    w1 = jax.random.normal(ks[0], (768, 1024), jnp.float32) * 0.02
    b1 = jax.random.normal(ks[1], (1024,), jnp.float32) * 0.02
    g1 = 1.0 + 0.1 * jax.random.normal(ks[2], (1024,), jnp.float32)
    be1 = 0.05 * jax.random.normal(ks[3], (1024,), jnp.float32)
    mu1 = 0.05 * jax.random.normal(ks[4], (1024,), jnp.float32)
    v1 = 1.0 + 0.1 * jax.random.uniform(ks[5], (1024,), jnp.float32)
    # net_local: Conv2d(1024 -> 256, k=1) + BN(256) + ReLU + Conv2d(256 -> 1, k=1)
    w2 = jax.random.normal(ks[6], (1024, 256), jnp.float32) * 0.02
    b2 = jax.random.normal(ks[7], (256,), jnp.float32) * 0.02
    g2 = 1.0 + 0.1 * jax.random.normal(ks[8], (256,), jnp.float32)
    be2 = 0.05 * jax.random.normal(ks[9], (256,), jnp.float32)
    mu2 = 0.05 * jax.random.normal(ks[10], (256,), jnp.float32)
    v2 = 1.0 + 0.1 * jax.random.uniform(ks[11], (256,), jnp.float32)
    w3 = jax.random.normal(jax.random.PRNGKey(1234), (256,), jnp.float32) * 0.05

    w1f, b1f = fold_bn(w1, b1, g1, be1, mu1, v1)
    w2f, b2f = fold_bn(w2, b2, g2, be2, mu2, v2)
    return w1f, b1f, w2f, b2f, w3


# Pure-JAX f32 reference (mirrors the PyTorch forward, eval-mode BN) ----------
def reference(x_nchw, w1, b1, w2, b2, w3):
    B, C, H, W = x_nchw.shape
    x = jnp.transpose(x_nchw, (0, 2, 3, 1)).reshape(B, H * W, C)
    h1 = jnp.maximum(jnp.einsum("bpc,co->bpo", x, w1) + b1, 0.0)
    a1 = jnp.maximum(jnp.einsum("bpc,co->bpo", h1, w2) + b2, 0.0)
    logits = jnp.sum(a1 * w3, axis=-1)                       # (B, HW)
    attn = jax.nn.softmax(logits, axis=1)[..., None]         # (B, HW, 1)
    feat = jnp.max(h1 * attn + h1, axis=1)                   # (B, 1024)
    nrm = jnp.sqrt(jnp.sum(feat * feat, axis=1, keepdims=True))
    return feat / jnp.maximum(nrm, 1e-12)


if __name__ == "__main__":
    key = jax.random.PRNGKey(0)
    pk, xk = jax.random.split(key)
    w1, b1, w2, b2, w3 = make_params(pk)

    B, C, H, W = 2, 768, 4, 4
    x = jax.random.normal(xk, (B, C, H, W), jnp.float32)

    out = attention_local_pallas(x, w1, b1, w2, b2, w3)
    out = jax.block_until_ready(out)

    ref = reference(x, w1, b1, w2, b2, w3)
    assert out.shape == (B, 1024)
    err = jnp.max(jnp.abs(out - ref))
    assert err < 2e-2, f"mismatch vs reference: max abs err {err}"
    print("KERNEL_OK")
</pallas_src>

<mosaic_0001>
module attributes {stable_mosaic.version = 11 : i64} {
  func.func @attention_local_kernel(%arg0: i32, %arg1: memref<32x768xbf16, #tpu.memory_space<vmem>>, %arg2: memref<768x1024xbf16, #tpu.memory_space<vmem>>, %arg3: memref<1x1024xf32, #tpu.memory_space<vmem>>, %arg4: memref<1024x256xbf16, #tpu.memory_space<vmem>>, %arg5: memref<1x256xf32, #tpu.memory_space<vmem>>, %arg6: memref<1x256xf32, #tpu.memory_space<vmem>>, %arg7: memref<2x1024xf32, #tpu.memory_space<vmem>>) attributes {dimension_semantics = [#tpu.dimension_semantics<parallel>], iteration_bounds = array<i64: 1>, scalar_prefetch = 0 : i64, scratch_operands = 0 : i64, tpu.core_type = #tpu.core_type<tc>, window_params = [{transform_indices = @transform_0, window_bounds = array<i64: 32, 768>}, {pipeline_mode = #tpu.pipeline_mode<synchronous>, transform_indices = @transform_1, window_bounds = array<i64: 768, 1024>}, {pipeline_mode = #tpu.pipeline_mode<synchronous>, transform_indices = @transform_2, window_bounds = array<i64: 1, 1024>}, {pipeline_mode = #tpu.pipeline_mode<synchronous>, transform_indices = @transform_3, window_bounds = array<i64: 1024, 256>}, {pipeline_mode = #tpu.pipeline_mode<synchronous>, transform_indices = @transform_4, window_bounds = array<i64: 1, 256>}, {pipeline_mode = #tpu.pipeline_mode<synchronous>, transform_indices = @transform_5, window_bounds = array<i64: 1, 256>}, {transform_indices = @transform_6, window_bounds = array<i64: 2, 1024>}]} {
    %c0 = arith.constant 0 : index
    %c0_0 = arith.constant 0 : index
    %0 = vector.load %arg1[%c0, %c0_0] : memref<32x768xbf16, #tpu.memory_space<vmem>>, vector<32x768xbf16>
    %c0_1 = arith.constant 0 : index
    %c0_2 = arith.constant 0 : index
    %1 = vector.load %arg2[%c0_1, %c0_2] : memref<768x1024xbf16, #tpu.memory_space<vmem>>, vector<768x1024xbf16>
    %cst = arith.constant dense<0.000000e+00> : vector<32x1024xf32>
    %2 = tpu.matmul %0, %1, %cst {dimension_numbers = #tpu.dot_dimension_numbers<[1], [0], [0], [1], [0, 0, 1, 1], [], []>} : vector<32x768xbf16>, vector<768x1024xbf16>, vector<32x1024xf32> -> vector<32x1024xf32>
    %c0_3 = arith.constant 0 : index
    %c0_4 = arith.constant 0 : index
    %3 = vector.load %arg3[%c0_3, %c0_4] : memref<1x1024xf32, #tpu.memory_space<vmem>>, vector<1x1024xf32>
    %4 = vector.broadcast %3 : vector<1x1024xf32> to vector<32x1024xf32>
    %5 = arith.addf %2, %4 : vector<32x1024xf32>
    %cst_5 = arith.constant 0.000000e+00 : f32
    %6 = vector.broadcast %cst_5 : f32 to vector<32x1024xf32>
    %7 = arith.maximumf %5, %6 : vector<32x1024xf32>
    %8 = arith.truncf %7 : vector<32x1024xf32> to vector<32x1024xbf16>
    %c0_6 = arith.constant 0 : index
    %c0_7 = arith.constant 0 : index
    %9 = vector.load %arg4[%c0_6, %c0_7] : memref<1024x256xbf16, #tpu.memory_space<vmem>>, vector<1024x256xbf16>
    %cst_8 = arith.constant dense<0.000000e+00> : vector<32x256xf32>
    %10 = tpu.matmul %8, %9, %cst_8 {dimension_numbers = #tpu.dot_dimension_numbers<[1], [0], [0], [1], [0, 0, 1, 1], [], []>} : vector<32x1024xbf16>, vector<1024x256xbf16>, vector<32x256xf32> -> vector<32x256xf32>
    %c0_9 = arith.constant 0 : index
    %c0_10 = arith.constant 0 : index
    %11 = vector.load %arg5[%c0_9, %c0_10] : memref<1x256xf32, #tpu.memory_space<vmem>>, vector<1x256xf32>
    %12 = vector.broadcast %11 : vector<1x256xf32> to vector<32x256xf32>
    %13 = arith.addf %10, %12 : vector<32x256xf32>
    %cst_11 = arith.constant 0.000000e+00 : f32
    %14 = vector.broadcast %cst_11 : f32 to vector<32x256xf32>
    %15 = arith.maximumf %13, %14 : vector<32x256xf32>
    %c0_12 = arith.constant 0 : index
    %c0_13 = arith.constant 0 : index
    %16 = vector.load %arg6[%c0_12, %c0_13] : memref<1x256xf32, #tpu.memory_space<vmem>>, vector<1x256xf32>
    %17 = vector.broadcast %16 : vector<1x256xf32> to vector<32x256xf32>
    %18 = arith.mulf %15, %17 : vector<32x256xf32>
    %cst_14 = arith.constant dense<0.000000e+00> : vector<32xf32>
    %19 = vector.multi_reduction <add>, %18, %cst_14 [1] : vector<32x256xf32> to vector<32xf32>
    %20 = vector.shape_cast %19 : vector<32xf32> to vector<32x1xf32>
    %21 = vector.shape_cast %20 : vector<32x1xf32> to vector<2x16x1xf32>
    %cst_15 = arith.constant dense<0xFF800000> : vector<2x1xf32>
    %22 = vector.multi_reduction <maximumf>, %21, %cst_15 [1] : vector<2x16x1xf32> to vector<2x1xf32>
    %23 = vector.shape_cast %22 : vector<2x1xf32> to vector<2x1x1xf32>
    %24 = vector.broadcast %23 : vector<2x1x1xf32> to vector<2x16x1xf32>
    %25 = arith.subf %21, %24 : vector<2x16x1xf32>
    %26 = math.exp %25 : vector<2x16x1xf32>
    %cst_16 = arith.constant dense<0.000000e+00> : vector<2x1xf32>
    %27 = vector.multi_reduction <add>, %26, %cst_16 [1] : vector<2x16x1xf32> to vector<2x1xf32>
    %28 = vector.shape_cast %27 : vector<2x1xf32> to vector<2x1x1xf32>
    %29 = tpu.reciprocal %28 {approx = true} : vector<2x1x1xf32> -> vector<2x1x1xf32>
    %30 = vector.broadcast %29 : vector<2x1x1xf32> to vector<2x16x1xf32>
    %31 = arith.mulf %26, %30 : vector<2x16x1xf32>
    %32 = vector.shape_cast %7 : vector<32x1024xf32> to vector<2x16x1024xf32>
    %cst_17 = arith.constant 1.000000e+00 : f32
    %33 = vector.broadcast %cst_17 : f32 to vector<2x16x1xf32>
    %34 = arith.addf %33, %31 : vector<2x16x1xf32>
    %35 = vector.broadcast %34 : vector<2x16x1xf32> to vector<2x16x1024xf32>
    %36 = arith.mulf %32, %35 : vector<2x16x1024xf32>
    %cst_18 = arith.constant dense<0xFF800000> : vector<2x1024xf32>
    %37 = vector.multi_reduction <maximumf>, %36, %cst_18 [1] : vector<2x16x1024xf32> to vector<2x1024xf32>
    %38 = arith.mulf %37, %37 : vector<2x1024xf32>
    %cst_19 = arith.constant dense<0.000000e+00> : vector<2xf32>
    %39 = vector.multi_reduction <add>, %38, %cst_19 [1] : vector<2x1024xf32> to vector<2xf32>
    %40 = vector.shape_cast %39 : vector<2xf32> to vector<2x1xf32>
    %cst_20 = arith.constant 1.000000e-24 : f32
    %41 = vector.broadcast %cst_20 : f32 to vector<2x1xf32>
    %42 = arith.maximumf %40, %41 : vector<2x1xf32>
    %43 = math.rsqrt %42 : vector<2x1xf32>
    %44 = vector.broadcast %43 : vector<2x1xf32> to vector<2x1024xf32>
    %45 = arith.mulf %37, %44 : vector<2x1024xf32>
    %c0_21 = arith.constant 0 : index
    %c0_22 = arith.constant 0 : index
    %46 = vector.load %arg7[%c0_21, %c0_22] : memref<2x1024xf32, #tpu.memory_space<vmem>>, vector<2x1024xf32>
    tpu.vector_store %arg7[%c0_21, %c0_22], %45 {strides = array<i32>} : memref<2x1024xf32, #tpu.memory_space<vmem>>, vector<2x1024xf32>,
    return
  }
  func.func @transform_0(%arg0: i32) -> (i32, i32) {
    %c0_i32 = arith.constant 0 : i32
    %c0_i32_0 = arith.constant 0 : i32
    return %arg0, %c0_i32 : i32, i32
  }
  func.func @transform_1(%arg0: i32) -> (i32, i32) {
    %c0_i32 = arith.constant 0 : i32
    %c0_i32_0 = arith.constant 0 : i32
    %c0_i32_1 = arith.constant 0 : i32
    return %c0_i32, %c0_i32_0 : i32, i32
  }
  func.func @transform_2(%arg0: i32) -> (i32, i32) {
    %c0_i32 = arith.constant 0 : i32
    %c0_i32_0 = arith.constant 0 : i32
    %c0_i32_1 = arith.constant 0 : i32
    return %c0_i32, %c0_i32_0 : i32, i32
  }
  func.func @transform_3(%arg0: i32) -> (i32, i32) {
    %c0_i32 = arith.constant 0 : i32
    %c0_i32_0 = arith.constant 0 : i32
    %c0_i32_1 = arith.constant 0 : i32
    return %c0_i32, %c0_i32_0 : i32, i32
  }
  func.func @transform_4(%arg0: i32) -> (i32, i32) {
    %c0_i32 = arith.constant 0 : i32
    %c0_i32_0 = arith.constant 0 : i32
    %c0_i32_1 = arith.constant 0 : i32
    return %c0_i32, %c0_i32_0 : i32, i32
  }
  func.func @transform_5(%arg0: i32) -> (i32, i32) {
    %c0_i32 = arith.constant 0 : i32
    %c0_i32_0 = arith.constant 0 : i32
    %c0_i32_1 = arith.constant 0 : i32
    return %c0_i32, %c0_i32_0 : i32, i32
  }
  func.func @transform_6(%arg0: i32) -> (i32, i32) {
    %c0_i32 = arith.constant 0 : i32
    %c0_i32_0 = arith.constant 0 : i32
    return %arg0, %c0_i32 : i32, i32
  }
}

</mosaic_0001>

<llo_original>
// kernel: attention_local_pallas.1
$region0: #{attention_local_pallas.1}
  #allocation0 [shape = 'u32[]', space=smem, size = 0x4, offset = 0x4, fixed_abs, tag = 'smem constant byte address 0x4 - core index']
  #allocation1 [shape = 'u32[72,128]{1,0:T(1,128)}', space=vmem, size = 0x9000, scoped, tag = 'internal scratch']
  %s0 = inlined_call_operand.vmem [shape: bf16[32,768], index: 0, kind: input, shape index: {}]
  %s1 = inlined_call_operand.vmem [shape: bf16[768,1024], index: 1, kind: input, shape index: {}]
  %s2 = inlined_call_operand.vmem [shape: f32[1,1024], index: 2, kind: input, shape index: {}]
  %s3 = inlined_call_operand.vmem [shape: bf16[1024,256], index: 3, kind: input, shape index: {}]
  %s4 = inlined_call_operand.vmem [shape: f32[1,256], index: 4, kind: input, shape index: {}]
  %s5 = inlined_call_operand.vmem [shape: f32[1,256], index: 5, kind: input, shape index: {}]
  %s6 = inlined_call_operand.hbm [shape: f32[2,1024], index: 6, kind: output, shape index: {}]
  %s7 = sld [smem:[#allocation0]]
  $region34: #{attention_local_pallas.1} parent=0
    _
  %s9 = ssub.s32 1, %s7
  %s10 = scalar_select 0, %s9, %s7
  $region1: #{attention_local_pallas.1} parent=0
    #allocation2 [shape = 'u8[8192]{0}', space=vmem, size = 0x2000, scoped, tag = 'output window, operand 0, single buffered']
    #allocation3 [shape = 's32[1]{0}', space=sflag, size = 0x4, scoped, tag = 'scoped memory for attention_local_pallas.1']
    %11 = vsyncpa [#allocation3], 0
    // Predicated region
    $region2: #{attention_local_pallas.1} parent=1 // pred_check
      _
    $region3: #{attention_local_pallas.1} parent=1 // pred_check_branch
      %13 = sbr.rel (0) target = $region5
    $region4: #{attention_local_pallas.1} parent=1 // pred_region
      _
    $region5: #{attention_local_pallas.1} parent=1 // pred_fallthru
      _
    // Predicated region
    $region6: #{attention_local_pallas.1} parent=1 // pred_check
      _
    $region7: #{attention_local_pallas.1} parent=1 // pred_check_branch
      %15 = sbr.rel (0) target = $region9
    $region8: #{attention_local_pallas.1} parent=1 // pred_region
      _
    $region9: #{attention_local_pallas.1} parent=1 // pred_fallthru
      _
    // Predicated region
    $region10: #{attention_local_pallas.1} parent=1 // pred_check
      _
    $region11: #{attention_local_pallas.1} parent=1 // pred_check_branch
      %17 = sbr.rel (0) target = $region13
    $region12: #{attention_local_pallas.1} parent=1 // pred_region
      _
    $region13: #{attention_local_pallas.1} parent=1 // pred_fallthru
      _
    // Predicated region
    $region14: #{attention_local_pallas.1} parent=1 // pred_check
      _
    $region15: #{attention_local_pallas.1} parent=1 // pred_check_branch
      %19 = sbr.rel (0) target = $region17
    $region16: #{attention_local_pallas.1} parent=1 // pred_region
      _
    $region17: #{attention_local_pallas.1} parent=1 // pred_fallthru
      _
    // Predicated region
    $region18: #{attention_local_pallas.1} parent=1 // pred_check
      _
    $region19: #{attention_local_pallas.1} parent=1 // pred_check_branch
      %21 = sbr.rel (0) target = $region21
    $region20: #{attention_local_pallas.1} parent=1 // pred_region
      _
    $region21: #{attention_local_pallas.1} parent=1 // pred_fallthru
      _
    // Predicated region
    $region22: #{attention_local_pallas.1} parent=1 // pred_check
      _
    $region23: #{attention_local_pallas.1} parent=1 // pred_check_branch
      %23 = sbr.rel (0) target = $region25
    $region24: #{attention_local_pallas.1} parent=1 // pred_region
      _
    $region25: #{attention_local_pallas.1} parent=1 // pred_fallthru
      _
    %v24 = vld [vmem:[%s0] sm:$0xff]
    %v25 = vld [vmem:[%s0 + $0x8] sm:$0xff]
    %v26 = vld [vmem:[%s0 + $0x10] sm:$0xff]
    %v27 = vld [vmem:[%s0 + $0x18] sm:$0xff]
    %v28 = vld [vmem:[%s0 + $0x20] sm:$0xff]
    %v29 = vld [vmem:[%s0 + $0x28] sm:$0xff]
    %v30 = vld [vmem:[%s0 + $0x30] sm:$0xff]
    %v31 = vld [vmem:[%s0 + $0x38] sm:$0xff]
    %v32 = vld [vmem:[%s0 + $0x40] sm:$0xff]
    %v33 = vld [vmem:[%s0 + $0x48] sm:$0xff]
    %v34 = vld [vmem:[%s0 + $0x50] sm:$0xff]
    %v35 = vld [vmem:[%s0 + $0x58] sm:$0xff]
    %v36 = vld [vmem:[%s1] sm:$0xff]
    %v37 = vld [vmem:[%s1 + $0x8] sm:$0xff]
    %v38 = vld [vmem:[%s1 + $0x10] sm:$0xff]
    %v39 = vld [vmem:[%s1 + $0x18] sm:$0xff]
    %v40 = vld [vmem:[%s1 + $0x20] sm:$0xff]
    %v41 = vld [vmem:[%s1 + $0x28] sm:$0xff]
    %v42 = vld [vmem:[%s1 + $0x30] sm:$0xff]
    %v43 = vld [vmem:[%s1 + $0x38] sm:$0xff]
    %v44 = vld [vmem:[%s1 + $0x40] sm:$0xff]
    %v45 = vld [vmem:[%s1 + $0x48] sm:$0xff]
    %v46 = vld [vmem:[%s1 + $0x50] sm:$0xff]
    %v47 = vld [vmem:[%s1 + $0x58] sm:$0xff]
    %v48 = vld [vmem:[%s1 + $0x60] sm:$0xff]
    %v49 = vld [vmem:[%s1 + $0x68] sm:$0xff]
    %v50 = vld [vmem:[%s1 + $0x70] sm:$0xff]
    %v51 = vld [vmem:[%s1 + $0x78] sm:$0xff]
    %v52 = vld [vmem:[%s1 + $0x80] sm:$0xff]
    %v53 = vld [vmem:[%s1 + $0x88] sm:$0xff]
    %v54 = vld [vmem:[%s1 + $0x90] sm:$0xff]
    %v55 = vld [vmem:[%s1 + $0x98] sm:$0xff]
    %v56 = vld [vmem:[%s1 + $0xa0] sm:$0xff]
    %v57 = vld [vmem:[%s1 + $0xa8] sm:$0xff]
    %v58 = vld [vmem:[%s1 + $0xb0] sm:$0xff]
    %v59 = vld [vmem:[%s1 + $0xb8] sm:$0xff]
    %v60 = vld [vmem:[%s1 + $0xc0] sm:$0xff]
    %v61 = vld [vmem:[%s1 + $0xc8] sm:$0xff]
    %v62 = vld [vmem:[%s1 + $0xd0] sm:$0xff]
    %v63 = vld [vmem:[%s1 + $0xd8] sm:$0xff]
    %v64 = vld [vmem:[%s1 + $0xe0] sm:$0xff]
    %v65 = vld [vmem:[%s1 + $0xe8] sm:$0xff]
    %v66 = vld [vmem:[%s1 + $0xf0] sm:$0xff]
    %v67 = vld [vmem:[%s1 + $0xf8] sm:$0xff]
    %v68 = vld [vmem:[%s1 + $0x100] sm:$0xff]
    %v69 = vld [vmem:[%s1 + $0x108] sm:$0xff]
    %v70 = vld [vmem:[%s1 + $0x110] sm:$0xff]
    %v71 = vld [vmem:[%s1 + $0x118] sm:$0xff]
    %v72 = vld [vmem:[%s1 + $0x120] sm:$0xff]
    %v73 = vld [vmem:[%s1 + $0x128] sm:$0xff]
    %v74 = vld [vmem:[%s1 + $0x130] sm:$0xff]
    %v75 = vld [vmem:[%s1 + $0x138] sm:$0xff]
    %v76 = vld [vmem:[%s1 + $0x140] sm:$0xff]
    %v77 = vld [vmem:[%s1 + $0x148] sm:$0xff]
    %v78 = vld [vmem:[%s1 + $0x150] sm:$0xff]
    %v79 = vld [vmem:[%s1 + $0x158] sm:$0xff]
    %v80 = vld [vmem:[%s1 + $0x160] sm:$0xff]
    %v81 = vld [vmem:[%s1 + $0x168] sm:$0xff]
    %v82 = vld [vmem:[%s1 + $0x170] sm:$0xff]
    %v83 = vld [vmem:[%s1 + $0x178] sm:$0xff]
    %v84 = vld [vmem:[%s1 + $0x180] sm:$0xff]
    %v85 = vld [vmem:[%s1 + $0x188] sm:$0xff]
    %v86 = vld [vmem:[%s1 + $0x190] sm:$0xff]
    %v87 = vld [vmem:[%s1 + $0x198] sm:$0xff]
    %v88 = vld [vmem:[%s1 + $0x1a0] sm:$0xff]
    %v89 = vld [vmem:[%s1 + $0x1a8] sm:$0xff]
    %v90 = vld [vmem:[%s1 + $0x1b0] sm:$0xff]
    %v91 = vld [vmem:[%s1 + $0x1b8] sm:$0xff]
    %v92 = vld [vmem:[%s1 + $0x1c0] sm:$0xff]
    %v93 = vld [vmem:[%s1 + $0x1c8] sm:$0xff]
    %v94 = vld [vmem:[%s1 + $0x1d0] sm:$0xff]
    %v95 = vld [vmem:[%s1 + $0x1d8] sm:$0xff]
    %v96 = vld [vmem:[%s1 + $0x1e0] sm:$0xff]
    %v97 = vld [vmem:[%s1 + $0x1e8] sm:$0xff]
    %v98 = vld [vmem:[%s1 + $0x1f0] sm:$0xff]
    %v99 = vld [vmem:[%s1 + $0x1f8] sm:$0xff]
    %v100 = vld [vmem:[%s1 + $0x200] sm:$0xff]
    %v101 = vld [vmem:[%s1 + $0x208] sm:$0xff]
    %v102 = vld [vmem:[%s1 + $0x210] sm:$0xff]
    %v103 = vld [vmem:[%s1 + $0x218] sm:$0xff]
    %v104 = vld [vmem:[%s1 + $0x220] sm:$0xff]
    %v105 = vld [vmem:[%s1 + $0x228] sm:$0xff]
    %v106 = vld [vmem:[%s1 + $0x230] sm:$0xff]
    %v107 = vld [vmem:[%s1 + $0x238] sm:$0xff]
    %v108 = vld [vmem:[%s1 + $0x240] sm:$0xff]
    %v109 = vld [vmem:[%s1 + $0x248] sm:$0xff]
    %v110 = vld [vmem:[%s1 + $0x250] sm:$0xff]
    %v111 = vld [vmem:[%s1 + $0x258] sm:$0xff]
    %v112 = vld [vmem:[%s1 + $0x260] sm:$0xff]
    %v113 = vld [vmem:[%s1 + $0x268] sm:$0xff]
    %v114 = vld [vmem:[%s1 + $0x270] sm:$0xff]
    %v115 = vld [vmem:[%s1 + $0x278] sm:$0xff]
    %v116 = vld [vmem:[%s1 + $0x280] sm:$0xff]
    %v117 = vld [vmem:[%s1 + $0x288] sm:$0xff]
    %v118 = vld [vmem:[%s1 + $0x290] sm:$0xff]
    %v119 = vld [vmem:[%s1 + $0x298] sm:$0xff]
    %v120 = vld [vmem:[%s1 + $0x2a0] sm:$0xff]
    %v121 = vld [vmem:[%s1 + $0x2a8] sm:$0xff]
    %v122 = vld [vmem:[%s1 + $0x2b0] sm:$0xff]
    %v123 = vld [vmem:[%s1 + $0x2b8] sm:$0xff]
    %v124 = vld [vmem:[%s1 + $0x2c0] sm:$0xff]
    %v125 = vld [vmem:[%s1 + $0x2c8] sm:$0xff]
    %v126 = vld [vmem:[%s1 + $0x2d0] sm:$0xff]
    %v127 = vld [vmem:[%s1 + $0x2d8] sm:$0xff]
    %v128 = vld [vmem:[%s1 + $0x2e0] sm:$0xff]
    %v129 = vld [vmem:[%s1 + $0x2e8] sm:$0xff]
    %v130 = vld [vmem:[%s1 + $0x2f0] sm:$0xff]
    %v131 = vld [vmem:[%s1 + $0x2f8] sm:$0xff]
    %v132 = vld [vmem:[%s1 + $0x300] sm:$0xff]
    %v133 = vld [vmem:[%s1 + $0x308] sm:$0xff]
    %v134 = vld [vmem:[%s1 + $0x310] sm:$0xff]
    %v135 = vld [vmem:[%s1 + $0x318] sm:$0xff]
    %v136 = vld [vmem:[%s1 + $0x320] sm:$0xff]
    %v137 = vld [vmem:[%s1 + $0x328] sm:$0xff]
    %v138 = vld [vmem:[%s1 + $0x330] sm:$0xff]
    %v139 = vld [vmem:[%s1 + $0x338] sm:$0xff]
    %v140 = vld [vmem:[%s1 + $0x340] sm:$0xff]
    %v141 = vld [vmem:[%s1 + $0x348] sm:$0xff]
    %v142 = vld [vmem:[%s1 + $0x350] sm:$0xff]
    %v143 = vld [vmem:[%s1 + $0x358] sm:$0xff]
    %v144 = vld [vmem:[%s1 + $0x360] sm:$0xff]
    %v145 = vld [vmem:[%s1 + $0x368] sm:$0xff]
    %v146 = vld [vmem:[%s1 + $0x370] sm:$0xff]
    %v147 = vld [vmem:[%s1 + $0x378] sm:$0xff]
    %v148 = vld [vmem:[%s1 + $0x380] sm:$0xff]
    %v149 = vld [vmem:[%s1 + $0x388] sm:$0xff]
    %v150 = vld [vmem:[%s1 + $0x390] sm:$0xff]
    %v151 = vld [vmem:[%s1 + $0x398] sm:$0xff]
    %v152 = vld [vmem:[%s1 + $0x3a0] sm:$0xff]
    %v153 = vld [vmem:[%s1 + $0x3a8] sm:$0xff]
    %v154 = vld [vmem:[%s1 + $0x3b0] sm:$0xff]
    %v155 = vld [vmem:[%s1 + $0x3b8] sm:$0xff]
    %v156 = vld [vmem:[%s1 + $0x3c0] sm:$0xff]
    %v157 = vld [vmem:[%s1 + $0x3c8] sm:$0xff]
    %v158 = vld [vmem:[%s1 + $0x3d0] sm:$0xff]
    %v159 = vld [vmem:[%s1 + $0x3d8] sm:$0xff]
    %v160 = vld [vmem:[%s1 + $0x3e0] sm:$0xff]
    %v161 = vld [vmem:[%s1 + $0x3e8] sm:$0xff]
    %v162 = vld [vmem:[%s1 + $0x3f0] sm:$0xff]
    %v163 = vld [vmem:[%s1 + $0x3f8] sm:$0xff]
    %v164 = vld [vmem:[%s1 + $0x400] sm:$0xff]
    %v165 = vld [vmem:[%s1 + $0x408] sm:$0xff]
    %v166 = vld [vmem:[%s1 + $0x410] sm:$0xff]
    %v167 = vld [vmem:[%s1 + $0x418] sm:$0xff]
    %v168 = vld [vmem:[%s1 + $0x420] sm:$0xff]
    %v169 = vld [vmem:[%s1 + $0x428] sm:$0xff]
    %v170 = vld [vmem:[%s1 + $0x430] sm:$0xff]
    %v171 = vld [vmem:[%s1 + $0x438] sm:$0xff]
    %v172 = vld [vmem:[%s1 + $0x440] sm:$0xff]
    %v173 = vld [vmem:[%s1 + $0x448] sm:$0xff]
    %v174 = vld [vmem:[%s1 + $0x450] sm:$0xff]
    %v175 = vld [vmem:[%s1 + $0x458] sm:$0xff]
    %v176 = vld [vmem:[%s1 + $0x460] sm:$0xff]
    %v177 = vld [vmem:[%s1 + $0x468] sm:$0xff]
    %v178 = vld [vmem:[%s1 + $0x470] sm:$0xff]
    %v179 = vld [vmem:[%s1 + $0x478] sm:$0xff]
    %v180 = vld [vmem:[%s1 + $0x480] sm:$0xff]
    %v181 = vld [vmem:[%s1 + $0x488] sm:$0xff]
    %v182 = vld [vmem:[%s1 + $0x490] sm:$0xff]
    %v183 = vld [vmem:[%s1 + $0x498] sm:$0xff]
    %v184 = vld [vmem:[%s1 + $0x4a0] sm:$0xff]
    %v185 = vld [vmem:[%s1 + $0x4a8] sm:$0xff]
    %v186 = vld [vmem:[%s1 + $0x4b0] sm:$0xff]
    %v187 = vld [vmem:[%s1 + $0x4b8] sm:$0xff]
    %v188 = vld [vmem:[%s1 + $0x4c0] sm:$0xff]
    %v189 = vld [vmem:[%s1 + $0x4c8] sm:$0xff]
    %v190 = vld [vmem:[%s1 + $0x4d0] sm:$0xff]
    %v191 = vld [vmem:[%s1 + $0x4d8] sm:$0xff]
    %v192 = vld [vmem:[%s1 + $0x4e0] sm:$0xff]
    %v193 = vld [vmem:[%s1 + $0x4e8] sm:$0xff]
    %v194 = vld [vmem:[%s1 + $0x4f0] sm:$0xff]
    %v195 = vld [vmem:[%s1 + $0x4f8] sm:$0xff]
    %v196 = vld [vmem:[%s1 + $0x500] sm:$0xff]
    %v197 = vld [vmem:[%s1 + $0x508] sm:$0xff]
    %v198 = vld [vmem:[%s1 + $0x510] sm:$0xff]
    %v199 = vld [vmem:[%s1 + $0x518] sm:$0xff]
    %v200 = vld [vmem:[%s1 + $0x520] sm:$0xff]
    %v201 = vld [vmem:[%s1 + $0x528] sm:$0xff]
    %v202 = vld [vmem:[%s1 + $0x530] sm:$0xff]
    %v203 = vld [vmem:[%s1 + $0x538] sm:$0xff]
    %v204 = vld [vmem:[%s1 + $0x540] sm:$0xff]
    %v205 = vld [vmem:[%s1 + $0x548] sm:$0xff]
    %v206 = vld [vmem:[%s1 + $0x550] sm:$0xff]
    %v207 = vld [vmem:[%s1 + $0x558] sm:$0xff]
    %v208 = vld [vmem:[%s1 + $0x560] sm:$0xff]
    %v209 = vld [vmem:[%s1 + $0x568] sm:$0xff]
    %v210 = vld [vmem:[%s1 + $0x570] sm:$0xff]
    %v211 = vld [vmem:[%s1 + $0x578] sm:$0xff]
    %v212 = vld [vmem:[%s1 + $0x580] sm:$0xff]
    %v213 = vld [vmem:[%s1 + $0x588] sm:$0xff]
    %v214 = vld [vmem:[%s1 + $0x590] sm:$0xff]
    %v215 = vld [vmem:[%s1 + $0x598] sm:$0xff]
    %v216 = vld [vmem:[%s1 + $0x5a0] sm:$0xff]
    %v217 = vld [vmem:[%s1 + $0x5a8] sm:$0xff]
    %v218 = vld [vmem:[%s1 + $0x5b0] sm:$0xff]
    %v219 = vld [vmem:[%s1 + $0x5b8] sm:$0xff]
    %v220 = vld [vmem:[%s1 + $0x5c0] sm:$0xff]
    %v221 = vld [vmem:[%s1 + $0x5c8] sm:$0xff]
    %v222 = vld [vmem:[%s1 + $0x5d0] sm:$0xff]
    %v223 = vld [vmem:[%s1 + $0x5d8] sm:$0xff]
    %v224 = vld [vmem:[%s1 + $0x5e0] sm:$0xff]
    %v225 = vld [vmem:[%s1 + $0x5e8] sm:$0xff]
    %v226 = vld [vmem:[%s1 + $0x5f0] sm:$0xff]
    %v227 = vld [vmem:[%s1 + $0x5f8] sm:$0xff]
    %v228 = vld [vmem:[%s1 + $0x600] sm:$0xff]
    %v229 = vld [vmem:[%s1 + $0x608] sm:$0xff]
    %v230 = vld [vmem:[%s1 + $0x610] sm:$0xff]
    %v231 = vld [vmem:[%s1 + $0x618] sm:$0xff]
    %v232 = vld [vmem:[%s1 + $0x620] sm:$0xff]
    %v233 = vld [vmem:[%s1 + $0x628] sm:$0xff]
    %v234 = vld [vmem:[%s1 + $0x630] sm:$0xff]
    %v235 = vld [vmem:[%s1 + $0x638] sm:$0xff]
    %v236 = vld [vmem:[%s1 + $0x640] sm:$0xff]
    %v237 = vld [vmem:[%s1 + $0x648] sm:$0xff]
    %v238 = vld [vmem:[%s1 + $0x650] sm:$0xff]
    %v239 = vld [vmem:[%s1 + $0x658] sm:$0xff]
    %v240 = vld [vmem:[%s1 + $0x660] sm:$0xff]
    %v241 = vld [vmem:[%s1 + $0x668] sm:$0xff]
    %v242 = vld [vmem:[%s1 + $0x670] sm:$0xff]
    %v243 = vld [vmem:[%s1 + $0x678] sm:$0xff]
    %v244 = vld [vmem:[%s1 + $0x680] sm:$0xff]
    %v245 = vld [vmem:[%s1 + $0x688] sm:$0xff]
    %v246 = vld [vmem:[%s1 + $0x690] sm:$0xff]
    %v247 = vld [vmem:[%s1 + $0x698] sm:$0xff]
    %v248 = vld [vmem:[%s1 + $0x6a0] sm:$0xff]
    %v249 = vld [vmem:[%s1 + $0x6a8] sm:$0xff]
    %v250 = vld [vmem:[%s1 + $0x6b0] sm:$0xff]
    %v251 = vld [vmem:[%s1 + $0x6b8] sm:$0xff]
    %v252 = vld [vmem:[%s1 + $0x6c0] sm:$0xff]
    %v253 = vld [vmem:[%s1 + $0x6c8] sm:$0xff]
    %v254 = vld [vmem:[%s1 + $0x6d0] sm:$0xff]
    %v255 = vld [vmem:[%s1 + $0x6d8] sm:$0xff]
    %v256 = vld [vmem:[%s1 + $0x6e0] sm:$0xff]
    %v257 = vld [vmem:[%s1 + $0x6e8] sm:$0xff]
    %v258 = vld [vmem:[%s1 + $0x6f0] sm:$0xff]
    %v259 = vld [vmem:[%s1 + $0x6f8] sm:$0xff]
    %v260 = vld [vmem:[%s1 + $0x700] sm:$0xff]
    %v261 = vld [vmem:[%s1 + $0x708] sm:$0xff]
    %v262 = vld [vmem:[%s1 + $0x710] sm:$0xff]
    %v263 = vld [vmem:[%s1 + $0x718] sm:$0xff]
    %v264 = vld [vmem:[%s1 + $0x720] sm:$0xff]
    %v265 = vld [vmem:[%s1 + $0x728] sm:$0xff]
    %v266 = vld [vmem:[%s1 + $0x730] sm:$0xff]
    %v267 = vld [vmem:[%s1 + $0x738] sm:$0xff]
    %v268 = vld [vmem:[%s1 + $0x740] sm:$0xff]
    %v269 = vld [vmem:[%s1 + $0x748] sm:$0xff]
    %v270 = vld [vmem:[%s1 + $0x750] sm:$0xff]
    %v271 = vld [vmem:[%s1 + $0x758] sm:$0xff]
    %v272 = vld [vmem:[%s1 + $0x760] sm:$0xff]
    %v273 = vld [vmem:[%s1 + $0x768] sm:$0xff]
    %v274 = vld [vmem:[%s1 + $0x770] sm:$0xff]
    %v275 = vld [vmem:[%s1 + $0x778] sm:$0xff]
    %v276 = vld [vmem:[%s1 + $0x780] sm:$0xff]
    %v277 = vld [vmem:[%s1 + $0x788] sm:$0xff]
    %v278 = vld [vmem:[%s1 + $0x790] sm:$0xff]
    %v279 = vld [vmem:[%s1 + $0x798] sm:$0xff]
    %v280 = vld [vmem:[%s1 + $0x7a0] sm:$0xff]
    %v281 = vld [vmem:[%s1 + $0x7a8] sm:$0xff]
    %v282 = vld [vmem:[%s1 + $0x7b0] sm:$0xff]
    %v283 = vld [vmem:[%s1 + $0x7b8] sm:$0xff]
    %v284 = vld [vmem:[%s1 + $0x7c0] sm:$0xff]
    %v285 = vld [vmem:[%s1 + $0x7c8] sm:$0xff]
    %v286 = vld [vmem:[%s1 + $0x7d0] sm:$0xff]
    %v287 = vld [vmem:[%s1 + $0x7d8] sm:$0xff]
    %v288 = vld [vmem:[%s1 + $0x7e0] sm:$0xff]
    %v289 = vld [vmem:[%s1 + $0x7e8] sm:$0xff]
    %v290 = vld [vmem:[%s1 + $0x7f0] sm:$0xff]
    %v291 = vld [vmem:[%s1 + $0x7f8] sm:$0xff]
    %v292 = vld [vmem:[%s1 + $0x800] sm:$0xff]
    %v293 = vld [vmem:[%s1 + $0x808] sm:$0xff]
    %v294 = vld [vmem:[%s1 + $0x810] sm:$0xff]
    %v295 = vld [vmem:[%s1 + $0x818] sm:$0xff]
    %v296 = vld [vmem:[%s1 + $0x820] sm:$0xff]
    %v297 = vld [vmem:[%s1 + $0x828] sm:$0xff]
    %v298 = vld [vmem:[%s1 + $0x830] sm:$0xff]
    %v299 = vld [vmem:[%s1 + $0x838] sm:$0xff]
    %v300 = vld [vmem:[%s1 + $0x840] sm:$0xff]
    %v301 = vld [vmem:[%s1 + $0x848] sm:$0xff]
    %v302 = vld [vmem:[%s1 + $0x850] sm:$0xff]
    %v303 = vld [vmem:[%s1 + $0x858] sm:$0xff]
    %v304 = vld [vmem:[%s1 + $0x860] sm:$0xff]
    %v305 = vld [vmem:[%s1 + $0x868] sm:$0xff]
    %v306 = vld [vmem:[%s1 + $0x870] sm:$0xff]
    %v307 = vld [vmem:[%s1 + $0x878] sm:$0xff]
    %v308 = vld [vmem:[%s1 + $0x880] sm:$0xff]
    %v309 = vld [vmem:[%s1 + $0x888] sm:$0xff]
    %v310 = vld [vmem:[%s1 + $0x890] sm:$0xff]
    %v311 = vld [vmem:[%s1 + $0x898] sm:$0xff]
    %v312 = vld [vmem:[%s1 + $0x8a0] sm:$0xff]
    %v313 = vld [vmem:[%s1 + $0x8a8] sm:$0xff]
    %v314 = vld [vmem:[%s1 + $0x8b0] sm:$0xff]
    %v315 = vld [vmem:[%s1 + $0x8b8] sm:$0xff]
    %v316 = vld [vmem:[%s1 + $0x8c0] sm:$0xff]
    %v317 = vld [vmem:[%s1 + $0x8c8] sm:$0xff]
    %v318 = vld [vmem:[%s1 + $0x8d0] sm:$0xff]
    %v319 = vld [vmem:[%s1 + $0x8d8] sm:$0xff]
    %v320 = vld [vmem:[%s1 + $0x8e0] sm:$0xff]
    %v321 = vld [vmem:[%s1 + $0x8e8] sm:$0xff]
    %v322 = vld [vmem:[%s1 + $0x8f0] sm:$0xff]
    %v323 = vld [vmem:[%s1 + $0x8f8] sm:$0xff]
    %v324 = vld [vmem:[%s1 + $0x900] sm:$0xff]
    %v325 = vld [vmem:[%s1 + $0x908] sm:$0xff]
    %v326 = vld [vmem:[%s1 + $0x910] sm:$0xff]
    %v327 = vld [vmem:[%s1 + $0x918] sm:$0xff]
    %v328 = vld [vmem:[%s1 + $0x920] sm:$0xff]
    %v329 = vld [vmem:[%s1 + $0x928] sm:$0xff]
    %v330 = vld [vmem:[%s1 + $0x930] sm:$0xff]
    %v331 = vld [vmem:[%s1 + $0x938] sm:$0xff]
    %v332 = vld [vmem:[%s1 + $0x940] sm:$0xff]
    %v333 = vld [vmem:[%s1 + $0x948] sm:$0xff]
    %v334 = vld [vmem:[%s1 + $0x950] sm:$0xff]
    %v335 = vld [vmem:[%s1 + $0x958] sm:$0xff]
    %v336 = vld [vmem:[%s1 + $0x960] sm:$0xff]
    %v337 = vld [vmem:[%s1 + $0x968] sm:$0xff]
    %v338 = vld [vmem:[%s1 + $0x970] sm:$0xff]
    %v339 = vld [vmem:[%s1 + $0x978] sm:$0xff]
    %v340 = vld [vmem:[%s1 + $0x980] sm:$0xff]
    %v341 = vld [vmem:[%s1 + $0x988] sm:$0xff]
    %v342 = vld [vmem:[%s1 + $0x990] sm:$0xff]
    %v343 = vld [vmem:[%s1 + $0x998] sm:$0xff]
    %v344 = vld [vmem:[%s1 + $0x9a0] sm:$0xff]
    %v345 = vld [vmem:[%s1 + $0x9a8] sm:$0xff]
    %v346 = vld [vmem:[%s1 + $0x9b0] sm:$0xff]
    %v347 = vld [vmem:[%s1 + $0x9b8] sm:$0xff]
    %v348 = vld [vmem:[%s1 + $0x9c0] sm:$0xff]
    %v349 = vld [vmem:[%s1 + $0x9c8] sm:$0xff]
    %v350 = vld [vmem:[%s1 + $0x9d0] sm:$0xff]
    %v351 = vld [vmem:[%s1 + $0x9d8] sm:$0xff]
    %v352 = vld [vmem:[%s1 + $0x9e0] sm:$0xff]
    %v353 = vld [vmem:[%s1 + $0x9e8] sm:$0xff]
    %v354 = vld [vmem:[%s1 + $0x9f0] sm:$0xff]
    %v355 = vld [vmem:[%s1 + $0x9f8] sm:$0xff]
    %v356 = vld [vmem:[%s1 + $0xa00] sm:$0xff]
    %v357 = vld [vmem:[%s1 + $0xa08] sm:$0xff]
    %v358 = vld [vmem:[%s1 + $0xa10] sm:$0xff]
    %v359 = vld [vmem:[%s1 + $0xa18] sm:$0xff]
    %v360 = vld [vmem:[%s1 + $0xa20] sm:$0xff]
    %v361 = vld [vmem:[%s1 + $0xa28] sm:$0xff]
    %v362 = vld [vmem:[%s1 + $0xa30] sm:$0xff]
    %v363 = vld [vmem:[%s1 + $0xa38] sm:$0xff]
    %v364 = vld [vmem:[%s1 + $0xa40] sm:$0xff]
    %v365 = vld [vmem:[%s1 + $0xa48] sm:$0xff]
    %v366 = vld [vmem:[%s1 + $0xa50] sm:$0xff]
    %v367 = vld [vmem:[%s1 + $0xa58] sm:$0xff]
    %v368 = vld [vmem:[%s1 + $0xa60] sm:$0xff]
    %v369 = vld [vmem:[%s1 + $0xa68] sm:$0xff]
    %v370 = vld [vmem:[%s1 + $0xa70] sm:$0xff]
    %v371 = vld [vmem:[%s1 + $0xa78] sm:$0xff]
    %v372 = vld [vmem:[%s1 + $0xa80] sm:$0xff]
    %v373 = vld [vmem:[%s1 + $0xa88] sm:$0xff]
    %v374 = vld [vmem:[%s1 + $0xa90] sm:$0xff]
    %v375 = vld [vmem:[%s1 + $0xa98] sm:$0xff]
    %v376 = vld [vmem:[%s1 + $0xaa0] sm:$0xff]
    %v377 = vld [vmem:[%s1 + $0xaa8] sm:$0xff]
    %v378 = vld [vmem:[%s1 + $0xab0] sm:$0xff]
    %v379 = vld [vmem:[%s1 + $0xab8] sm:$0xff]
    %v380 = vld [vmem:[%s1 + $0xac0] sm:$0xff]
    %v381 = vld [vmem:[%s1 + $0xac8] sm:$0xff]
    %v382 = vld [vmem:[%s1 + $0xad0] sm:$0xff]
    %v383 = vld [vmem:[%s1 + $0xad8] sm:$0xff]
    %v384 = vld [vmem:[%s1 + $0xae0] sm:$0xff]
    %v385 = vld [vmem:[%s1 + $0xae8] sm:$0xff]
    %v386 = vld [vmem:[%s1 + $0xaf0] sm:$0xff]
    %v387 = vld [vmem:[%s1 + $0xaf8] sm:$0xff]
    %v388 = vld [vmem:[%s1 + $0xb00] sm:$0xff]
    %v389 = vld [vmem:[%s1 + $0xb08] sm:$0xff]
    %v390 = vld [vmem:[%s1 + $0xb10] sm:$0xff]
    %v391 = vld [vmem:[%s1 + $0xb18] sm:$0xff]
    %v392 = vld [vmem:[%s1 + $0xb20] sm:$0xff]
    %v393 = vld [vmem:[%s1 + $0xb28] sm:$0xff]
    %v394 = vld [vmem:[%s1 + $0xb30] sm:$0xff]
    %v395 = vld [vmem:[%s1 + $0xb38] sm:$0xff]
    %v396 = vld [vmem:[%s1 + $0xb40] sm:$0xff]
    %v397 = vld [vmem:[%s1 + $0xb48] sm:$0xff]
    %v398 = vld [vmem:[%s1 + $0xb50] sm:$0xff]
    %v399 = vld [vmem:[%s1 + $0xb58] sm:$0xff]
    %v400 = vld [vmem:[%s1 + $0xb60] sm:$0xff]
    %v401 = vld [vmem:[%s1 + $0xb68] sm:$0xff]
    %v402 = vld [vmem:[%s1 + $0xb70] sm:$0xff]
    %v403 = vld [vmem:[%s1 + $0xb78] sm:$0xff]
    %v404 = vld [vmem:[%s1 + $0xb80] sm:$0xff]
    %v405 = vld [vmem:[%s1 + $0xb88] sm:$0xff]
    %v406 = vld [vmem:[%s1 + $0xb90] sm:$0xff]
    %v407 = vld [vmem:[%s1 + $0xb98] sm:$0xff]
    %v408 = vld [vmem:[%s1 + $0xba0] sm:$0xff]
    %v409 = vld [vmem:[%s1 + $0xba8] sm:$0xff]
    %v410 = vld [vmem:[%s1 + $0xbb0] sm:$0xff]
    %v411 = vld [vmem:[%s1 + $0xbb8] sm:$0xff]
    %v412 = vld [vmem:[%s1 + $0xbc0] sm:$0xff]
    %v413 = vld [vmem:[%s1 + $0xbc8] sm:$0xff]
    %v414 = vld [vmem:[%s1 + $0xbd0] sm:$0xff]
    %v415 = vld [vmem:[%s1 + $0xbd8] sm:$0xff]
    %v416 = vld [vmem:[%s1 + $0xbe0] sm:$0xff]
    %v417 = vld [vmem:[%s1 + $0xbe8] sm:$0xff]
    %v418 = vld [vmem:[%s1 + $0xbf0] sm:$0xff]
    %v419 = vld [vmem:[%s1 + $0xbf8] sm:$0xff]
    %v420 = vld [vmem:[%s2] sm:$0xff]
    %v422 = vperm.slane %v420, 0
    %v423 = vperm.slane %v420, 1
    %v424 = vperm.slane %v420, 2
    %v425 = vperm.slane %v420, 3
    %v426 = vperm.slane %v420, 4
    %v427 = vperm.slane %v420, 5
    %v428 = vperm.slane %v420, 6
    %v429 = vperm.slane %v420, 7
    %v450 = vunpack.c.l.b16 %v24
    %v451 = vunpack.c.h.b16 %v24
    %v452 = vunpack.c.l.b16 %v25
    %v453 = vunpack.c.h.b16 %v25
    %v454 = vunpack.c.l.b16 %v26
    %v455 = vunpack.c.h.b16 %v26
    %v456 = vunpack.c.l.b16 %v27
    %v457 = vunpack.c.h.b16 %v27
    %v458 = vunpack.c.l.b16 %v28
    %v459 = vunpack.c.h.b16 %v28
    %v460 = vunpack.c.l.b16 %v29
    %v461 = vunpack.c.h.b16 %v29
    %v462 = vunpack.c.l.b16 %v30
    %v463 = vunpack.c.h.b16 %v30
    %v464 = vunpack.c.l.b16 %v31
    %v465 = vunpack.c.h.b16 %v31
    %v466 = vunpack.c.l.b16 %v32
    %v467 = vunpack.c.h.b16 %v32
    %v468 = vunpack.c.l.b16 %v33
    %v469 = vunpack.c.h.b16 %v33
    %v470 = vunpack.c.l.b16 %v34
    %v471 = vunpack.c.h.b16 %v34
    %v472 = vunpack.c.l.b16 %v35
    %v473 = vunpack.c.h.b16 %v35
    %v474 = vpack.c.b16 %v456, %v450
    %v475 = vpack.c.b16 %v457, %v451
    %v476 = vpack.c.b16 %v458, %v452
    %v477 = vpack.c.b16 %v459, %v453
    %v478 = vpack.c.b16 %v460, %v454
    %v479 = vpack.c.b16 %v461, %v455
    %v480 = vpack.c.b16 %v468, %v462
    %v481 = vpack.c.b16 %v469, %v463
    %v482 = vpack.c.b16 %v470, %v464
    %v483 = vpack.c.b16 %v471, %v465
    %v484 = vpack.c.b16 %v472, %v466
    %v485 = vpack.c.b16 %v473, %v467
    %v882 = vunpack.c.l.b16 %v36
    %v883 = vunpack.c.h.b16 %v36
    %v884 = vunpack.c.l.b16 %v37
    %v885 = vunpack.c.h.b16 %v37
    %v886 = vunpack.c.l.b16 %v38
    %v887 = vunpack.c.h.b16 %v38
    %v888 = vunpack.c.l.b16 %v39
    %v889 = vunpack.c.h.b16 %v39
    %v890 = vunpack.c.l.b16 %v40
    %v891 = vunpack.c.h.b16 %v40
    %v892 = vunpack.c.l.b16 %v41
    %v893 = vunpack.c.h.b16 %v41
    %v894 = vunpack.c.l.b16 %v42
    %v895 = vunpack.c.h.b16 %v42
    %v896 = vunpack.c.l.b16 %v43
    %v897 = vunpack.c.h.b16 %v43
    %v898 = vunpack.c.l.b16 %v44
    %v899 = vunpack.c.h.b16 %v44
    %v900 = vunpack.c.l.b16 %v45
    %v901 = vunpack.c.h.b16 %v45
    %v902 = vunpack.c.l.b16 %v46
    %v903 = vunpack.c.h.b16 %v46
    %v904 = vunpack.c.l.b16 %v47
    %v905 = vunpack.c.h.b16 %v47
    %v906 = vunpack.c.l.b16 %v48
    %v907 = vunpack.c.h.b16 %v48
    %v908 = vunpack.c.l.b16 %v49
    %v909 = vunpack.c.h.b16 %v49
    %v910 = vunpack.c.l.b16 %v50
    %v911 = vunpack.c.h.b16 %v50
    %v912 = vunpack.c.l.b16 %v51
    %v913 = vunpack.c.h.b16 %v51
    %v914 = vunpack.c.l.b16 %v52
    %v915 = vunpack.c.h.b16 %v52
    %v916 = vunpack.c.l.b16 %v53
    %v917 = vunpack.c.h.b16 %v53
    %v918 = vunpack.c.l.b16 %v54
    %v919 = vunpack.c.h.b16 %v54
    %v920 = vunpack.c.l.b16 %v55
    %v921 = vunpack.c.h.b16 %v55
    %v922 = vunpack.c.l.b16 %v56
    %v923 = vunpack.c.h.b16 %v56
    %v924 = vunpack.c.l.b16 %v57
    %v925 = vunpack.c.h.b16 %v57
    %v926 = vunpack.c.l.b16 %v58
    %v927 = vunpack.c.h.b16 %v58
    %v928 = vunpack.c.l.b16 %v59
    %v929 = vunpack.c.h.b16 %v59
    %v930 = vunpack.c.l.b16 %v60
    %v931 = vunpack.c.h.b16 %v60
    %v932 = vunpack.c.l.b16 %v61
    %v933 = vunpack.c.h.b16 %v61
    %v934 = vunpack.c.l.b16 %v62
    %v935 = vunpack.c.h.b16 %v62
    %v936 = vunpack.c.l.b16 %v63
    %v937 = vunpack.c.h.b16 %v63
    %v938 = vunpack.c.l.b16 %v64
    %v939 = vunpack.c.h.b16 %v64
    %v940 = vunpack.c.l.b16 %v65
    %v941 = vunpack.c.h.b16 %v65
    %v942 = vunpack.c.l.b16 %v66
    %v943 = vunpack.c.h.b16 %v66
    %v944 = vunpack.c.l.b16 %v67
    %v945 = vunpack.c.h.b16 %v67
    %v946 = vunpack.c.l.b16 %v68
    %v947 = vunpack.c.h.b16 %v68
    %v948 = vunpack.c.l.b16 %v69
    %v949 = vunpack.c.h.b16 %v69
    %v950 = vunpack.c.l.b16 %v70
    %v951 = vunpack.c.h.b16 %v70
    %v952 = vunpack.c.l.b16 %v71
    %v953 = vunpack.c.h.b16 %v71
    %v954 = vunpack.c.l.b16 %v72
    %v955 = vunpack.c.h.b16 %v72
    %v956 = vunpack.c.l.b16 %v73
    %v957 = vunpack.c.h.b16 %v73
    %v958 = vunpack.c.l.b16 %v74
    %v959 = vunpack.c.h.b16 %v74
    %v960 = vunpack.c.l.b16 %v75
    %v961 = vunpack.c.h.b16 %v75
    %v962 = vunpack.c.l.b16 %v76
    %v963 = vunpack.c.h.b16 %v76
    %v964 = vunpack.c.l.b16 %v77
    %v965 = vunpack.c.h.b16 %v77
    %v966 = vunpack.c.l.b16 %v78
    %v967 = vunpack.c.h.b16 %v78
    %v968 = vunpack.c.l.b16 %v79
    %v969 = vunpack.c.h.b16 %v79
    %v970 = vunpack.c.l.b16 %v80
    %v971 = vunpack.c.h.b16 %v80
    %v972 = vunpack.c.l.b16 %v81
    %v973 = vunpack.c.h.b16 %v81
    %v974 = vunpack.c.l.b16 %v82
    %v975 = vunpack.c.h.b16 %v82
    %v976 = vunpack.c.l.b16 %v83
    %v977 = vunpack.c.h.b16 %v83
    %v978 = vunpack.c.l.b16 %v84
    %v979 = vunpack.c.h.b16 %v84
    %v980 = vunpack.c.l.b16 %v85
    %v981 = vunpack.c.h.b16 %v85
    %v982 = vunpack.c.l.b16 %v86
    %v983 = vunpack.c.h.b16 %v86
    %v984 = vunpack.c.l.b16 %v87
    %v985 = vunpack.c.h.b16 %v87
    %v986 = vunpack.c.l.b16 %v88
    %v987 = vunpack.c.h.b16 %v88
    %v988 = vunpack.c.l.b16 %v89
    %v989 = vunpack.c.h.b16 %v89
    %v990 = vunpack.c.l.b16 %v90
    %v991 = vunpack.c.h.b16 %v90
    %v992 = vunpack.c.l.b16 %v91
    %v993 = vunpack.c.h.b16 %v91
    %v994 = vunpack.c.l.b16 %v92
    %v995 = vunpack.c.h.b16 %v92
    %v996 = vunpack.c.l.b16 %v93
    %v997 = vunpack.c.h.b16 %v93
    %v998 = vunpack.c.l.b16 %v94
    %v999 = vunpack.c.h.b16 %v94
    %v1000 = vunpack.c.l.b16 %v95
    %v1001 = vunpack.c.h.b16 %v95
    %v1002 = vunpack.c.l.b16 %v96
    %v1003 = vunpack.c.h.b16 %v96
    %v1004 = vunpack.c.l.b16 %v97
    %v1005 = vunpack.c.h.b16 %v97
    %v1006 = vunpack.c.l.b16 %v98
    %v1007 = vunpack.c.h.b16 %v98
    %v1008 = vunpack.c.l.b16 %v99
    %v1009 = vunpack.c.h.b16 %v99
    %v1010 = vunpack.c.l.b16 %v100
    %v1011 = vunpack.c.h.b16 %v100
    %v1012 = vunpack.c.l.b16 %v101
    %v1013 = vunpack.c.h.b16 %v101
    %v1014 = vunpack.c.l.b16 %v102
    %v1015 = vunpack.c.h.b16 %v102
    %v1016 = vunpack.c.l.b16 %v103
    %v1017 = vunpack.c.h.b16 %v103
    %v1018 = vunpack.c.l.b16 %v104
    %v1019 = vunpack.c.h.b16 %v104
    %v1020 = vunpack.c.l.b16 %v105
    %v1021 = vunpack.c.h.b16 %v105
    %v1022 = vunpack.c.l.b16 %v106
    %v1023 = vunpack.c.h.b16 %v106
    %v1024 = vunpack.c.l.b16 %v107
    %v1025 = vunpack.c.h.b16 %v107
    %v1026 = vunpack.c.l.b16 %v108
    %v1027 = vunpack.c.h.b16 %v108
    %v1028 = vunpack.c.l.b16 %v109
    %v1029 = vunpack.c.h.b16 %v109
    %v1030 = vunpack.c.l.b16 %v110
    %v1031 = vunpack.c.h.b16 %v110
    %v1032 = vunpack.c.l.b16 %v111
    %v1033 = vunpack.c.h.b16 %v111
    %v1034 = vunpack.c.l.b16 %v112
    %v1035 = vunpack.c.h.b16 %v112
    %v1036 = vunpack.c.l.b16 %v113
    %v1037 = vunpack.c.h.b16 %v113
    %v1038 = vunpack.c.l.b16 %v114
    %v1039 = vunpack.c.h.b16 %v114
    %v1040 = vunpack.c.l.b16 %v115
    %v1041 = vunpack.c.h.b16 %v115
    %v1042 = vunpack.c.l.b16 %v116
    %v1043 = vunpack.c.h.b16 %v116
    %v1044 = vunpack.c.l.b16 %v117
    %v1045 = vunpack.c.h.b16 %v117
    %v1046 = vunpack.c.l.b16 %v118
    %v1047 = vunpack.c.h.b16 %v118
    %v1048 = vunpack.c.l.b16 %v119
    %v1049 = vunpack.c.h.b16 %v119
    %v1050 = vunpack.c.l.b16 %v120
    %v1051 = vunpack.c.h.b16 %v120
    %v1052 = vunpack.c.l.b16 %v121
    %v1053 = vunpack.c.h.b16 %v121
    %v1054 = vunpack.c.l.b16 %v122
    %v1055 = vunpack.c.h.b16 %v122
    %v1056 = vunpack.c.l.b16 %v123
    %v1057 = vunpack.c.h.b16 %v123
    %v1058 = vunpack.c.l.b16 %v124
    %v1059 = vunpack.c.h.b16 %v124
    %v1060 = vunpack.c.l.b16 %v125
    %v1061 = vunpack.c.h.b16 %v125
    %v1062 = vunpack.c.l.b16 %v126
    %v1063 = vunpack.c.h.b16 %v126
    %v1064 = vunpack.c.l.b16 %v127
    %v1065 = vunpack.c.h.b16 %v127
    %v1066 = vunpack.c.l.b16 %v128
    %v1067 = vunpack.c.h.b16 %v128
    %v1068 = vunpack.c.l.b16 %v129
    %v1069 = vunpack.c.h.b16 %v129
    %v1070 = vunpack.c.l.b16 %v130
    %v1071 = vunpack.c.h.b16 %v130
    %v1072 = vunpack.c.l.b16 %v131
    %v1073 = vunpack.c.h.b16 %v131
    %v1074 = vunpack.c.l.b16 %v132
    %v1075 = vunpack.c.h.b16 %v132
    %v1076 = vunpack.c.l.b16 %v133
    %v1077 = vunpack.c.h.b16 %v133
    %v1078 = vunpack.c.l.b16 %v134
    %v1079 = vunpack.c.h.b16 %v134
    %v1080 = vunpack.c.l.b16 %v135
    %v1081 = vunpack.c.h.b16 %v135
    %v1082 = vunpack.c.l.b16 %v136
    %v1083 = vunpack.c.h.b16 %v136
    %v1084 = vunpack.c.l.b16 %v137
    %v1085 = vunpack.c.h.b16 %v137
    %v1086 = vunpack.c.l.b16 %v138
    %v1087 = vunpack.c.h.b16 %v138
    %v1088 = vunpack.c.l.b16 %v139
    %v1089 = vunpack.c.h.b16 %v139
    %v1090 = vunpack.c.l.b16 %v140
    %v1091 = vunpack.c.h.b16 %v140
    %v1092 = vunpack.c.l.b16 %v141
    %v1093 = vunpack.c.h.b16 %v141
    %v1094 = vunpack.c.l.b16 %v142
    %v1095 = vunpack.c.h.b16 %v142
    %v1096 = vunpack.c.l.b16 %v143
    %v1097 = vunpack.c.h.b16 %v143
    %v1098 = vunpack.c.l.b16 %v144
    %v1099 = vunpack.c.h.b16 %v144
    %v1100 = vunpack.c.l.b16 %v145
    %v1101 = vunpack.c.h.b16 %v145
    %v1102 = vunpack.c.l.b16 %v146
    %v1103 = vunpack.c.h.b16 %v146
    %v1104 = vunpack.c.l.b16 %v147
    %v1105 = vunpack.c.h.b16 %v147
    %v1106 = vunpack.c.l.b16 %v148
    %v1107 = vunpack.c.h.b16 %v148
    %v1108 = vunpack.c.l.b16 %v149
    %v1109 = vunpack.c.h.b16 %v149
    %v1110 = vunpack.c.l.b16 %v150
    %v1111 = vunpack.c.h.b16 %v150
    %v1112 = vunpack.c.l.b16 %v151
    %v1113 = vunpack.c.h.b16 %v151
    %v1114 = vunpack.c.l.b16 %v152
    %v1115 = vunpack.c.h.b16 %v152
    %v1116 = vunpack.c.l.b16 %v153
    %v1117 = vunpack.c.h.b16 %v153
    %v1118 = vunpack.c.l.b16 %v154
    %v1119 = vunpack.c.h.b16 %v154
    %v1120 = vunpack.c.l.b16 %v155
    %v1121 = vunpack.c.h.b16 %v155
    %v1122 = vunpack.c.l.b16 %v156
    %v1123 = vunpack.c.h.b16 %v156
    %v1124 = vunpack.c.l.b16 %v157
    %v1125 = vunpack.c.h.b16 %v157
    %v1126 = vunpack.c.l.b16 %v158
    %v1127 = vunpack.c.h.b16 %v158
    %v1128 = vunpack.c.l.b16 %v159
    %v1129 = vunpack.c.h.b16 %v159
    %v1130 = vunpack.c.l.b16 %v160
    %v1131 = vunpack.c.h.b16 %v160
    %v1132 = vunpack.c.l.b16 %v161
    %v1133 = vunpack.c.h.b16 %v161
    %v1134 = vunpack.c.l.b16 %v162
    %v1135 = vunpack.c.h.b16 %v162
    %v1136 = vunpack.c.l.b16 %v163
    %v1137 = vunpack.c.h.b16 %v163
    %v1138 = vunpack.c.l.b16 %v164
    %v1139 = vunpack.c.h.b16 %v164
    %v1140 = vunpack.c.l.b16 %v165
    %v1141 = vunpack.c.h.b16 %v165
    %v1142 = vunpack.c.l.b16 %v166
    %v1143 = vunpack.c.h.b16 %v166
    %v1144 = vunpack.c.l.b16 %v167
    %v1145 = vunpack.c.h.b16 %v167
    %v1146 = vunpack.c.l.b16 %v168
    %v1147 = vunpack.c.h.b16 %v168
    %v1148 = vunpack.c.l.b16 %v169
    %v1149 = vunpack.c.h.b16 %v169
    %v1150 = vunpack.c.l.b16 %v170
    %v1151 = vunpack.c.h.b16 %v170
    %v1152 = vunpack.c.l.b16 %v171
    %v1153 = vunpack.c.h.b16 %v171
    %v1154 = vunpack.c.l.b16 %v172
    %v1155 = vunpack.c.h.b16 %v172
    %v1156 = vunpack.c.l.b16 %v173
    %v1157 = vunpack.c.h.b16 %v173
    %v1158 = vunpack.c.l.b16 %v174
    %v1159 = vunpack.c.h.b16 %v174
    %v1160 = vunpack.c.l.b16 %v175
    %v1161 = vunpack.c.h.b16 %v175
    %v1162 = vunpack.c.l.b16 %v176
    %v1163 = vunpack.c.h.b16 %v176
    %v1164 = vunpack.c.l.b16 %v177
    %v1165 = vunpack.c.h.b16 %v177
    %v1166 = vunpack.c.l.b16 %v178
    %v1167 = vunpack.c.h.b16 %v178
    %v1168 = vunpack.c.l.b16 %v179
    %v1169 = vunpack.c.h.b16 %v179
    %v1170 = vunpack.c.l.b16 %v180
    %v1171 = vunpack.c.h.b16 %v180
    %v1172 = vunpack.c.l.b16 %v181
    %v1173 = vunpack.c.h.b16 %v181
    %v1174 = vunpack.c.l.b16 %v182
    %v1175 = vunpack.c.h.b16 %v182
    %v1176 = vunpack.c.l.b16 %v183
    %v1177 = vunpack.c.h.b16 %v183
    %v1178 = vunpack.c.l.b16 %v184
    %v1179 = vunpack.c.h.b16 %v184
    %v1180 = vunpack.c.l.b16 %v185
    %v1181 = vunpack.c.h.b16 %v185
    %v1182 = vunpack.c.l.b16 %v186
    %v1183 = vunpack.c.h.b16 %v186
    %v1184 = vunpack.c.l.b16 %v187
    %v1185 = vunpack.c.h.b16 %v187
    %v1186 = vunpack.c.l.b16 %v188
    %v1187 = vunpack.c.h.b16 %v188
    %v1188 = vunpack.c.l.b16 %v189
    %v1189 = vunpack.c.h.b16 %v189
    %v1190 = vunpack.c.l.b16 %v190
    %v1191 = vunpack.c.h.b16 %v190
    %v1192 = vunpack.c.l.b16 %v191
    %v1193 = vunpack.c.h.b16 %v191
    %v1194 = vunpack.c.l.b16 %v192
    %v1195 = vunpack.c.h.b16 %v192
    %v1196 = vunpack.c.l.b16 %v193
    %v1197 = vunpack.c.h.b16 %v193
    %v1198 = vunpack.c.l.b16 %v194
    %v1199 = vunpack.c.h.b16 %v194
    %v1200 = vunpack.c.l.b16 %v195
    %v1201 = vunpack.c.h.b16 %v195
    %v1202 = vunpack.c.l.b16 %v196
    %v1203 = vunpack.c.h.b16 %v196
    %v1204 = vunpack.c.l.b16 %v197
    %v1205 = vunpack.c.h.b16 %v197
    %v1206 = vunpack.c.l.b16 %v198
    %v1207 = vunpack.c.h.b16 %v198
    %v1208 = vunpack.c.l.b16 %v199
    %v1209 = vunpack.c.h.b16 %v199
    %v1210 = vunpack.c.l.b16 %v200
    %v1211 = vunpack.c.h.b16 %v200
    %v1212 = vunpack.c.l.b16 %v201
    %v1213 = vunpack.c.h.b16 %v201
    %v1214 = vunpack.c.l.b16 %v202
    %v1215 = vunpack.c.h.b16 %v202
    %v1216 = vunpack.c.l.b16 %v203
    %v1217 = vunpack.c.h.b16 %v203
    %v1218 = vunpack.c.l.b16 %v204
    %v1219 = vunpack.c.h.b16 %v204
    %v1220 = vunpack.c.l.b16 %v205
    %v1221 = vunpack.c.h.b16 %v205
    %v1222 = vunpack.c.l.b16 %v206
    %v1223 = vunpack.c.h.b16 %v206
    %v1224 = vunpack.c.l.b16 %v207
    %v1225 = vunpack.c.h.b16 %v207
    %v1226 = vunpack.c.l.b16 %v208
    %v1227 = vunpack.c.h.b16 %v208
    %v1228 = vunpack.c.l.b16 %v209
    %v1229 = vunpack.c.h.b16 %v209
    %v1230 = vunpack.c.l.b16 %v210
    %v1231 = vunpack.c.h.b16 %v210
    %v1232 = vunpack.c.l.b16 %v211
    %v1233 = vunpack.c.h.b16 %v211
    %v1234 = vunpack.c.l.b16 %v212
    %v1235 = vunpack.c.h.b16 %v212
    %v1236 = vunpack.c.l.b16 %v213
    %v1237 = vunpack.c.h.b16 %v213
    %v1238 = vunpack.c.l.b16 %v214
    %v1239 = vunpack.c.h.b16 %v214
    %v1240 = vunpack.c.l.b16 %v215
    %v1241 = vunpack.c.h.b16 %v215
    %v1242 = vunpack.c.l.b16 %v216
    %v1243 = vunpack.c.h.b16 %v216
    %v1244 = vunpack.c.l.b16 %v217
    %v1245 = vunpack.c.h.b16 %v217
    %v1246 = vunpack.c.l.b16 %v218
    %v1247 = vunpack.c.h.b16 %v218
    %v1248 = vunpack.c.l.b16 %v219
    %v1249 = vunpack.c.h.b16 %v219
    %v1250 = vunpack.c.l.b16 %v220
    %v1251 = vunpack.c.h.b16 %v220
    %v1252 = vunpack.c.l.b16 %v221
    %v1253 = vunpack.c.h.b16 %v221
    %v1254 = vunpack.c.l.b16 %v222
    %v1255 = vunpack.c.h.b16 %v222
    %v1256 = vunpack.c.l.b16 %v223
    %v1257 = vunpack.c.h.b16 %v223
    %v1258 = vunpack.c.l.b16 %v224
    %v1259 = vunpack.c.h.b16 %v224
    %v1260 = vunpack.c.l.b16 %v225
    %v1261 = vunpack.c.h.b16 %v225
    %v1262 = vunpack.c.l.b16 %v226
    %v1263 = vunpack.c.h.b16 %v226
    %v1264 = vunpack.c.l.b16 %v227
    %v1265 = vunpack.c.h.b16 %v227
    %v1266 = vunpack.c.l.b16 %v228
    %v1267 = vunpack.c.h.b16 %v228
    %v1268 = vunpack.c.l.b16 %v229
    %v1269 = vunpack.c.h.b16 %v229
    %v1270 = vunpack.c.l.b16 %v230
    %v1271 = vunpack.c.h.b16 %v230
    %v1272 = vunpack.c.l.b16 %v231
    %v1273 = vunpack.c.h.b16 %v231
    %v1274 = vunpack.c.l.b16 %v232
    %v1275 = vunpack.c.h.b16 %v232
    %v1276 = vunpack.c.l.b16 %v233
    %v1277 = vunpack.c.h.b16 %v233
    %v1278 = vunpack.c.l.b16 %v234
    %v1279 = vunpack.c.h.b16 %v234
    %v1280 = vunpack.c.l.b16 %v235
    %v1281 = vunpack.c.h.b16 %v235
    %v1282 = vunpack.c.l.b16 %v236
    %v1283 = vunpack.c.h.b16 %v236
    %v1284 = vunpack.c.l.b16 %v237
    %v1285 = vunpack.c.h.b16 %v237
    %v1286 = vunpack.c.l.b16 %v238
    %v1287 = vunpack.c.h.b16 %v238
    %v1288 = vunpack.c.l.b16 %v239
    %v1289 = vunpack.c.h.b16 %v239
    %v1290 = vunpack.c.l.b16 %v240
    %v1291 = vunpack.c.h.b16 %v240
    %v1292 = vunpack.c.l.b16 %v241
    %v1293 = vunpack.c.h.b16 %v241
    %v1294 = vunpack.c.l.b16 %v242
    %v1295 = vunpack.c.h.b16 %v242
    %v1296 = vunpack.c.l.b16 %v243
    %v1297 = vunpack.c.h.b16 %v243
    %v1298 = vunpack.c.l.b16 %v244
    %v1299 = vunpack.c.h.b16 %v244
    %v1300 = vunpack.c.l.b16 %v245
    %v1301 = vunpack.c.h.b16 %v245
    %v1302 = vunpack.c.l.b16 %v246
    %v1303 = vunpack.c.h.b16 %v246
    %v1304 = vunpack.c.l.b16 %v247
    %v1305 = vunpack.c.h.b16 %v247
    %v1306 = vunpack.c.l.b16 %v248
    %v1307 = vunpack.c.h.b16 %v248
    %v1308 = vunpack.c.l.b16 %v249
    %v1309 = vunpack.c.h.b16 %v249
    %v1310 = vunpack.c.l.b16 %v250
    %v1311 = vunpack.c.h.b16 %v250
    %v1312 = vunpack.c.l.b16 %v251
    %v1313 = vunpack.c.h.b16 %v251
    %v1314 = vunpack.c.l.b16 %v252
    %v1315 = vunpack.c.h.b16 %v252
    %v1316 = vunpack.c.l.b16 %v253
    %v1317 = vunpack.c.h.b16 %v253
    %v1318 = vunpack.c.l.b16 %v254
    %v1319 = vunpack.c.h.b16 %v254
    %v1320 = vunpack.c.l.b16 %v255
    %v1321 = vunpack.c.h.b16 %v255
    %v1322 = vunpack.c.l.b16 %v256
    %v1323 = vunpack.c.h.b16 %v256
    %v1324 = vunpack.c.l.b16 %v257
    %v1325 = vunpack.c.h.b16 %v257
    %v1326 = vunpack.c.l.b16 %v258
    %v1327 = vunpack.c.h.b16 %v258
    %v1328 = vunpack.c.l.b16 %v259
    %v1329 = vunpack.c.h.b16 %v259
    %v1330 = vunpack.c.l.b16 %v260
    %v1331 = vunpack.c.h.b16 %v260
    %v1332 = vunpack.c.l.b16 %v261
    %v1333 = vunpack.c.h.b16 %v261
    %v1334 = vunpack.c.l.b16 %v262
    %v1335 = vunpack.c.h.b16 %v262
    %v1336 = vunpack.c.l.b16 %v263
    %v1337 = vunpack.c.h.b16 %v263
    %v1338 = vunpack.c.l.b16 %v264
    %v1339 = vunpack.c.h.b16 %v264
    %v1340 = vunpack.c.l.b16 %v265
    %v1341 = vunpack.c.h.b16 %v265
    %v1342 = vunpack.c.l.b16 %v266
    %v1343 = vunpack.c.h.b16 %v266
    %v1344 = vunpack.c.l.b16 %v267
    %v1345 = vunpack.c.h.b16 %v267
    %v1346 = vunpack.c.l.b16 %v268
    %v1347 = vunpack.c.h.b16 %v268
    %v1348 = vunpack.c.l.b16 %v269
    %v1349 = vunpack.c.h.b16 %v269
    %v1350 = vunpack.c.l.b16 %v270
    %v1351 = vunpack.c.h.b16 %v270
    %v1352 = vunpack.c.l.b16 %v271
    %v1353 = vunpack.c.h.b16 %v271
    %v1354 = vunpack.c.l.b16 %v272
    %v1355 = vunpack.c.h.b16 %v272
    %v1356 = vunpack.c.l.b16 %v273
    %v1357 = vunpack.c.h.b16 %v273
    %v1358 = vunpack.c.l.b16 %v274
    %v1359 = vunpack.c.h.b16 %v274
    %v1360 = vunpack.c.l.b16 %v275
    %v1361 = vunpack.c.h.b16 %v275
    %v1362 = vunpack.c.l.b16 %v276
    %v1363 = vunpack.c.h.b16 %v276
    %v1364 = vunpack.c.l.b16 %v277
    %v1365 = vunpack.c.h.b16 %v277
    %v1366 = vunpack.c.l.b16 %v278
    %v1367 = vunpack.c.h.b16 %v278
    %v1368 = vunpack.c.l.b16 %v279
    %v1369 = vunpack.c.h.b16 %v279
    %v1370 = vunpack.c.l.b16 %v280
    %v1371 = vunpack.c.h.b16 %v280
    %v1372 = vunpack.c.l.b16 %v281
    %v1373 = vunpack.c.h.b16 %v281
    %v1374 = vunpack.c.l.b16 %v282
    %v1375 = vunpack.c.h.b16 %v282
    %v1376 = vunpack.c.l.b16 %v283
    %v1377 = vunpack.c.h.b16 %v283
    %v1378 = vunpack.c.l.b16 %v284
    %v1379 = vunpack.c.h.b16 %v284
    %v1380 = vunpack.c.l.b16 %v285
    %v1381 = vunpack.c.h.b16 %v285
    %v1382 = vunpack.c.l.b16 %v286
    %v1383 = vunpack.c.h.b16 %v286
    %v1384 = vunpack.c.l.b16 %v287
    %v1385 = vunpack.c.h.b16 %v287
    %v1386 = vunpack.c.l.b16 %v288
    %v1387 = vunpack.c.h.b16 %v288
    %v1388 = vunpack.c.l.b16 %v289
    %v1389 = vunpack.c.h.b16 %v289
    %v1390 = vunpack.c.l.b16 %v290
    %v1391 = vunpack.c.h.b16 %v290
    %v1392 = vunpack.c.l.b16 %v291
    %v1393 = vunpack.c.h.b16 %v291
    %v1394 = vunpack.c.l.b16 %v292
    %v1395 = vunpack.c.h.b16 %v292
    %v1396 = vunpack.c.l.b16 %v293
    %v1397 = vunpack.c.h.b16 %v293
    %v1398 = vunpack.c.l.b16 %v294
    %v1399 = vunpack.c.h.b16 %v294
    %v1400 = vunpack.c.l.b16 %v295
    %v1401 = vunpack.c.h.b16 %v295
    %v1402 = vunpack.c.l.b16 %v296
    %v1403 = vunpack.c.h.b16 %v296
    %v1404 = vunpack.c.l.b16 %v297
    %v1405 = vunpack.c.h.b16 %v297
    %v1406 = vunpack.c.l.b16 %v298
    %v1407 = vunpack.c.h.b16 %v298
    %v1408 = vunpack.c.l.b16 %v299
    %v1409 = vunpack.c.h.b16 %v299
    %v1410 = vunpack.c.l.b16 %v300
    %v1411 = vunpack.c.h.b16 %v300
    %v1412 = vunpack.c.l.b16 %v301
    %v1413 = vunpack.c.h.b16 %v301
    %v1414 = vunpack.c.l.b16 %v302
    %v1415 = vunpack.c.h.b16 %v302
    %v1416 = vunpack.c.l.b16 %v303
    %v1417 = vunpack.c.h.b16 %v303
    %v1418 = vunpack.c.l.b16 %v304
    %v1419 = vunpack.c.h.b16 %v304
    %v1420 = vunpack.c.l.b16 %v305
    %v1421 = vunpack.c.h.b16 %v305
    %v1422 = vunpack.c.l.b16 %v306
    %v1423 = vunpack.c.h.b16 %v306
    %v1424 = vunpack.c.l.b16 %v307
    %v1425 = vunpack.c.h.b16 %v307
    %v1426 = vunpack.c.l.b16 %v308
    %v1427 = vunpack.c.h.b16 %v308
    %v1428 = vunpack.c.l.b16 %v309
    %v1429 = vunpack.c.h.b16 %v309
    %v1430 = vunpack.c.l.b16 %v310
    %v1431 = vunpack.c.h.b16 %v310
    %v1432 = vunpack.c.l.b16 %v311
    %v1433 = vunpack.c.h.b16 %v311
    %v1434 = vunpack.c.l.b16 %v312
    %v1435 = vunpack.c.h.b16 %v312
    %v1436 = vunpack.c.l.b16 %v313
    %v1437 = vunpack.c.h.b16 %v313
    %v1438 = vunpack.c.l.b16 %v314
    %v1439 = vunpack.c.h.b16 %v314
    %v1440 = vunpack.c.l.b16 %v315
    %v1441 = vunpack.c.h.b16 %v315
    %v1442 = vunpack.c.l.b16 %v316
    %v1443 = vunpack.c.h.b16 %v316
    %v1444 = vunpack.c.l.b16 %v317
    %v1445 = vunpack.c.h.b16 %v317
    %v1446 = vunpack.c.l.b16 %v318
    %v1447 = vunpack.c.h.b16 %v318
    %v1448 = vunpack.c.l.b16 %v319
    %v1449 = vunpack.c.h.b16 %v319
    %v1450 = vunpack.c.l.b16 %v320
    %v1451 = vunpack.c.h.b16 %v320
    %v1452 = vunpack.c.l.b16 %v321
    %v1453 = vunpack.c.h.b16 %v321
    %v1454 = vunpack.c.l.b16 %v322
    %v1455 = vunpack.c.h.b16 %v322
    %v1456 = vunpack.c.l.b16 %v323
    %v1457 = vunpack.c.h.b16 %v323
    %v1458 = vunpack.c.l.b16 %v324
    %v1459 = vunpack.c.h.b16 %v324
    %v1460 = vunpack.c.l.b16 %v325
    %v1461 = vunpack.c.h.b16 %v325
    %v1462 = vunpack.c.l.b16 %v326
    %v1463 = vunpack.c.h.b16 %v326
    %v1464 = vunpack.c.l.b16 %v327
    %v1465 = vunpack.c.h.b16 %v327
    %v1466 = vunpack.c.l.b16 %v328
    %v1467 = vunpack.c.h.b16 %v328
    %v1468 = vunpack.c.l.b16 %v329
    %v1469 = vunpack.c.h.b16 %v329
    %v1470 = vunpack.c.l.b16 %v330
    %v1471 = vunpack.c.h.b16 %v330
    %v1472 = vunpack.c.l.b16 %v331
    %v1473 = vunpack.c.h.b16 %v331
    %v1474 = vunpack.c.l.b16 %v332
    %v1475 = vunpack.c.h.b16 %v332
    %v1476 = vunpack.c.l.b16 %v333
    %v1477 = vunpack.c.h.b16 %v333
    %v1478 = vunpack.c.l.b16 %v334
    %v1479 = vunpack.c.h.b16 %v334
    %v1480 = vunpack.c.l.b16 %v335
    %v1481 = vunpack.c.h.b16 %v335
    %v1482 = vunpack.c.l.b16 %v336
    %v1483 = vunpack.c.h.b16 %v336
    %v1484 = vunpack.c.l.b16 %v337
    %v1485 = vunpack.c.h.b16 %v337
    %v1486 = vunpack.c.l.b16 %v338
    %v1487 = vunpack.c.h.b16 %v338
    %v1488 = vunpack.c.l.b16 %v339
    %v1489 = vunpack.c.h.b16 %v339
    %v1490 = vunpack.c.l.b16 %v340
    %v1491 = vunpack.c.h.b16 %v340
    %v1492 = vunpack.c.l.b16 %v341
    %v1493 = vunpack.c.h.b16 %v341
    %v1494 = vunpack.c.l.b16 %v342
    %v1495 = vunpack.c.h.b16 %v342
    %v1496 = vunpack.c.l.b16 %v343
    %v1497 = vunpack.c.h.b16 %v343
    %v1498 = vunpack.c.l.b16 %v344
    %v1499 = vunpack.c.h.b16 %v344
    %v1500 = vunpack.c.l.b16 %v345
    %v1501 = vunpack.c.h.b16 %v345
    %v1502 = vunpack.c.l.b16 %v346
    %v1503 = vunpack.c.h.b16 %v346
    %v1504 = vunpack.c.l.b16 %v347
    %v1505 = vunpack.c.h.b16 %v347
    %v1506 = vunpack.c.l.b16 %v348
    %v1507 = vunpack.c.h.b16 %v348
    %v1508 = vunpack.c.l.b16 %v349
    %v1509 = vunpack.c.h.b16 %v349
    %v1510 = vunpack.c.l.b16 %v350
    %v1511 = vunpack.c.h.b16 %v350
    %v1512 = vunpack.c.l.b16 %v351
    %v1513 = vunpack.c.h.b16 %v351
    %v1514 = vunpack.c.l.b16 %v352
    %v1515 = vunpack.c.h.b16 %v352
    %v1516 = vunpack.c.l.b16 %v353
    %v1517 = vunpack.c.h.b16 %v353
    %v1518 = vunpack.c.l.b16 %v354
    %v1519 = vunpack.c.h.b16 %v354
    %v1520 = vunpack.c.l.b16 %v355
    %v1521 = vunpack.c.h.b16 %v355
    %v1522 = vunpack.c.l.b16 %v356
    %v1523 = vunpack.c.h.b16 %v356
    %v1524 = vunpack.c.l.b16 %v357
    %v1525 = vunpack.c.h.b16 %v357
    %v1526 = vunpack.c.l.b16 %v358
    %v1527 = vunpack.c.h.b16 %v358
    %v1528 = vunpack.c.l.b16 %v359
    %v1529 = vunpack.c.h.b16 %v359
    %v1530 = vunpack.c.l.b16 %v360
    %v1531 = vunpack.c.h.b16 %v360
    %v1532 = vunpack.c.l.b16 %v361
    %v1533 = vunpack.c.h.b16 %v361
    %v1534 = vunpack.c.l.b16 %v362
    %v1535 = vunpack.c.h.b16 %v362
    %v1536 = vunpack.c.l.b16 %v363
    %v1537 = vunpack.c.h.b16 %v363
    %v1538 = vunpack.c.l.b16 %v364
    %v1539 = vunpack.c.h.b16 %v364
    %v1540 = vunpack.c.l.b16 %v365
    %v1541 = vunpack.c.h.b16 %v365
    %v1542 = vunpack.c.l.b16 %v366
    %v1543 = vunpack.c.h.b16 %v366
    %v1544 = vunpack.c.l.b16 %v367
    %v1545 = vunpack.c.h.b16 %v367
    %v1546 = vunpack.c.l.b16 %v368
    %v1547 = vunpack.c.h.b16 %v368
    %v1548 = vunpack.c.l.b16 %v369
    %v1549 = vunpack.c.h.b16 %v369
    %v1550 = vunpack.c.l.b16 %v370
    %v1551 = vunpack.c.h.b16 %v370
    %v1552 = vunpack.c.l.b16 %v371
    %v1553 = vunpack.c.h.b16 %v371
    %v1554 = vunpack.c.l.b16 %v372
    %v1555 = vunpack.c.h.b16 %v372
    %v1556 = vunpack.c.l.b16 %v373
    %v1557 = vunpack.c.h.b16 %v373
    %v1558 = vunpack.c.l.b16 %v374
    %v1559 = vunpack.c.h.b16 %v374
    %v1560 = vunpack.c.l.b16 %v375
    %v1561 = vunpack.c.h.b16 %v375
    %v1562 = vunpack.c.l.b16 %v376
    %v1563 = vunpack.c.h.b16 %v376
    %v1564 = vunpack.c.l.b16 %v377
    %v1565 = vunpack.c.h.b16 %v377
    %v1566 = vunpack.c.l.b16 %v378
    %v1567 = vunpack.c.h.b16 %v378
    %v1568 = vunpack.c.l.b16 %v379
    %v1569 = vunpack.c.h.b16 %v379
    %v1570 = vunpack.c.l.b16 %v380
    %v1571 = vunpack.c.h.b16 %v380
    %v1572 = vunpack.c.l.b16 %v381
    %v1573 = vunpack.c.h.b16 %v381
    %v1574 = vunpack.c.l.b16 %v382
    %v1575 = vunpack.c.h.b16 %v382
    %v1576 = vunpack.c.l.b16 %v383
    %v1577 = vunpack.c.h.b16 %v383
    %v1578 = vunpack.c.l.b16 %v384
    %v1579 = vunpack.c.h.b16 %v384
    %v1580 = vunpack.c.l.b16 %v385
    %v1581 = vunpack.c.h.b16 %v385
    %v1582 = vunpack.c.l.b16 %v386
    %v1583 = vunpack.c.h.b16 %v386
    %v1584 = vunpack.c.l.b16 %v387
    %v1585 = vunpack.c.h.b16 %v387
    %v1586 = vunpack.c.l.b16 %v388
    %v1587 = vunpack.c.h.b16 %v388
    %v1588 = vunpack.c.l.b16 %v389
    %v1589 = vunpack.c.h.b16 %v389
    %v1590 = vunpack.c.l.b16 %v390
    %v1591 = vunpack.c.h.b16 %v390
    %v1592 = vunpack.c.l.b16 %v391
    %v1593 = vunpack.c.h.b16 %v391
    %v1594 = vunpack.c.l.b16 %v392
    %v1595 = vunpack.c.h.b16 %v392
    %v1596 = vunpack.c.l.b16 %v393
    %v1597 = vunpack.c.h.b16 %v393
    %v1598 = vunpack.c.l.b16 %v394
    %v1599 = vunpack.c.h.b16 %v394
    %v1600 = vunpack.c.l.b16 %v395
    %v1601 = vunpack.c.h.b16 %v395
    %v1602 = vunpack.c.l.b16 %v396
    %v1603 = vunpack.c.h.b16 %v396
    %v1604 = vunpack.c.l.b16 %v397
    %v1605 = vunpack.c.h.b16 %v397
    %v1606 = vunpack.c.l.b16 %v398
    %v1607 = vunpack.c.h.b16 %v398
    %v1608 = vunpack.c.l.b16 %v399
    %v1609 = vunpack.c.h.b16 %v399
    %v1610 = vunpack.c.l.b16 %v400
    %v1611 = vunpack.c.h.b16 %v400
    %v1612 = vunpack.c.l.b16 %v401
    %v1613 = vunpack.c.h.b16 %v401
    %v1614 = vunpack.c.l.b16 %v402
    %v1615 = vunpack.c.h.b16 %v402
    %v1616 = vunpack.c.l.b16 %v403
    %v1617 = vunpack.c.h.b16 %v403
    %v1618 = vunpack.c.l.b16 %v404
    %v1619 = vunpack.c.h.b16 %v404
    %v1620 = vunpack.c.l.b16 %v405
    %v1621 = vunpack.c.h.b16 %v405
    %v1622 = vunpack.c.l.b16 %v406
    %v1623 = vunpack.c.h.b16 %v406
    %v1624 = vunpack.c.l.b16 %v407
    %v1625 = vunpack.c.h.b16 %v407
    %v1626 = vunpack.c.l.b16 %v408
    %v1627 = vunpack.c.h.b16 %v408
    %v1628 = vunpack.c.l.b16 %v409
    %v1629 = vunpack.c.h.b16 %v409
    %v1630 = vunpack.c.l.b16 %v410
    %v1631 = vunpack.c.h.b16 %v410
    %v1632 = vunpack.c.l.b16 %v411
    %v1633 = vunpack.c.h.b16 %v411
    %v1634 = vunpack.c.l.b16 %v412
    %v1635 = vunpack.c.h.b16 %v412
    %v1636 = vunpack.c.l.b16 %v413
    %v1637 = vunpack.c.h.b16 %v413
    %v1638 = vunpack.c.l.b16 %v414
    %v1639 = vunpack.c.h.b16 %v414
    %v1640 = vunpack.c.l.b16 %v415
    %v1641 = vunpack.c.h.b16 %v415
    %v1642 = vunpack.c.l.b16 %v416
    %v1643 = vunpack.c.h.b16 %v416
    %v1644 = vunpack.c.l.b16 %v417
    %v1645 = vunpack.c.h.b16 %v417
    %v1646 = vunpack.c.l.b16 %v418
    %v1647 = vunpack.c.h.b16 %v418
    %v1648 = vunpack.c.l.b16 %v419
    %v1649 = vunpack.c.h.b16 %v419
    %v1650 = vpack.c.b16 %v890, %v882
    %v1651 = vpack.c.b16 %v891, %v883
    %v1652 = vpack.c.b16 %v892, %v884
    %v1653 = vpack.c.b16 %v893, %v885
    %v1654 = vpack.c.b16 %v894, %v886
    %v1655 = vpack.c.b16 %v895, %v887
    %v1656 = vpack.c.b16 %v896, %v888
    %v1657 = vpack.c.b16 %v897, %v889
    %v1658 = vpack.c.b16 %v906, %v898
    %v1659 = vpack.c.b16 %v907, %v899
    %v1660 = vpack.c.b16 %v908, %v900
    %v1661 = vpack.c.b16 %v909, %v901
    %v1662 = vpack.c.b16 %v910, %v902
    %v1663 = vpack.c.b16 %v911, %v903
    %v1664 = vpack.c.b16 %v912, %v904
    %v1665 = vpack.c.b16 %v913, %v905
    %v1666 = vpack.c.b16 %v922, %v914
    %v1667 = vpack.c.b16 %v923, %v915
    %v1668 = vpack.c.b16 %v924, %v916
    %v1669 = vpack.c.b16 %v925, %v917
    %v1670 = vpack.c.b16 %v926, %v918
    %v1671 = vpack.c.b16 %v927, %v919
    %v1672 = vpack.c.b16 %v928, %v920
    %v1673 = vpack.c.b16 %v929, %v921
    %v1674 = vpack.c.b16 %v938, %v930
    %v1675 = vpack.c.b16 %v939, %v931
    %v1676 = vpack.c.b16 %v940, %v932
    %v1677 = vpack.c.b16 %v941, %v933
    %v1678 = vpack.c.b16 %v942, %v934
    %v1679 = vpack.c.b16 %v943, %v935
    %v1680 = vpack.c.b16 %v944, %v936
    %v1681 = vpack.c.b16 %v945, %v937
    %v1682 = vpack.c.b16 %v954, %v946
    %v1683 = vpack.c.b16 %v955, %v947
    %v1684 = vpack.c.b16 %v956, %v948
    %v1685 = vpack.c.b16 %v957, %v949
    %v1686 = vpack.c.b16 %v958, %v950
    %v1687 = vpack.c.b16 %v959, %v951
    %v1688 = vpack.c.b16 %v960, %v952
    %v1689 = vpack.c.b16 %v961, %v953
    %v1690 = vpack.c.b16 %v970, %v962
    %v1691 = vpack.c.b16 %v971, %v963
    %v1692 = vpack.c.b16 %v972, %v964
    %v1693 = vpack.c.b16 %v973, %v965
    %v1694 = vpack.c.b16 %v974, %v966
    %v1695 = vpack.c.b16 %v975, %v967
    %v1696 = vpack.c.b16 %v976, %v968
    %v1697 = vpack.c.b16 %v977, %v969
    %v1698 = vpack.c.b16 %v986, %v978
    %v1699 = vpack.c.b16 %v987, %v979
    %v1700 = vpack.c.b16 %v988, %v980
    %v1701 = vpack.c.b16 %v989, %v981
    %v1702 = vpack.c.b16 %v990, %v982
    %v1703 = vpack.c.b16 %v991, %v983
    %v1704 = vpack.c.b16 %v992, %v984
    %v1705 = vpack.c.b16 %v993, %v985
    %v1706 = vpack.c.b16 %v1002, %v994
    %v1707 = vpack.c.b16 %v1003, %v995
    %v1708 = vpack.c.b16 %v1004, %v996
    %v1709 = vpack.c.b16 %v1005, %v997
    %v1710 = vpack.c.b16 %v1006, %v998
    %v1711 = vpack.c.b16 %v1007, %v999
    %v1712 = vpack.c.b16 %v1008, %v1000
    %v1713 = vpack.c.b16 %v1009, %v1001
    %v1714 = vpack.c.b16 %v1018, %v1010
    %v1715 = vpack.c.b16 %v1019, %v1011
    %v1716 = vpack.c.b16 %v1020, %v1012
    %v1717 = vpack.c.b16 %v1021, %v1013
    %v1718 = vpack.c.b16 %v1022, %v1014
    %v1719 = vpack.c.b16 %v1023, %v1015
    %v1720 = vpack.c.b16 %v1024, %v1016
    %v1721 = vpack.c.b16 %v1025, %v1017
    %v1722 = vpack.c.b16 %v1034, %v1026
    %v1723 = vpack.c.b16 %v1035, %v1027
    %v1724 = vpack.c.b16 %v1036, %v1028
    %v1725 = vpack.c.b16 %v1037, %v1029
    %v1726 = vpack.c.b16 %v1038, %v1030
    %v1727 = vpack.c.b16 %v1039, %v1031
    %v1728 = vpack.c.b16 %v1040, %v1032
    %v1729 = vpack.c.b16 %v1041, %v1033
    %v1730 = vpack.c.b16 %v1050, %v1042
    %v1731 = vpack.c.b16 %v1051, %v1043
    %v1732 = vpack.c.b16 %v1052, %v1044
    %v1733 = vpack.c.b16 %v1053, %v1045
    %v1734 = vpack.c.b16 %v1054, %v1046
    %v1735 = vpack.c.b16 %v1055, %v1047
    %v1736 = vpack.c.b16 %v1056, %v1048
    %v1737 = vpack.c.b16 %v1057, %v1049
    %v1738 = vpack.c.b16 %v1066, %v1058
    %v1739 = vpack.c.b16 %v1067, %v1059
    %v1740 = vpack.c.b16 %v1068, %v1060
    %v1741 = vpack.c.b16 %v1069, %v1061
    %v1742 = vpack.c.b16 %v1070, %v1062
    %v1743 = vpack.c.b16 %v1071, %v1063
    %v1744 = vpack.c.b16 %v1072, %v1064
    %v1745 = vpack.c.b16 %v1073, %v1065
    %v1746 = vpack.c.b16 %v1082, %v1074
    %v1747 = vpack.c.b16 %v1083, %v1075
    %v1748 = vpack.c.b16 %v1084, %v1076
    %v1749 = vpack.c.b16 %v1085, %v1077
    %v1750 = vpack.c.b16 %v1086, %v1078
    %v1751 = vpack.c.b16 %v1087, %v1079
    %v1752 = vpack.c.b16 %v1088, %v1080
    %v1753 = vpack.c.b16 %v1089, %v1081
    %v1754 = vpack.c.b16 %v1098, %v1090
    %v1755 = vpack.c.b16 %v1099, %v1091
    %v1756 = vpack.c.b16 %v1100, %v1092
    %v1757 = vpack.c.b16 %v1101, %v1093
    %v1758 = vpack.c.b16 %v1102, %v1094
    %v1759 = vpack.c.b16 %v1103, %v1095
    %v1760 = vpack.c.b16 %v1104, %v1096
    %v1761 = vpack.c.b16 %v1105, %v1097
    %v1762 = vpack.c.b16 %v1114, %v1106
    %v1763 = vpack.c.b16 %v1115, %v1107
    %v1764 = vpack.c.b16 %v1116, %v1108
    %v1765 = vpack.c.b16 %v1117, %v1109
    %v1766 = vpack.c.b16 %v1118, %v1110
    %v1767 = vpack.c.b16 %v1119, %v1111
    %v1768 = vpack.c.b16 %v1120, %v1112
    %v1769 = vpack.c.b16 %v1121, %v1113
    %v1770 = vpack.c.b16 %v1130, %v1122
    %v1771 = vpack.c.b16 %v1131, %v1123
    %v1772 = vpack.c.b16 %v1132, %v1124
    %v1773 = vpack.c.b16 %v1133, %v1125
    %v1774 = vpack.c.b16 %v1134, %v1126
    %v1775 = vpack.c.b16 %v1135, %v1127
    %v1776 = vpack.c.b16 %v1136, %v1128
    %v1777 = vpack.c.b16 %v1137, %v1129
    %v1778 = vpack.c.b16 %v1146, %v1138
    %v1779 = vpack.c.b16 %v1147, %v1139
    %v1780 = vpack.c.b16 %v1148, %v1140
    %v1781 = vpack.c.b16 %v1149, %v1141
    %v1782 = vpack.c.b16 %v1150, %v1142
    %v1783 = vpack.c.b16 %v1151, %v1143
    %v1784 = vpack.c.b16 %v1152, %v1144
    %v1785 = vpack.c.b16 %v1153, %v1145
    %v1786 = vpack.c.b16 %v1162, %v1154
    %v1787 = vpack.c.b16 %v1163, %v1155
    %v1788 = vpack.c.b16 %v1164, %v1156
    %v1789 = vpack.c.b16 %v1165, %v1157
    %v1790 = vpack.c.b16 %v1166, %v1158
    %v1791 = vpack.c.b16 %v1167, %v1159
    %v1792 = vpack.c.b16 %v1168, %v1160
    %v1793 = vpack.c.b16 %v1169, %v1161
    %v1794 = vpack.c.b16 %v1178, %v1170
    %v1795 = vpack.c.b16 %v1179, %v1171
    %v1796 = vpack.c.b16 %v1180, %v1172
    %v1797 = vpack.c.b16 %v1181, %v1173
    %v1798 = vpack.c.b16 %v1182, %v1174
    %v1799 = vpack.c.b16 %v1183, %v1175
    %v1800 = vpack.c.b16 %v1184, %v1176
    %v1801 = vpack.c.b16 %v1185, %v1177
    %v1802 = vpack.c.b16 %v1194, %v1186
    %v1803 = vpack.c.b16 %v1195, %v1187
    %v1804 = vpack.c.b16 %v1196, %v1188
    %v1805 = vpack.c.b16 %v1197, %v1189
    %v1806 = vpack.c.b16 %v1198, %v1190
    %v1807 = vpack.c.b16 %v1199, %v1191
    %v1808 = vpack.c.b16 %v1200, %v1192
    %v1809 = vpack.c.b16 %v1201, %v1193
    %v1810 = vpack.c.b16 %v1210, %v1202
    %v1811 = vpack.c.b16 %v1211, %v1203
    %v1812 = vpack.c.b16 %v1212, %v1204
    %v1813 = vpack.c.b16 %v1213, %v1205
    %v1814 = vpack.c.b16 %v1214, %v1206
    %v1815 = vpack.c.b16 %v1215, %v1207
    %v1816 = vpack.c.b16 %v1216, %v1208
    %v1817 = vpack.c.b16 %v1217, %v1209
    %v1818 = vpack.c.b16 %v1226, %v1218
    %v1819 = vpack.c.b16 %v1227, %v1219
    %v1820 = vpack.c.b16 %v1228, %v1220
    %v1821 = vpack.c.b16 %v1229, %v1221
    %v1822 = vpack.c.b16 %v1230, %v1222
    %v1823 = vpack.c.b16 %v1231, %v1223
    %v1824 = vpack.c.b16 %v1232, %v1224
    %v1825 = vpack.c.b16 %v1233, %v1225
    %v1826 = vpack.c.b16 %v1242, %v1234
    %v1827 = vpack.c.b16 %v1243, %v1235
    %v1828 = vpack.c.b16 %v1244, %v1236
    %v1829 = vpack.c.b16 %v1245, %v1237
    %v1830 = vpack.c.b16 %v1246, %v1238
    %v1831 = vpack.c.b16 %v1247, %v1239
    %v1832 = vpack.c.b16 %v1248, %v1240
    %v1833 = vpack.c.b16 %v1249, %v1241
    %v1834 = vpack.c.b16 %v1258, %v1250
    %v1835 = vpack.c.b16 %v1259, %v1251
    %v1836 = vpack.c.b16 %v1260, %v1252
    %v1837 = vpack.c.b16 %v1261, %v1253
    %v1838 = vpack.c.b16 %v1262, %v1254
    %v1839 = vpack.c.b16 %v1263, %v1255
    %v1840 = vpack.c.b16 %v1264, %v1256
    %v1841 = vpack.c.b16 %v1265, %v1257
    %v1842 = vpack.c.b16 %v1274, %v1266
    %v1843 = vpack.c.b16 %v1275, %v1267
    %v1844 = vpack.c.b16 %v1276, %v1268
    %v1845 = vpack.c.b16 %v1277, %v1269
    %v1846 = vpack.c.b16 %v1278, %v1270
    %v1847 = vpack.c.b16 %v1279, %v1271
    %v1848 = vpack.c.b16 %v1280, %v1272
    %v1849 = vpack.c.b16 %v1281, %v1273
    %v1850 = vpack.c.b16 %v1290, %v1282
    %v1851 = vpack.c.b16 %v1291, %v1283
    %v1852 = vpack.c.b16 %v1292, %v1284
    %v1853 = vpack.c.b16 %v1293, %v1285
    %v1854 = vpack.c.b16 %v1294, %v1286
    %v1855 = vpack.c.b16 %v1295, %v1287
    %v1856 = vpack.c.b16 %v1296, %v1288
    %v1857 = vpack.c.b16 %v1297, %v1289
    %v1858 = vpack.c.b16 %v1306, %v1298
    %v1859 = vpack.c.b16 %v1307, %v1299
    %v1860 = vpack.c.b16 %v1308, %v1300
    %v1861 = vpack.c.b16 %v1309, %v1301
    %v1862 = vpack.c.b16 %v1310, %v1302
    %v1863 = vpack.c.b16 %v1311, %v1303
    %v1864 = vpack.c.b16 %v1312, %v1304
    %v1865 = vpack.c.b16 %v1313, %v1305
    %v1866 = vpack.c.b16 %v1322, %v1314
    %v1867 = vpack.c.b16 %v1323, %v1315
    %v1868 = vpack.c.b16 %v1324, %v1316
    %v1869 = vpack.c.b16 %v1325, %v1317
    %v1870 = vpack.c.b16 %v1326, %v1318
    %v1871 = vpack.c.b16 %v1327, %v1319
    %v1872 = vpack.c.b16 %v1328, %v1320
    %v1873 = vpack.c.b16 %v1329, %v1321
    %v1874 = vpack.c.b16 %v1338, %v1330
    %v1875 = vpack.c.b16 %v1339, %v1331
    %v1876 = vpack.c.b16 %v1340, %v1332
    %v1877 = vpack.c.b16 %v1341, %v1333
    %v1878 = vpack.c.b16 %v1342, %v1334
    %v1879 = vpack.c.b16 %v1343, %v1335
    %v1880 = vpack.c.b16 %v1344, %v1336
    %v1881 = vpack.c.b16 %v1345, %v1337
    %v1882 = vpack.c.b16 %v1354, %v1346
    %v1883 = vpack.c.b16 %v1355, %v1347
    %v1884 = vpack.c.b16 %v1356, %v1348
    %v1885 = vpack.c.b16 %v1357, %v1349
    %v1886 = vpack.c.b16 %v1358, %v1350
    %v1887 = vpack.c.b16 %v1359, %v1351
    %v1888 = vpack.c.b16 %v1360, %v1352
    %v1889 = vpack.c.b16 %v1361, %v1353
    %v1890 = vpack.c.b16 %v1370, %v1362
    %v1891 = vpack.c.b16 %v1371, %v1363
    %v1892 = vpack.c.b16 %v1372, %v1364
    %v1893 = vpack.c.b16 %v1373, %v1365
    %v1894 = vpack.c.b16 %v1374, %v1366
    %v1895 = vpack.c.b16 %v1375, %v1367
    %v1896 = vpack.c.b16 %v1376, %v1368
    %v1897 = vpack.c.b16 %v1377, %v1369
    %v1898 = vpack.c.b16 %v1386, %v1378
    %v1899 = vpack.c.b16 %v1387, %v1379
    %v1900 = vpack.c.b16 %v1388, %v1380
    %v1901 = vpack.c.b16 %v1389, %v1381
    %v1902 = vpack.c.b16 %v1390, %v1382
    %v1903 = vpack.c.b16 %v1391, %v1383
    %v1904 = vpack.c.b16 %v1392, %v1384
    %v1905 = vpack.c.b16 %v1393, %v1385
    %v1906 = vpack.c.b16 %v1402, %v1394
    %v1907 = vpack.c.b16 %v1403, %v1395
    %v1908 = vpack.c.b16 %v1404, %v1396
    %v1909 = vpack.c.b16 %v1405, %v1397
    %v1910 = vpack.c.b16 %v1406, %v1398
    %v1911 = vpack.c.b16 %v1407, %v1399
    %v1912 = vpack.c.b16 %v1408, %v1400
    %v1913 = vpack.c.b16 %v1409, %v1401
    %v1914 = vpack.c.b16 %v1418, %v1410
    %v1915 = vpack.c.b16 %v1419, %v1411
    %v1916 = vpack.c.b16 %v1420, %v1412
    %v1917 = vpack.c.b16 %v1421, %v1413
    %v1918 = vpack.c.b16 %v1422, %v1414
    %v1919 = vpack.c.b16 %v1423, %v1415
    %v1920 = vpack.c.b16 %v1424, %v1416
    %v1921 = vpack.c.b16 %v1425, %v1417
    %v1922 = vpack.c.b16 %v1434, %v1426
    %v1923 = vpack.c.b16 %v1435, %v1427
    %v1924 = vpack.c.b16 %v1436, %v1428
    %v1925 = vpack.c.b16 %v1437, %v1429
    %v1926 = vpack.c.b16 %v1438, %v1430
    %v1927 = vpack.c.b16 %v1439, %v1431
    %v1928 = vpack.c.b16 %v1440, %v1432
    %v1929 = vpack.c.b16 %v1441, %v1433
    %v1930 = vpack.c.b16 %v1450, %v1442
    %v1931 = vpack.c.b16 %v1451, %v1443
    %v1932 = vpack.c.b16 %v1452, %v1444
    %v1933 = vpack.c.b16 %v1453, %v1445
    %v1934 = vpack.c.b16 %v1454, %v1446
    %v1935 = vpack.c.b16 %v1455, %v1447
    %v1936 = vpack.c.b16 %v1456, %v1448
    %v1937 = vpack.c.b16 %v1457, %v1449
    %v1938 = vpack.c.b16 %v1466, %v1458
    %v1939 = vpack.c.b16 %v1467, %v1459
    %v1940 = vpack.c.b16 %v1468, %v1460
    %v1941 = vpack.c.b16 %v1469, %v1461
    %v1942 = vpack.c.b16 %v1470, %v1462
    %v1943 = vpack.c.b16 %v1471, %v1463
    %v1944 = vpack.c.b16 %v1472, %v1464
    %v1945 = vpack.c.b16 %v1473, %v1465
    %v1946 = vpack.c.b16 %v1482, %v1474
    %v1947 = vpack.c.b16 %v1483, %v1475
    %v1948 = vpack.c.b16 %v1484, %v1476
    %v1949 = vpack.c.b16 %v1485, %v1477
    %v1950 = vpack.c.b16 %v1486, %v1478
    %v1951 = vpack.c.b16 %v1487, %v1479
    %v1952 = vpack.c.b16 %v1488, %v1480
    %v1953 = vpack.c.b16 %v1489, %v1481
    %v1954 = vpack.c.b16 %v1498, %v1490
    %v1955 = vpack.c.b16 %v1499, %v1491
    %v1956 = vpack.c.b16 %v1500, %v1492
    %v1957 = vpack.c.b16 %v1501, %v1493
    %v1958 = vpack.c.b16 %v1502, %v1494
    %v1959 = vpack.c.b16 %v1503, %v1495
    %v1960 = vpack.c.b16 %v1504, %v1496
    %v1961 = vpack.c.b16 %v1505, %v1497
    %v1962 = vpack.c.b16 %v1514, %v1506
    %v1963 = vpack.c.b16 %v1515, %v1507
    %v1964 = vpack.c.b16 %v1516, %v1508
    %v1965 = vpack.c.b16 %v1517, %v1509
    %v1966 = vpack.c.b16 %v1518, %v1510
    %v1967 = vpack.c.b16 %v1519, %v1511
    %v1968 = vpack.c.b16 %v1520, %v1512
    %v1969 = vpack.c.b16 %v1521, %v1513
    %v1970 = vpack.c.b16 %v1530, %v1522
    %v1971 = vpack.c.b16 %v1531, %v1523
    %v1972 = vpack.c.b16 %v1532, %v1524
    %v1973 = vpack.c.b16 %v1533, %v1525
    %v1974 = vpack.c.b16 %v1534, %v1526
    %v1975 = vpack.c.b16 %v1535, %v1527
    %v1976 = vpack.c.b16 %v1536, %v1528
    %v1977 = vpack.c.b16 %v1537, %v1529
    %v1978 = vpack.c.b16 %v1546, %v1538
    %v1979 = vpack.c.b16 %v1547, %v1539
    %v1980 = vpack.c.b16 %v1548, %v1540
    %v1981 = vpack.c.b16 %v1549, %v1541
    %v1982 = vpack.c.b16 %v1550, %v1542
    %v1983 = vpack.c.b16 %v1551, %v1543
    %v1984 = vpack.c.b16 %v1552, %v1544
    %v1985 = vpack.c.b16 %v1553, %v1545
    %v1986 = vpack.c.b16 %v1562, %v1554
    %v1987 = vpack.c.b16 %v1563, %v1555
    %v1988 = vpack.c.b16 %v1564, %v1556
    %v1989 = vpack.c.b16 %v1565, %v1557
    %v1990 = vpack.c.b16 %v1566, %v1558
    %v1991 = vpack.c.b16 %v1567, %v1559
    %v1992 = vpack.c.b16 %v1568, %v1560
    %v1993 = vpack.c.b16 %v1569, %v1561
    %v1994 = vpack.c.b16 %v1578, %v1570
    %v1995 = vpack.c.b16 %v1579, %v1571
    %v1996 = vpack.c.b16 %v1580, %v1572
    %v1997 = vpack.c.b16 %v1581, %v1573
    %v1998 = vpack.c.b16 %v1582, %v1574
    %v1999 = vpack.c.b16 %v1583, %v1575
    %v2000 = vpack.c.b16 %v1584, %v1576
    %v2001 = vpack.c.b16 %v1585, %v1577
    %v2002 = vpack.c.b16 %v1594, %v1586
    %v2003 = vpack.c.b16 %v1595, %v1587
    %v2004 = vpack.c.b16 %v1596, %v1588
    %v2005 = vpack.c.b16 %v1597, %v1589
    %v2006 = vpack.c.b16 %v1598, %v1590
    %v2007 = vpack.c.b16 %v1599, %v1591
    %v2008 = vpack.c.b16 %v1600, %v1592
    %v2009 = vpack.c.b16 %v1601, %v1593
    %v2010 = vpack.c.b16 %v1610, %v1602
    %v2011 = vpack.c.b16 %v1611, %v1603
    %v2012 = vpack.c.b16 %v1612, %v1604
    %v2013 = vpack.c.b16 %v1613, %v1605
    %v2014 = vpack.c.b16 %v1614, %v1606
    %v2015 = vpack.c.b16 %v1615, %v1607
    %v2016 = vpack.c.b16 %v1616, %v1608
    %v2017 = vpack.c.b16 %v1617, %v1609
    %v2018 = vpack.c.b16 %v1626, %v1618
    %v2019 = vpack.c.b16 %v1627, %v1619
    %v2020 = vpack.c.b16 %v1628, %v1620
    %v2021 = vpack.c.b16 %v1629, %v1621
    %v2022 = vpack.c.b16 %v1630, %v1622
    %v2023 = vpack.c.b16 %v1631, %v1623
    %v2024 = vpack.c.b16 %v1632, %v1624
    %v2025 = vpack.c.b16 %v1633, %v1625
    %v2026 = vpack.c.b16 %v1642, %v1634
    %v2027 = vpack.c.b16 %v1643, %v1635
    %v2028 = vpack.c.b16 %v1644, %v1636
    %v2029 = vpack.c.b16 %v1645, %v1637
    %v2030 = vpack.c.b16 %v1646, %v1638
    %v2031 = vpack.c.b16 %v1647, %v1639
    %v2032 = vpack.c.b16 %v1648, %v1640
    %v2033 = vpack.c.b16 %v1649, %v1641
    %2418 = vmatpush.bf16.msra.mxu0 %v1706
    %2419 = vmatpush.bf16.msra.mxu0 %v1698
    %2420 = vmatpush.bf16.msra.mxu0 %v1690
    %2421 = vmatpush.bf16.msra.mxu0 %v1682
    %2422 = vmatpush.bf16.msra.mxu0 %v1674
    %2423 = vmatpush.bf16.msra.mxu0 %v1666
    %2424 = vmatpush.bf16.msra.mxu0 %v1658
    %2425 = vmatpush.bf16.msra.mxu0 %v1650
    %2426 = vmatmul.bf16.gmra.mxu0 %v474
    %v2427 = vpop.f32.mrf.mxu0
    %v2428 = vadd.f32 %v422, %v2427
    %v2429 = vpop.f32.mrf.mxu0
    %v2430 = vadd.f32 %v422, %v2429
    %2431 = vmatmul.bf16.gmra.mxu0 %v480
    %v2432 = vpop.f32.mrf.mxu0
    %v2433 = vadd.f32 %v422, %v2432
    %v2434 = vpop.f32.mrf.mxu0
    %v2435 = vadd.f32 %v422, %v2434
    %2436 = vdwg.mxu0
    %2437 = vmatpush.bf16.msra.mxu0 %v1770
    %2438 = vmatpush.bf16.msra.mxu0 %v1762
    %2439 = vmatpush.bf16.msra.mxu0 %v1754
    %2440 = vmatpush.bf16.msra.mxu0 %v1746
    %2441 = vmatpush.bf16.msra.mxu0 %v1738
    %2442 = vmatpush.bf16.msra.mxu0 %v1730
    %2443 = vmatpush.bf16.msra.mxu0 %v1722
    %2444 = vmatpush.bf16.msra.mxu0 %v1714
    %2445 = vmatmul.bf16.gmra.mxu0 %v475
    %v2446 = vpop.f32.mrf.mxu0
    %v2447 = vadd.f32 %v2428, %v2446
    %v2448 = vpop.f32.mrf.mxu0
    %v2449 = vadd.f32 %v2430, %v2448
    %2450 = vmatmul.bf16.gmra.mxu0 %v481
    %v2451 = vpop.f32.mrf.mxu0
    %v2452 = vadd.f32 %v2433, %v2451
    %v2453 = vpop.f32.mrf.mxu0
    %v2454 = vadd.f32 %v2435, %v2453
    %2455 = vdwg.mxu0
    %2456 = vmatpush.bf16.msra.mxu0 %v1834
    %2457 = vmatpush.bf16.msra.mxu0 %v1826
    %2458 = vmatpush.bf16.msra.mxu0 %v1818
    %2459 = vmatpush.bf16.msra.mxu0 %v1810
    %2460 = vmatpush.bf16.msra.mxu0 %v1802
    %2461 = vmatpush.bf16.msra.mxu0 %v1794
    %2462 = vmatpush.bf16.msra.mxu0 %v1786
    %2463 = vmatpush.bf16.msra.mxu0 %v1778
    %2464 = vmatmul.bf16.gmra.mxu0 %v476
    %v2465 = vpop.f32.mrf.mxu0
    %v2466 = vadd.f32 %v2447, %v2465
    %v2467 = vpop.f32.mrf.mxu0
    %v2468 = vadd.f32 %v2449, %v2467
    %2469 = vmatmul.bf16.gmra.mxu0 %v482
    %v2470 = vpop.f32.mrf.mxu0
    %v2471 = vadd.f32 %v2452, %v2470
    %v2472 = vpop.f32.mrf.mxu0
    %v2473 = vadd.f32 %v2454, %v2472
    %2474 = vdwg.mxu0
    %2475 = vmatpush.bf16.msra.mxu0 %v1898
    %2476 = vmatpush.bf16.msra.mxu0 %v1890
    %2477 = vmatpush.bf16.msra.mxu0 %v1882
    %2478 = vmatpush.bf16.msra.mxu0 %v1874
    %2479 = vmatpush.bf16.msra.mxu0 %v1866
    %2480 = vmatpush.bf16.msra.mxu0 %v1858
    %2481 = vmatpush.bf16.msra.mxu0 %v1850
    %2482 = vmatpush.bf16.msra.mxu0 %v1842
    %2483 = vmatmul.bf16.gmra.mxu0 %v477
    %v2484 = vpop.f32.mrf.mxu0
    %v2485 = vadd.f32 %v2466, %v2484
    %v2486 = vpop.f32.mrf.mxu0
    %v2487 = vadd.f32 %v2468, %v2486
    %2488 = vmatmul.bf16.gmra.mxu0 %v483
    %v2489 = vpop.f32.mrf.mxu0
    %v2490 = vadd.f32 %v2471, %v2489
    %v2491 = vpop.f32.mrf.mxu0
    %v2492 = vadd.f32 %v2473, %v2491
    %2493 = vdwg.mxu0
    %2494 = vmatpush.bf16.msra.mxu0 %v1962
    %2495 = vmatpush.bf16.msra.mxu0 %v1954
    %2496 = vmatpush.bf16.msra.mxu0 %v1946
    %2497 = vmatpush.bf16.msra.mxu0 %v1938
    %2498 = vmatpush.bf16.msra.mxu0 %v1930
    %2499 = vmatpush.bf16.msra.mxu0 %v1922
    %2500 = vmatpush.bf16.msra.mxu0 %v1914
    %2501 = vmatpush.bf16.msra.mxu0 %v1906
    %2502 = vmatmul.bf16.gmra.mxu0 %v478
    %v2503 = vpop.f32.mrf.mxu0
    %v2504 = vadd.f32 %v2485, %v2503
    %v2505 = vpop.f32.mrf.mxu0
    %v2506 = vadd.f32 %v2487, %v2505
    %2507 = vmatmul.bf16.gmra.mxu0 %v484
    %v2508 = vpop.f32.mrf.mxu0
    %v2509 = vadd.f32 %v2490, %v2508
    %v2510 = vpop.f32.mrf.mxu0
    %v2511 = vadd.f32 %v2492, %v2510
    %2512 = vdwg.mxu0
    %2513 = vmatpush.bf16.msra.mxu0 %v2026
    %2514 = vmatpush.bf16.msra.mxu0 %v2018
    %2515 = vmatpush.bf16.msra.mxu0 %v2010
    %2516 = vmatpush.bf16.msra.mxu0 %v2002
    %2517 = vmatpush.bf16.msra.mxu0 %v1994
    %2518 = vmatpush.bf16.msra.mxu0 %v1986
    %2519 = vmatpush.bf16.msra.mxu0 %v1978
    %2520 = vmatpush.bf16.msra.mxu0 %v1970
    %2521 = vmatmul.bf16.gmra.mxu0 %v479
    %v2522 = vpop.f32.mrf.mxu0
    %v2523 = vadd.f32 %v2504, %v2522
    %v2524 = vpop.f32.mrf.mxu0
    %v2525 = vadd.f32 %v2506, %v2524
    %2526 = vmatmul.bf16.gmra.mxu0 %v485
    %v2527 = vpop.f32.mrf.mxu0
    %v2528 = vadd.f32 %v2509, %v2527
    %v2529 = vpop.f32.mrf.mxu0
    %v2530 = vadd.f32 %v2511, %v2529
    %2531 = vdwg.mxu0
    %2532 = vmatpush.bf16.msra.mxu0 %v1707
    %2533 = vmatpush.bf16.msra.mxu0 %v1699
    %2534 = vmatpush.bf16.msra.mxu0 %v1691
    %2535 = vmatpush.bf16.msra.mxu0 %v1683
    %2536 = vmatpush.bf16.msra.mxu0 %v1675
    %2537 = vmatpush.bf16.msra.mxu0 %v1667
    %2538 = vmatpush.bf16.msra.mxu0 %v1659
    %2539 = vmatpush.bf16.msra.mxu0 %v1651
    %2540 = vmatmul.bf16.gmra.mxu0 %v474
    %v2541 = vpop.f32.mrf.mxu0
    %v2542 = vadd.f32 %v423, %v2541
    %v2543 = vpop.f32.mrf.mxu0
    %v2544 = vadd.f32 %v423, %v2543
    %2545 = vmatmul.bf16.gmra.mxu0 %v480
    %v2546 = vpop.f32.mrf.mxu0
    %v2547 = vadd.f32 %v423, %v2546
    %v2548 = vpop.f32.mrf.mxu0
    %v2549 = vadd.f32 %v423, %v2548
    %2550 = vdwg.mxu0
    %2551 = vmatpush.bf16.msra.mxu0 %v1771
    %2552 = vmatpush.bf16.msra.mxu0 %v1763
    %2553 = vmatpush.bf16.msra.mxu0 %v1755
    %2554 = vmatpush.bf16.msra.mxu0 %v1747
    %2555 = vmatpush.bf16.msra.mxu0 %v1739
    %2556 = vmatpush.bf16.msra.mxu0 %v1731
    %2557 = vmatpush.bf16.msra.mxu0 %v1723
    %2558 = vmatpush.bf16.msra.mxu0 %v1715
    %2559 = vmatmul.bf16.gmra.mxu0 %v475
    %v2560 = vpop.f32.mrf.mxu0
    %v2561 = vadd.f32 %v2542, %v2560
    %v2562 = vpop.f32.mrf.mxu0
    %v2563 = vadd.f32 %v2544, %v2562
    %2564 = vmatmul.bf16.gmra.mxu0 %v481
    %v2565 = vpop.f32.mrf.mxu0
    %v2566 = vadd.f32 %v2547, %v2565
    %v2567 = vpop.f32.mrf.mxu0
    %v2568 = vadd.f32 %v2549, %v2567
    %2569 = vdwg.mxu0
    %2570 = vmatpush.bf16.msra.mxu0 %v1835
    %2571 = vmatpush.bf16.msra.mxu0 %v1827
    %2572 = vmatpush.bf16.msra.mxu0 %v1819
    %2573 = vmatpush.bf16.msra.mxu0 %v1811
    %2574 = vmatpush.bf16.msra.mxu0 %v1803
    %2575 = vmatpush.bf16.msra.mxu0 %v1795
    %2576 = vmatpush.bf16.msra.mxu0 %v1787
    %2577 = vmatpush.bf16.msra.mxu0 %v1779
    %2578 = vmatmul.bf16.gmra.mxu0 %v476
    %v2579 = vpop.f32.mrf.mxu0
    %v2580 = vadd.f32 %v2561, %v2579
    %v2581 = vpop.f32.mrf.mxu0
    %v2582 = vadd.f32 %v2563, %v2581
    %2583 = vmatmul.bf16.gmra.mxu0 %v482
    %v2584 = vpop.f32.mrf.mxu0
    %v2585 = vadd.f32 %v2566, %v2584
    %v2586 = vpop.f32.mrf.mxu0
    %v2587 = vadd.f32 %v2568, %v2586
    %2588 = vdwg.mxu0
    %2589 = vmatpush.bf16.msra.mxu0 %v1899
    %2590 = vmatpush.bf16.msra.mxu0 %v1891
    %2591 = vmatpush.bf16.msra.mxu0 %v1883
    %2592 = vmatpush.bf16.msra.mxu0 %v1875
    %2593 = vmatpush.bf16.msra.mxu0 %v1867
    %2594 = vmatpush.bf16.msra.mxu0 %v1859
    %2595 = vmatpush.bf16.msra.mxu0 %v1851
    %2596 = vmatpush.bf16.msra.mxu0 %v1843
    %2597 = vmatmul.bf16.gmra.mxu0 %v477
    %v2598 = vpop.f32.mrf.mxu0
    %v2599 = vadd.f32 %v2580, %v2598
    %v2600 = vpop.f32.mrf.mxu0
    %v2601 = vadd.f32 %v2582, %v2600
    %2602 = vmatmul.bf16.gmra.mxu0 %v483
    %v2603 = vpop.f32.mrf.mxu0
    %v2604 = vadd.f32 %v2585, %v2603
    %v2605 = vpop.f32.mrf.mxu0
    %v2606 = vadd.f32 %v2587, %v2605
    %2607 = vdwg.mxu0
    %2608 = vmatpush.bf16.msra.mxu0 %v1963
    %2609 = vmatpush.bf16.msra.mxu0 %v1955
    %2610 = vmatpush.bf16.msra.mxu0 %v1947
    %2611 = vmatpush.bf16.msra.mxu0 %v1939
    %2612 = vmatpush.bf16.msra.mxu0 %v1931
    %2613 = vmatpush.bf16.msra.mxu0 %v1923
    %2614 = vmatpush.bf16.msra.mxu0 %v1915
    %2615 = vmatpush.bf16.msra.mxu0 %v1907
    %2616 = vmatmul.bf16.gmra.mxu0 %v478
    %v2617 = vpop.f32.mrf.mxu0
    %v2618 = vadd.f32 %v2599, %v2617
    %v2619 = vpop.f32.mrf.mxu0
    %v2620 = vadd.f32 %v2601, %v2619
    %2621 = vmatmul.bf16.gmra.mxu0 %v484
    %v2622 = vpop.f32.mrf.mxu0
    %v2623 = vadd.f32 %v2604, %v2622
    %v2624 = vpop.f32.mrf.mxu0
    %v2625 = vadd.f32 %v2606, %v2624
    %2626 = vdwg.mxu0
    %2627 = vmatpush.bf16.msra.mxu0 %v2027
    %2628 = vmatpush.bf16.msra.mxu0 %v2019
    %2629 = vmatpush.bf16.msra.mxu0 %v2011
    %2630 = vmatpush.bf16.msra.mxu0 %v2003
    %2631 = vmatpush.bf16.msra.mxu0 %v1995
    %2632 = vmatpush.bf16.msra.mxu0 %v1987
    %2633 = vmatpush.bf16.msra.mxu0 %v1979
    %2634 = vmatpush.bf16.msra.mxu0 %v1971
    %2635 = vmatmul.bf16.gmra.mxu0 %v479
    %v2636 = vpop.f32.mrf.mxu0
    %v2637 = vadd.f32 %v2618, %v2636
    %v2638 = vpop.f32.mrf.mxu0
    %v2639 = vadd.f32 %v2620, %v2638
    %2640 = vmatmul.bf16.gmra.mxu0 %v485
    %v2641 = vpop.f32.mrf.mxu0
    %v2642 = vadd.f32 %v2623, %v2641
    %v2643 = vpop.f32.mrf.mxu0
    %v2644 = vadd.f32 %v2625, %v2643
    %2645 = vdwg.mxu0
    %2646 = vmatpush.bf16.msra.mxu0 %v1708
    %2647 = vmatpush.bf16.msra.mxu0 %v1700
    %2648 = vmatpush.bf16.msra.mxu0 %v1692
    %2649 = vmatpush.bf16.msra.mxu0 %v1684
    %2650 = vmatpush.bf16.msra.mxu0 %v1676
    %2651 = vmatpush.bf16.msra.mxu0 %v1668
    %2652 = vmatpush.bf16.msra.mxu0 %v1660
    %2653 = vmatpush.bf16.msra.mxu0 %v1652
    %2654 = vmatmul.bf16.gmra.mxu0 %v474
    %v2655 = vpop.f32.mrf.mxu0
    %v2656 = vadd.f32 %v424, %v2655
    %v2657 = vpop.f32.mrf.mxu0
    %v2658 = vadd.f32 %v424, %v2657
    %2659 = vmatmul.bf16.gmra.mxu0 %v480
    %v2660 = vpop.f32.mrf.mxu0
    %v2661 = vadd.f32 %v424, %v2660
    %v2662 = vpop.f32.mrf.mxu0
    %v2663 = vadd.f32 %v424, %v2662
    %2664 = vdwg.mxu0
    %2665 = vmatpush.bf16.msra.mxu0 %v1772
    %2666 = vmatpush.bf16.msra.mxu0 %v1764
    %2667 = vmatpush.bf16.msra.mxu0 %v1756
    %2668 = vmatpush.bf16.msra.mxu0 %v1748
    %2669 = vmatpush.bf16.msra.mxu0 %v1740
    %2670 = vmatpush.bf16.msra.mxu0 %v1732
    %2671 = vmatpush.bf16.msra.mxu0 %v1724
    %2672 = vmatpush.bf16.msra.mxu0 %v1716
    %2673 = vmatmul.bf16.gmra.mxu0 %v475
    %v2674 = vpop.f32.mrf.mxu0
    %v2675 = vadd.f32 %v2656, %v2674
    %v2676 = vpop.f32.mrf.mxu0
    %v2677 = vadd.f32 %v2658, %v2676
    %2678 = vmatmul.bf16.gmra.mxu0 %v481
    %v2679 = vpop.f32.mrf.mxu0
    %v2680 = vadd.f32 %v2661, %v2679
    %v2681 = vpop.f32.mrf.mxu0
    %v2682 = vadd.f32 %v2663, %v2681
    %2683 = vdwg.mxu0
    %2684 = vmatpush.bf16.msra.mxu0 %v1836
    %2685 = vmatpush.bf16.msra.mxu0 %v1828
    %2686 = vmatpush.bf16.msra.mxu0 %v1820
    %2687 = vmatpush.bf16.msra.mxu0 %v1812
    %2688 = vmatpush.bf16.msra.mxu0 %v1804
    %2689 = vmatpush.bf16.msra.mxu0 %v1796
    %2690 = vmatpush.bf16.msra.mxu0 %v1788
    %2691 = vmatpush.bf16.msra.mxu0 %v1780
    %2692 = vmatmul.bf16.gmra.mxu0 %v476
    %v2693 = vpop.f32.mrf.mxu0
    %v2694 = vadd.f32 %v2675, %v2693
    %v2695 = vpop.f32.mrf.mxu0
    %v2696 = vadd.f32 %v2677, %v2695
    %2697 = vmatmul.bf16.gmra.mxu0 %v482
    %v2698 = vpop.f32.mrf.mxu0
    %v2699 = vadd.f32 %v2680, %v2698
    %v2700 = vpop.f32.mrf.mxu0
    %v2701 = vadd.f32 %v2682, %v2700
    %2702 = vdwg.mxu0
    %2703 = vmatpush.bf16.msra.mxu0 %v1900
    %2704 = vmatpush.bf16.msra.mxu0 %v1892
    %2705 = vmatpush.bf16.msra.mxu0 %v1884
    %2706 = vmatpush.bf16.msra.mxu0 %v1876
    %2707 = vmatpush.bf16.msra.mxu0 %v1868
    %2708 = vmatpush.bf16.msra.mxu0 %v1860
    %2709 = vmatpush.bf16.msra.mxu0 %v1852
    %2710 = vmatpush.bf16.msra.mxu0 %v1844
    %2711 = vmatmul.bf16.gmra.mxu0 %v477
    %v2712 = vpop.f32.mrf.mxu0
    %v2713 = vadd.f32 %v2694, %v2712
    %v2714 = vpop.f32.mrf.mxu0
    %v2715 = vadd.f32 %v2696, %v2714
    %2716 = vmatmul.bf16.gmra.mxu0 %v483
    %v2717 = vpop.f32.mrf.mxu0
    %v2718 = vadd.f32 %v2699, %v2717
    %v2719 = vpop.f32.mrf.mxu0
    %v2720 = vadd.f32 %v2701, %v2719
    %2721 = vdwg.mxu0
    %2722 = vmatpush.bf16.msra.mxu0 %v1964
    %2723 = vmatpush.bf16.msra.mxu0 %v1956
    %2724 = vmatpush.bf16.msra.mxu0 %v1948
    %2725 = vmatpush.bf16.msra.mxu0 %v1940
    %2726 = vmatpush.bf16.msra.mxu0 %v1932
    %2727 = vmatpush.bf16.msra.mxu0 %v1924
    %2728 = vmatpush.bf16.msra.mxu0 %v1916
    %2729 = vmatpush.bf16.msra.mxu0 %v1908
    %2730 = vmatmul.bf16.gmra.mxu0 %v478
    %v2731 = vpop.f32.mrf.mxu0
    %v2732 = vadd.f32 %v2713, %v2731
    %v2733 = vpop.f32.mrf.mxu0
    %v2734 = vadd.f32 %v2715, %v2733
    %2735 = vmatmul.bf16.gmra.mxu0 %v484
    %v2736 = vpop.f32.mrf.mxu0
    %v2737 = vadd.f32 %v2718, %v2736
    %v2738 = vpop.f32.mrf.mxu0
    %v2739 = vadd.f32 %v2720, %v2738
    %2740 = vdwg.mxu0
    %2741 = vmatpush.bf16.msra.mxu0 %v2028
    %2742 = vmatpush.bf16.msra.mxu0 %v2020
    %2743 = vmatpush.bf16.msra.mxu0 %v2012
    %2744 = vmatpush.bf16.msra.mxu0 %v2004
    %2745 = vmatpush.bf16.msra.mxu0 %v1996
    %2746 = vmatpush.bf16.msra.mxu0 %v1988
    %2747 = vmatpush.bf16.msra.mxu0 %v1980
    %2748 = vmatpush.bf16.msra.mxu0 %v1972
    %2749 = vmatmul.bf16.gmra.mxu0 %v479
    %v2750 = vpop.f32.mrf.mxu0
    %v2751 = vadd.f32 %v2732, %v2750
    %v2752 = vpop.f32.mrf.mxu0
    %v2753 = vadd.f32 %v2734, %v2752
    %2754 = vmatmul.bf16.gmra.mxu0 %v485
    %v2755 = vpop.f32.mrf.mxu0
    %v2756 = vadd.f32 %v2737, %v2755
    %v2757 = vpop.f32.mrf.mxu0
    %v2758 = vadd.f32 %v2739, %v2757
    %2759 = vdwg.mxu0
    %2760 = vmatpush.bf16.msra.mxu0 %v1709
    %2761 = vmatpush.bf16.msra.mxu0 %v1701
    %2762 = vmatpush.bf16.msra.mxu0 %v1693
    %2763 = vmatpush.bf16.msra.mxu0 %v1685
    %2764 = vmatpush.bf16.msra.mxu0 %v1677
    %2765 = vmatpush.bf16.msra.mxu0 %v1669
    %2766 = vmatpush.bf16.msra.mxu0 %v1661
    %2767 = vmatpush.bf16.msra.mxu0 %v1653
    %2768 = vmatmul.bf16.gmra.mxu0 %v474
    %v2769 = vpop.f32.mrf.mxu0
    %v2770 = vadd.f32 %v425, %v2769
    %v2771 = vpop.f32.mrf.mxu0
    %v2772 = vadd.f32 %v425, %v2771
    %2773 = vmatmul.bf16.gmra.mxu0 %v480
    %v2774 = vpop.f32.mrf.mxu0
    %v2775 = vadd.f32 %v425, %v2774
    %v2776 = vpop.f32.mrf.mxu0
    %v2777 = vadd.f32 %v425, %v2776
    %2778 = vdwg.mxu0
    %2779 = vmatpush.bf16.msra.mxu0 %v1773
    %2780 = vmatpush.bf16.msra.mxu0 %v1765
    %2781 = vmatpush.bf16.msra.mxu0 %v1757
    %2782 = vmatpush.bf16.msra.mxu0 %v1749
    %2783 = vmatpush.bf16.msra.mxu0 %v1741
    %2784 = vmatpush.bf16.msra.mxu0 %v1733
    %2785 = vmatpush.bf16.msra.mxu0 %v1725
    %2786 = vmatpush.bf16.msra.mxu0 %v1717
    %2787 = vmatmul.bf16.gmra.mxu0 %v475
    %v2788 = vpop.f32.mrf.mxu0
    %v2789 = vadd.f32 %v2770, %v2788
    %v2790 = vpop.f32.mrf.mxu0
    %v2791 = vadd.f32 %v2772, %v2790
    %2792 = vmatmul.bf16.gmra.mxu0 %v481
    %v2793 = vpop.f32.mrf.mxu0
    %v2794 = vadd.f32 %v2775, %v2793
    %v2795 = vpop.f32.mrf.mxu0
    %v2796 = vadd.f32 %v2777, %v2795
    %2797 = vdwg.mxu0
    %2798 = vmatpush.bf16.msra.mxu0 %v1837
    %2799 = vmatpush.bf16.msra.mxu0 %v1829
    %2800 = vmatpush.bf16.msra.mxu0 %v1821
    %2801 = vmatpush.bf16.msra.mxu0 %v1813
    %2802 = vmatpush.bf16.msra.mxu0 %v1805
    %2803 = vmatpush.bf16.msra.mxu0 %v1797
    %2804 = vmatpush.bf16.msra.mxu0 %v1789
    %2805 = vmatpush.bf16.msra.mxu0 %v1781
    %2806 = vmatmul.bf16.gmra.mxu0 %v476
    %v2807 = vpop.f32.mrf.mxu0
    %v2808 = vadd.f32 %v2789, %v2807
    %v2809 = vpop.f32.mrf.mxu0
    %v2810 = vadd.f32 %v2791, %v2809
    %2811 = vmatmul.bf16.gmra.mxu0 %v482
    %v2812 = vpop.f32.mrf.mxu0
    %v2813 = vadd.f32 %v2794, %v2812
    %v2814 = vpop.f32.mrf.mxu0
    %v2815 = vadd.f32 %v2796, %v2814
    %2816 = vdwg.mxu0
    %2817 = vmatpush.bf16.msra.mxu0 %v1901
    %2818 = vmatpush.bf16.msra.mxu0 %v1893
    %2819 = vmatpush.bf16.msra.mxu0 %v1885
    %2820 = vmatpush.bf16.msra.mxu0 %v1877
    %2821 = vmatpush.bf16.msra.mxu0 %v1869
    %2822 = vmatpush.bf16.msra.mxu0 %v1861
    %2823 = vmatpush.bf16.msra.mxu0 %v1853
    %2824 = vmatpush.bf16.msra.mxu0 %v1845
    %2825 = vmatmul.bf16.gmra.mxu0 %v477
    %v2826 = vpop.f32.mrf.mxu0
    %v2827 = vadd.f32 %v2808, %v2826
    %v2828 = vpop.f32.mrf.mxu0
    %v2829 = vadd.f32 %v2810, %v2828
    %2830 = vmatmul.bf16.gmra.mxu0 %v483
    %v2831 = vpop.f32.mrf.mxu0
    %v2832 = vadd.f32 %v2813, %v2831
    %v2833 = vpop.f32.mrf.mxu0
    %v2834 = vadd.f32 %v2815, %v2833
    %2835 = vdwg.mxu0
    %2836 = vmatpush.bf16.msra.mxu0 %v1965
    %2837 = vmatpush.bf16.msra.mxu0 %v1957
    %2838 = vmatpush.bf16.msra.mxu0 %v1949
    %2839 = vmatpush.bf16.msra.mxu0 %v1941
    %2840 = vmatpush.bf16.msra.mxu0 %v1933
    %2841 = vmatpush.bf16.msra.mxu0 %v1925
    %2842 = vmatpush.bf16.msra.mxu0 %v1917
    %2843 = vmatpush.bf16.msra.mxu0 %v1909
    %2844 = vmatmul.bf16.gmra.mxu0 %v478
    %v2845 = vpop.f32.mrf.mxu0
    %v2846 = vadd.f32 %v2827, %v2845
    %v2847 = vpop.f32.mrf.mxu0
    %v2848 = vadd.f32 %v2829, %v2847
    %2849 = vmatmul.bf16.gmra.mxu0 %v484
    %v2850 = vpop.f32.mrf.mxu0
    %v2851 = vadd.f32 %v2832, %v2850
    %v2852 = vpop.f32.mrf.mxu0
    %v2853 = vadd.f32 %v2834, %v2852
    %2854 = vdwg.mxu0
    %2855 = vmatpush.bf16.msra.mxu0 %v2029
    %2856 = vmatpush.bf16.msra.mxu0 %v2021
    %2857 = vmatpush.bf16.msra.mxu0 %v2013
    %2858 = vmatpush.bf16.msra.mxu0 %v2005
    %2859 = vmatpush.bf16.msra.mxu0 %v1997
    %2860 = vmatpush.bf16.msra.mxu0 %v1989
    %2861 = vmatpush.bf16.msra.mxu0 %v1981
    %2862 = vmatpush.bf16.msra.mxu0 %v1973
    %2863 = vmatmul.bf16.gmra.mxu0 %v479
    %v2864 = vpop.f32.mrf.mxu0
    %v2865 = vadd.f32 %v2846, %v2864
    %v2866 = vpop.f32.mrf.mxu0
    %v2867 = vadd.f32 %v2848, %v2866
    %2868 = vmatmul.bf16.gmra.mxu0 %v485
    %v2869 = vpop.f32.mrf.mxu0
    %v2870 = vadd.f32 %v2851, %v2869
    %v2871 = vpop.f32.mrf.mxu0
    %v2872 = vadd.f32 %v2853, %v2871
    %2873 = vdwg.mxu0
    %2874 = vmatpush.bf16.msra.mxu0 %v1710
    %2875 = vmatpush.bf16.msra.mxu0 %v1702
    %2876 = vmatpush.bf16.msra.mxu0 %v1694
    %2877 = vmatpush.bf16.msra.mxu0 %v1686
    %2878 = vmatpush.bf16.msra.mxu0 %v1678
    %2879 = vmatpush.bf16.msra.mxu0 %v1670
    %2880 = vmatpush.bf16.msra.mxu0 %v1662
    %2881 = vmatpush.bf16.msra.mxu0 %v1654
    %2882 = vmatmul.bf16.gmra.mxu0 %v474
    %v2883 = vpop.f32.mrf.mxu0
    %v2884 = vadd.f32 %v426, %v2883
    %v2885 = vpop.f32.mrf.mxu0
    %v2886 = vadd.f32 %v426, %v2885
    %2887 = vmatmul.bf16.gmra.mxu0 %v480
    %v2888 = vpop.f32.mrf.mxu0
    %v2889 = vadd.f32 %v426, %v2888
    %v2890 = vpop.f32.mrf.mxu0
    %v2891 = vadd.f32 %v426, %v2890
    %2892 = vdwg.mxu0
    %2893 = vmatpush.bf16.msra.mxu0 %v1774
    %2894 = vmatpush.bf16.msra.mxu0 %v1766
    %2895 = vmatpush.bf16.msra.mxu0 %v1758
    %2896 = vmatpush.bf16.msra.mxu0 %v1750
    %2897 = vmatpush.bf16.msra.mxu0 %v1742
    %2898 = vmatpush.bf16.msra.mxu0 %v1734
    %2899 = vmatpush.bf16.msra.mxu0 %v1726
    %2900 = vmatpush.bf16.msra.mxu0 %v1718
    %2901 = vmatmul.bf16.gmra.mxu0 %v475
    %v2902 = vpop.f32.mrf.mxu0
    %v2903 = vadd.f32 %v2884, %v2902
    %v2904 = vpop.f32.mrf.mxu0
    %v2905 = vadd.f32 %v2886, %v2904
    %2906 = vmatmul.bf16.gmra.mxu0 %v481
    %v2907 = vpop.f32.mrf.mxu0
    %v2908 = vadd.f32 %v2889, %v2907
    %v2909 = vpop.f32.mrf.mxu0
    %v2910 = vadd.f32 %v2891, %v2909
    %2911 = vdwg.mxu0
    %2912 = vmatpush.bf16.msra.mxu0 %v1838
    %2913 = vmatpush.bf16.msra.mxu0 %v1830
    %2914 = vmatpush.bf16.msra.mxu0 %v1822
    %2915 = vmatpush.bf16.msra.mxu0 %v1814
    %2916 = vmatpush.bf16.msra.mxu0 %v1806
    %2917 = vmatpush.bf16.msra.mxu0 %v1798
    %2918 = vmatpush.bf16.msra.mxu0 %v1790
    %2919 = vmatpush.bf16.msra.mxu0 %v1782
    %2920 = vmatmul.bf16.gmra.mxu0 %v476
    %v2921 = vpop.f32.mrf.mxu0
    %v2922 = vadd.f32 %v2903, %v2921
    %v2923 = vpop.f32.mrf.mxu0
    %v2924 = vadd.f32 %v2905, %v2923
    %2925 = vmatmul.bf16.gmra.mxu0 %v482
    %v2926 = vpop.f32.mrf.mxu0
    %v2927 = vadd.f32 %v2908, %v2926
    %v2928 = vpop.f32.mrf.mxu0
    %v2929 = vadd.f32 %v2910, %v2928
    %2930 = vdwg.mxu0
    %2931 = vmatpush.bf16.msra.mxu0 %v1902
    %2932 = vmatpush.bf16.msra.mxu0 %v1894
    %2933 = vmatpush.bf16.msra.mxu0 %v1886
    %2934 = vmatpush.bf16.msra.mxu0 %v1878
    %2935 = vmatpush.bf16.msra.mxu0 %v1870
    %2936 = vmatpush.bf16.msra.mxu0 %v1862
    %2937 = vmatpush.bf16.msra.mxu0 %v1854
    %2938 = vmatpush.bf16.msra.mxu0 %v1846
    %2939 = vmatmul.bf16.gmra.mxu0 %v477
    %v2940 = vpop.f32.mrf.mxu0
    %v2941 = vadd.f32 %v2922, %v2940
    %v2942 = vpop.f32.mrf.mxu0
    %v2943 = vadd.f32 %v2924, %v2942
    %2944 = vmatmul.bf16.gmra.mxu0 %v483
    %v2945 = vpop.f32.mrf.mxu0
    %v2946 = vadd.f32 %v2927, %v2945
    %v2947 = vpop.f32.mrf.mxu0
    %v2948 = vadd.f32 %v2929, %v2947
    %2949 = vdwg.mxu0
    %2950 = vmatpush.bf16.msra.mxu0 %v1966
    %2951 = vmatpush.bf16.msra.mxu0 %v1958
    %2952 = vmatpush.bf16.msra.mxu0 %v1950
    %2953 = vmatpush.bf16.msra.mxu0 %v1942
    %2954 = vmatpush.bf16.msra.mxu0 %v1934
    %2955 = vmatpush.bf16.msra.mxu0 %v1926
    %2956 = vmatpush.bf16.msra.mxu0 %v1918
    %2957 = vmatpush.bf16.msra.mxu0 %v1910
    %2958 = vmatmul.bf16.gmra.mxu0 %v478
    %v2959 = vpop.f32.mrf.mxu0
    %v2960 = vadd.f32 %v2941, %v2959
    %v2961 = vpop.f32.mrf.mxu0
    %v2962 = vadd.f32 %v2943, %v2961
    %2963 = vmatmul.bf16.gmra.mxu0 %v484
    %v2964 = vpop.f32.mrf.mxu0
    %v2965 = vadd.f32 %v2946, %v2964
    %v2966 = vpop.f32.mrf.mxu0
    %v2967 = vadd.f32 %v2948, %v2966
    %2968 = vdwg.mxu0
    %2969 = vmatpush.bf16.msra.mxu0 %v2030
    %2970 = vmatpush.bf16.msra.mxu0 %v2022
    %2971 = vmatpush.bf16.msra.mxu0 %v2014
    %2972 = vmatpush.bf16.msra.mxu0 %v2006
    %2973 = vmatpush.bf16.msra.mxu0 %v1998
    %2974 = vmatpush.bf16.msra.mxu0 %v1990
    %2975 = vmatpush.bf16.msra.mxu0 %v1982
    %2976 = vmatpush.bf16.msra.mxu0 %v1974
    %2977 = vmatmul.bf16.gmra.mxu0 %v479
    %v2978 = vpop.f32.mrf.mxu0
    %v2979 = vadd.f32 %v2960, %v2978
    %v2980 = vpop.f32.mrf.mxu0
    %v2981 = vadd.f32 %v2962, %v2980
    %2982 = vmatmul.bf16.gmra.mxu0 %v485
    %v2983 = vpop.f32.mrf.mxu0
    %v2984 = vadd.f32 %v2965, %v2983
    %v2985 = vpop.f32.mrf.mxu0
    %v2986 = vadd.f32 %v2967, %v2985
    %2987 = vdwg.mxu0
    %2988 = vmatpush.bf16.msra.mxu0 %v1711
    %2989 = vmatpush.bf16.msra.mxu0 %v1703
    %2990 = vmatpush.bf16.msra.mxu0 %v1695
    %2991 = vmatpush.bf16.msra.mxu0 %v1687
    %2992 = vmatpush.bf16.msra.mxu0 %v1679
    %2993 = vmatpush.bf16.msra.mxu0 %v1671
    %2994 = vmatpush.bf16.msra.mxu0 %v1663
    %2995 = vmatpush.bf16.msra.mxu0 %v1655
    %2996 = vmatmul.bf16.gmra.mxu0 %v474
    %v2997 = vpop.f32.mrf.mxu0
    %v2998 = vadd.f32 %v427, %v2997
    %v2999 = vpop.f32.mrf.mxu0
    %v3000 = vadd.f32 %v427, %v2999
    %3001 = vmatmul.bf16.gmra.mxu0 %v480
    %v3002 = vpop.f32.mrf.mxu0
    %v3003 = vadd.f32 %v427, %v3002
    %v3004 = vpop.f32.mrf.mxu0
    %v3005 = vadd.f32 %v427, %v3004
    %3006 = vdwg.mxu0
    %3007 = vmatpush.bf16.msra.mxu0 %v1775
    %3008 = vmatpush.bf16.msra.mxu0 %v1767
    %3009 = vmatpush.bf16.msra.mxu0 %v1759
    %3010 = vmatpush.bf16.msra.mxu0 %v1751
    %3011 = vmatpush.bf16.msra.mxu0 %v1743
    %3012 = vmatpush.bf16.msra.mxu0 %v1735
    %3013 = vmatpush.bf16.msra.mxu0 %v1727
    %3014 = vmatpush.bf16.msra.mxu0 %v1719
    %3015 = vmatmul.bf16.gmra.mxu0 %v475
    %v3016 = vpop.f32.mrf.mxu0
    %v3017 = vadd.f32 %v2998, %v3016
    %v3018 = vpop.f32.mrf.mxu0
    %v3019 = vadd.f32 %v3000, %v3018
    %3020 = vmatmul.bf16.gmra.mxu0 %v481
    %v3021 = vpop.f32.mrf.mxu0
    %v3022 = vadd.f32 %v3003, %v3021
    %v3023 = vpop.f32.mrf.mxu0
    %v3024 = vadd.f32 %v3005, %v3023
    %3025 = vdwg.mxu0
    %3026 = vmatpush.bf16.msra.mxu0 %v1839
    %3027 = vmatpush.bf16.msra.mxu0 %v1831
    %3028 = vmatpush.bf16.msra.mxu0 %v1823
    %3029 = vmatpush.bf16.msra.mxu0 %v1815
    %3030 = vmatpush.bf16.msra.mxu0 %v1807
    %3031 = vmatpush.bf16.msra.mxu0 %v1799
    %3032 = vmatpush.bf16.msra.mxu0 %v1791
    %3033 = vmatpush.bf16.msra.mxu0 %v1783
    %3034 = vmatmul.bf16.gmra.mxu0 %v476
    %v3035 = vpop.f32.mrf.mxu0
    %v3036 = vadd.f32 %v3017, %v3035
    %v3037 = vpop.f32.mrf.mxu0
    %v3038 = vadd.f32 %v3019, %v3037
    %3039 = vmatmul.bf16.gmra.mxu0 %v482
    %v3040 = vpop.f32.mrf.mxu0
    %v3041 = vadd.f32 %v3022, %v3040
    %v3042 = vpop.f32.mrf.mxu0
    %v3043 = vadd.f32 %v3024, %v3042
    %3044 = vdwg.mxu0
    %3045 = vmatpush.bf16.msra.mxu0 %v1903
    %3046 = vmatpush.bf16.msra.mxu0 %v1895
    %3047 = vmatpush.bf16.msra.mxu0 %v1887
    %3048 = vmatpush.bf16.msra.mxu0 %v1879
    %3049 = vmatpush.bf16.msra.mxu0 %v1871
    %3050 = vmatpush.bf16.msra.mxu0 %v1863
    %3051 = vmatpush.bf16.msra.mxu0 %v1855
    %3052 = vmatpush.bf16.msra.mxu0 %v1847
    %3053 = vmatmul.bf16.gmra.mxu0 %v477
    %v3054 = vpop.f32.mrf.mxu0
    %v3055 = vadd.f32 %v3036, %v3054
    %v3056 = vpop.f32.mrf.mxu0
    %v3057 = vadd.f32 %v3038, %v3056
    %3058 = vmatmul.bf16.gmra.mxu0 %v483
    %v3059 = vpop.f32.mrf.mxu0
    %v3060 = vadd.f32 %v3041, %v3059
    %v3061 = vpop.f32.mrf.mxu0
    %v3062 = vadd.f32 %v3043, %v3061
    %3063 = vdwg.mxu0
    %3064 = vmatpush.bf16.msra.mxu0 %v1967
    %3065 = vmatpush.bf16.msra.mxu0 %v1959
    %3066 = vmatpush.bf16.msra.mxu0 %v1951
    %3067 = vmatpush.bf16.msra.mxu0 %v1943
    %3068 = vmatpush.bf16.msra.mxu0 %v1935
    %3069 = vmatpush.bf16.msra.mxu0 %v1927
    %3070 = vmatpush.bf16.msra.mxu0 %v1919
    %3071 = vmatpush.bf16.msra.mxu0 %v1911
    %3072 = vmatmul.bf16.gmra.mxu0 %v478
    %v3073 = vpop.f32.mrf.mxu0
    %v3074 = vadd.f32 %v3055, %v3073
    %v3075 = vpop.f32.mrf.mxu0
    %v3076 = vadd.f32 %v3057, %v3075
    %3077 = vmatmul.bf16.gmra.mxu0 %v484
    %v3078 = vpop.f32.mrf.mxu0
    %v3079 = vadd.f32 %v3060, %v3078
    %v3080 = vpop.f32.mrf.mxu0
    %v3081 = vadd.f32 %v3062, %v3080
    %3082 = vdwg.mxu0
    %3083 = vmatpush.bf16.msra.mxu0 %v2031
    %3084 = vmatpush.bf16.msra.mxu0 %v2023
    %3085 = vmatpush.bf16.msra.mxu0 %v2015
    %3086 = vmatpush.bf16.msra.mxu0 %v2007
    %3087 = vmatpush.bf16.msra.mxu0 %v1999
    %3088 = vmatpush.bf16.msra.mxu0 %v1991
    %3089 = vmatpush.bf16.msra.mxu0 %v1983
    %3090 = vmatpush.bf16.msra.mxu0 %v1975
    %3091 = vmatmul.bf16.gmra.mxu0 %v479
    %v3092 = vpop.f32.mrf.mxu0
    %v3093 = vadd.f32 %v3074, %v3092
    %v3094 = vpop.f32.mrf.mxu0
    %v3095 = vadd.f32 %v3076, %v3094
    %3096 = vmatmul.bf16.gmra.mxu0 %v485
    %v3097 = vpop.f32.mrf.mxu0
    %v3098 = vadd.f32 %v3079, %v3097
    %v3099 = vpop.f32.mrf.mxu0
    %v3100 = vadd.f32 %v3081, %v3099
    %3101 = vdwg.mxu0
    %3102 = vmatpush.bf16.msra.mxu0 %v1712
    %3103 = vmatpush.bf16.msra.mxu0 %v1704
    %3104 = vmatpush.bf16.msra.mxu0 %v1696
    %3105 = vmatpush.bf16.msra.mxu0 %v1688
    %3106 = vmatpush.bf16.msra.mxu0 %v1680
    %3107 = vmatpush.bf16.msra.mxu0 %v1672
    %3108 = vmatpush.bf16.msra.mxu0 %v1664
    %3109 = vmatpush.bf16.msra.mxu0 %v1656
    %3110 = vmatmul.bf16.gmra.mxu0 %v474
    %v3111 = vpop.f32.mrf.mxu0
    %v3112 = vadd.f32 %v428, %v3111
    %v3113 = vpop.f32.mrf.mxu0
    %v3114 = vadd.f32 %v428, %v3113
    %3115 = vmatmul.bf16.gmra.mxu0 %v480
    %v3116 = vpop.f32.mrf.mxu0
    %v3117 = vadd.f32 %v428, %v3116
    %v3118 = vpop.f32.mrf.mxu0
    %v3119 = vadd.f32 %v428, %v3118
    %3120 = vdwg.mxu0
    %3121 = vmatpush.bf16.msra.mxu0 %v1776
    %3122 = vmatpush.bf16.msra.mxu0 %v1768
    %3123 = vmatpush.bf16.msra.mxu0 %v1760
    %3124 = vmatpush.bf16.msra.mxu0 %v1752
    %3125 = vmatpush.bf16.msra.mxu0 %v1744
    %3126 = vmatpush.bf16.msra.mxu0 %v1736
    %3127 = vmatpush.bf16.msra.mxu0 %v1728
    %3128 = vmatpush.bf16.msra.mxu0 %v1720
    %3129 = vmatmul.bf16.gmra.mxu0 %v475
    %v3130 = vpop.f32.mrf.mxu0
    %v3131 = vadd.f32 %v3112, %v3130
    %v3132 = vpop.f32.mrf.mxu0
    %v3133 = vadd.f32 %v3114, %v3132
    %3134 = vmatmul.bf16.gmra.mxu0 %v481
    %v3135 = vpop.f32.mrf.mxu0
    %v3136 = vadd.f32 %v3117, %v3135
    %v3137 = vpop.f32.mrf.mxu0
    %v3138 = vadd.f32 %v3119, %v3137
    %3139 = vdwg.mxu0
    %3140 = vmatpush.bf16.msra.mxu0 %v1840
    %3141 = vmatpush.bf16.msra.mxu0 %v1832
    %3142 = vmatpush.bf16.msra.mxu0 %v1824
    %3143 = vmatpush.bf16.msra.mxu0 %v1816
    %3144 = vmatpush.bf16.msra.mxu0 %v1808
    %3145 = vmatpush.bf16.msra.mxu0 %v1800
    %3146 = vmatpush.bf16.msra.mxu0 %v1792
    %3147 = vmatpush.bf16.msra.mxu0 %v1784
    %3148 = vmatmul.bf16.gmra.mxu0 %v476
    %v3149 = vpop.f32.mrf.mxu0
    %v3150 = vadd.f32 %v3131, %v3149
    %v3151 = vpop.f32.mrf.mxu0
    %v3152 = vadd.f32 %v3133, %v3151
    %3153 = vmatmul.bf16.gmra.mxu0 %v482
    %v3154 = vpop.f32.mrf.mxu0
    %v3155 = vadd.f32 %v3136, %v3154
    %v3156 = vpop.f32.mrf.mxu0
    %v3157 = vadd.f32 %v3138, %v3156
    %3158 = vdwg.mxu0
    %3159 = vmatpush.bf16.msra.mxu0 %v1904
    %3160 = vmatpush.bf16.msra.mxu0 %v1896
    %3161 = vmatpush.bf16.msra.mxu0 %v1888
    %3162 = vmatpush.bf16.msra.mxu0 %v1880
    %3163 = vmatpush.bf16.msra.mxu0 %v1872
    %3164 = vmatpush.bf16.msra.mxu0 %v1864
    %3165 = vmatpush.bf16.msra.mxu0 %v1856
    %3166 = vmatpush.bf16.msra.mxu0 %v1848
    %3167 = vmatmul.bf16.gmra.mxu0 %v477
    %v3168 = vpop.f32.mrf.mxu0
    %v3169 = vadd.f32 %v3150, %v3168
    %v3170 = vpop.f32.mrf.mxu0
    %v3171 = vadd.f32 %v3152, %v3170
    %3172 = vmatmul.bf16.gmra.mxu0 %v483
    %v3173 = vpop.f32.mrf.mxu0
    %v3174 = vadd.f32 %v3155, %v3173
    %v3175 = vpop.f32.mrf.mxu0
    %v3176 = vadd.f32 %v3157, %v3175
    %3177 = vdwg.mxu0
    %3178 = vmatpush.bf16.msra.mxu0 %v1968
    %3179 = vmatpush.bf16.msra.mxu0 %v1960
    %3180 = vmatpush.bf16.msra.mxu0 %v1952
    %3181 = vmatpush.bf16.msra.mxu0 %v1944
    %3182 = vmatpush.bf16.msra.mxu0 %v1936
    %3183 = vmatpush.bf16.msra.mxu0 %v1928
    %3184 = vmatpush.bf16.msra.mxu0 %v1920
    %3185 = vmatpush.bf16.msra.mxu0 %v1912
    %3186 = vmatmul.bf16.gmra.mxu0 %v478
    %v3187 = vpop.f32.mrf.mxu0
    %v3188 = vadd.f32 %v3169, %v3187
    %v3189 = vpop.f32.mrf.mxu0
    %v3190 = vadd.f32 %v3171, %v3189
    %3191 = vmatmul.bf16.gmra.mxu0 %v484
    %v3192 = vpop.f32.mrf.mxu0
    %v3193 = vadd.f32 %v3174, %v3192
    %v3194 = vpop.f32.mrf.mxu0
    %v3195 = vadd.f32 %v3176, %v3194
    %3196 = vdwg.mxu0
    %3197 = vmatpush.bf16.msra.mxu0 %v2032
    %3198 = vmatpush.bf16.msra.mxu0 %v2024
    %3199 = vmatpush.bf16.msra.mxu0 %v2016
    %3200 = vmatpush.bf16.msra.mxu0 %v2008
    %3201 = vmatpush.bf16.msra.mxu0 %v2000
    %3202 = vmatpush.bf16.msra.mxu0 %v1992
    %3203 = vmatpush.bf16.msra.mxu0 %v1984
    %3204 = vmatpush.bf16.msra.mxu0 %v1976
    %3205 = vmatmul.bf16.gmra.mxu0 %v479
    %v3206 = vpop.f32.mrf.mxu0
    %v3207 = vadd.f32 %v3188, %v3206
    %v3208 = vpop.f32.mrf.mxu0
    %v3209 = vadd.f32 %v3190, %v3208
    %3210 = vmatmul.bf16.gmra.mxu0 %v485
    %v3211 = vpop.f32.mrf.mxu0
    %v3212 = vadd.f32 %v3193, %v3211
    %v3213 = vpop.f32.mrf.mxu0
    %v3214 = vadd.f32 %v3195, %v3213
    %3215 = vdwg.mxu0
    %3216 = vmatpush.bf16.msra.mxu0 %v1713
    %3217 = vmatpush.bf16.msra.mxu0 %v1705
    %3218 = vmatpush.bf16.msra.mxu0 %v1697
    %3219 = vmatpush.bf16.msra.mxu0 %v1689
    %3220 = vmatpush.bf16.msra.mxu0 %v1681
    %3221 = vmatpush.bf16.msra.mxu0 %v1673
    %3222 = vmatpush.bf16.msra.mxu0 %v1665
    %3223 = vmatpush.bf16.msra.mxu0 %v1657
    %3224 = vmatmul.bf16.gmra.mxu0 %v474
    %v3225 = vpop.f32.mrf.mxu0
    %v3226 = vadd.f32 %v429, %v3225
    %v3227 = vpop.f32.mrf.mxu0
    %v3228 = vadd.f32 %v429, %v3227
    %3229 = vmatmul.bf16.gmra.mxu0 %v480
    %v3230 = vpop.f32.mrf.mxu0
    %v3231 = vadd.f32 %v429, %v3230
    %v3232 = vpop.f32.mrf.mxu0
    %v3233 = vadd.f32 %v429, %v3232
    %3234 = vdwg.mxu0
    %3235 = vmatpush.bf16.msra.mxu0 %v1777
    %3236 = vmatpush.bf16.msra.mxu0 %v1769
    %3237 = vmatpush.bf16.msra.mxu0 %v1761
    %3238 = vmatpush.bf16.msra.mxu0 %v1753
    %3239 = vmatpush.bf16.msra.mxu0 %v1745
    %3240 = vmatpush.bf16.msra.mxu0 %v1737
    %3241 = vmatpush.bf16.msra.mxu0 %v1729
    %3242 = vmatpush.bf16.msra.mxu0 %v1721
    %3243 = vmatmul.bf16.gmra.mxu0 %v475
    %v3244 = vpop.f32.mrf.mxu0
    %v3245 = vadd.f32 %v3226, %v3244
    %v3246 = vpop.f32.mrf.mxu0
    %v3247 = vadd.f32 %v3228, %v3246
    %3248 = vmatmul.bf16.gmra.mxu0 %v481
    %v3249 = vpop.f32.mrf.mxu0
    %v3250 = vadd.f32 %v3231, %v3249
    %v3251 = vpop.f32.mrf.mxu0
    %v3252 = vadd.f32 %v3233, %v3251
    %3253 = vdwg.mxu0
    %3254 = vmatpush.bf16.msra.mxu0 %v1841
    %3255 = vmatpush.bf16.msra.mxu0 %v1833
    %3256 = vmatpush.bf16.msra.mxu0 %v1825
    %3257 = vmatpush.bf16.msra.mxu0 %v1817
    %3258 = vmatpush.bf16.msra.mxu0 %v1809
    %3259 = vmatpush.bf16.msra.mxu0 %v1801
    %3260 = vmatpush.bf16.msra.mxu0 %v1793
    %3261 = vmatpush.bf16.msra.mxu0 %v1785
    %3262 = vmatmul.bf16.gmra.mxu0 %v476
    %v3263 = vpop.f32.mrf.mxu0
    %v3264 = vadd.f32 %v3245, %v3263
    %v3265 = vpop.f32.mrf.mxu0
    %v3266 = vadd.f32 %v3247, %v3265
    %3267 = vmatmul.bf16.gmra.mxu0 %v482
    %v3268 = vpop.f32.mrf.mxu0
    %v3269 = vadd.f32 %v3250, %v3268
    %v3270 = vpop.f32.mrf.mxu0
    %v3271 = vadd.f32 %v3252, %v3270
    %3272 = vdwg.mxu0
    %3273 = vmatpush.bf16.msra.mxu0 %v1905
    %3274 = vmatpush.bf16.msra.mxu0 %v1897
    %3275 = vmatpush.bf16.msra.mxu0 %v1889
    %3276 = vmatpush.bf16.msra.mxu0 %v1881
    %3277 = vmatpush.bf16.msra.mxu0 %v1873
    %3278 = vmatpush.bf16.msra.mxu0 %v1865
    %3279 = vmatpush.bf16.msra.mxu0 %v1857
    %3280 = vmatpush.bf16.msra.mxu0 %v1849
    %3281 = vmatmul.bf16.gmra.mxu0 %v477
    %v3282 = vpop.f32.mrf.mxu0
    %v3283 = vadd.f32 %v3264, %v3282
    %v3284 = vpop.f32.mrf.mxu0
    %v3285 = vadd.f32 %v3266, %v3284
    %3286 = vmatmul.bf16.gmra.mxu0 %v483
    %v3287 = vpop.f32.mrf.mxu0
    %v3288 = vadd.f32 %v3269, %v3287
    %v3289 = vpop.f32.mrf.mxu0
    %v3290 = vadd.f32 %v3271, %v3289
    %3291 = vdwg.mxu0
    %3292 = vmatpush.bf16.msra.mxu0 %v1969
    %3293 = vmatpush.bf16.msra.mxu0 %v1961
    %3294 = vmatpush.bf16.msra.mxu0 %v1953
    %3295 = vmatpush.bf16.msra.mxu0 %v1945
    %3296 = vmatpush.bf16.msra.mxu0 %v1937
    %3297 = vmatpush.bf16.msra.mxu0 %v1929
    %3298 = vmatpush.bf16.msra.mxu0 %v1921
    %3299 = vmatpush.bf16.msra.mxu0 %v1913
    %3300 = vmatmul.bf16.gmra.mxu0 %v478
    %v3301 = vpop.f32.mrf.mxu0
    %v3302 = vadd.f32 %v3283, %v3301
    %v3303 = vpop.f32.mrf.mxu0
    %v3304 = vadd.f32 %v3285, %v3303
    %3305 = vmatmul.bf16.gmra.mxu0 %v484
    %v3306 = vpop.f32.mrf.mxu0
    %v3307 = vadd.f32 %v3288, %v3306
    %v3308 = vpop.f32.mrf.mxu0
    %v3309 = vadd.f32 %v3290, %v3308
    %3310 = vdwg.mxu0
    %3311 = vmatpush.bf16.msra.mxu0 %v2033
    %3312 = vmatpush.bf16.msra.mxu0 %v2025
    %3313 = vmatpush.bf16.msra.mxu0 %v2017
    %3314 = vmatpush.bf16.msra.mxu0 %v2009
    %3315 = vmatpush.bf16.msra.mxu0 %v2001
    %3316 = vmatpush.bf16.msra.mxu0 %v1993
    %3317 = vmatpush.bf16.msra.mxu0 %v1985
    %3318 = vmatpush.bf16.msra.mxu0 %v1977
    %3319 = vmatmul.bf16.gmra.mxu0 %v479
    %v3320 = vpop.f32.mrf.mxu0
    %v3321 = vadd.f32 %v3302, %v3320
    %v3322 = vpop.f32.mrf.mxu0
    %v3323 = vadd.f32 %v3304, %v3322
    %3324 = vmatmul.bf16.gmra.mxu0 %v485
    %v3325 = vpop.f32.mrf.mxu0
    %v3326 = vadd.f32 %v3307, %v3325
    %v3327 = vpop.f32.mrf.mxu0
    %v3328 = vadd.f32 %v3309, %v3327
    %3329 = vdwg.mxu0
    %v3330 = vmax.f32 %v2523, 0.0
    %v3331 = vmax.f32 %v2637, 0.0
    %v3332 = vmax.f32 %v2751, 0.0
    %v3333 = vmax.f32 %v2865, 0.0
    %v3334 = vmax.f32 %v2979, 0.0
    %v3335 = vmax.f32 %v3093, 0.0
    %v3336 = vmax.f32 %v3207, 0.0
    %v3337 = vmax.f32 %v3321, 0.0
    %v3338 = vmax.f32 %v2525, 0.0
    %v3339 = vmax.f32 %v2639, 0.0
    %v3340 = vmax.f32 %v2753, 0.0
    %v3341 = vmax.f32 %v2867, 0.0
    %v3342 = vmax.f32 %v2981, 0.0
    %v3343 = vmax.f32 %v3095, 0.0
    %v3344 = vmax.f32 %v3209, 0.0
    %v3345 = vmax.f32 %v3323, 0.0
    %v3346 = vmax.f32 %v2528, 0.0
    %v3347 = vmax.f32 %v2642, 0.0
    %v3348 = vmax.f32 %v2756, 0.0
    %v3349 = vmax.f32 %v2870, 0.0
    %v3350 = vmax.f32 %v2984, 0.0
    %v3351 = vmax.f32 %v3098, 0.0
    %v3352 = vmax.f32 %v3212, 0.0
    %v3353 = vmax.f32 %v3326, 0.0
    %v3354 = vmax.f32 %v2530, 0.0
    %v3355 = vmax.f32 %v2644, 0.0
    %v3356 = vmax.f32 %v2758, 0.0
    %v3357 = vmax.f32 %v2872, 0.0
    %v3358 = vmax.f32 %v2986, 0.0
    %v3359 = vmax.f32 %v3100, 0.0
    %v3360 = vmax.f32 %v3214, 0.0
    %v3361 = vmax.f32 %v3328, 0.0
    %v3362 = vpack.c.bf16 %v3338, %v3330
    %v3363 = vpack.c.bf16 %v3339, %v3331
    %v3364 = vpack.c.bf16 %v3340, %v3332
    %v3365 = vpack.c.bf16 %v3341, %v3333
    %v3366 = vpack.c.bf16 %v3342, %v3334
    %v3367 = vpack.c.bf16 %v3343, %v3335
    %v3368 = vpack.c.bf16 %v3344, %v3336
    %v3369 = vpack.c.bf16 %v3345, %v3337
    %v3370 = vpack.c.bf16 %v3354, %v3346
    %v3371 = vpack.c.bf16 %v3355, %v3347
    %v3372 = vpack.c.bf16 %v3356, %v3348
    %v3373 = vpack.c.bf16 %v3357, %v3349
    %v3374 = vpack.c.bf16 %v3358, %v3350
    %v3375 = vpack.c.bf16 %v3359, %v3351
    %v3376 = vpack.c.bf16 %v3360, %v3352
    %v3377 = vpack.c.bf16 %v3361, %v3353
    %v3378 = vld [vmem:[%s3] sm:$0xff]
    %v3379 = vld [vmem:[%s3 + $0x8] sm:$0xff]
    %v3380 = vld [vmem:[%s3 + $0x10] sm:$0xff]
    %v3381 = vld [vmem:[%s3 + $0x18] sm:$0xff]
    %v3382 = vld [vmem:[%s3 + $0x20] sm:$0xff]
    %v3383 = vld [vmem:[%s3 + $0x28] sm:$0xff]
    %v3384 = vld [vmem:[%s3 + $0x30] sm:$0xff]
    %v3385 = vld [vmem:[%s3 + $0x38] sm:$0xff]
    %v3386 = vld [vmem:[%s3 + $0x40] sm:$0xff]
    %v3387 = vld [vmem:[%s3 + $0x48] sm:$0xff]
    %v3388 = vld [vmem:[%s3 + $0x50] sm:$0xff]
    %v3389 = vld [vmem:[%s3 + $0x58] sm:$0xff]
    %v3390 = vld [vmem:[%s3 + $0x60] sm:$0xff]
    %v3391 = vld [vmem:[%s3 + $0x68] sm:$0xff]
    %v3392 = vld [vmem:[%s3 + $0x70] sm:$0xff]
    %v3393 = vld [vmem:[%s3 + $0x78] sm:$0xff]
    %v3394 = vld [vmem:[%s3 + $0x80] sm:$0xff]
    %v3395 = vld [vmem:[%s3 + $0x88] sm:$0xff]
    %v3396 = vld [vmem:[%s3 + $0x90] sm:$0xff]
    %v3397 = vld [vmem:[%s3 + $0x98] sm:$0xff]
    %v3398 = vld [vmem:[%s3 + $0xa0] sm:$0xff]
    %v3399 = vld [vmem:[%s3 + $0xa8] sm:$0xff]
    %v3400 = vld [vmem:[%s3 + $0xb0] sm:$0xff]
    %v3401 = vld [vmem:[%s3 + $0xb8] sm:$0xff]
    %v3402 = vld [vmem:[%s3 + $0xc0] sm:$0xff]
    %v3403 = vld [vmem:[%s3 + $0xc8] sm:$0xff]
    %v3404 = vld [vmem:[%s3 + $0xd0] sm:$0xff]
    %v3405 = vld [vmem:[%s3 + $0xd8] sm:$0xff]
    %v3406 = vld [vmem:[%s3 + $0xe0] sm:$0xff]
    %v3407 = vld [vmem:[%s3 + $0xe8] sm:$0xff]
    %v3408 = vld [vmem:[%s3 + $0xf0] sm:$0xff]
    %v3409 = vld [vmem:[%s3 + $0xf8] sm:$0xff]
    %v3410 = vld [vmem:[%s3 + $0x100] sm:$0xff]
    %v3411 = vld [vmem:[%s3 + $0x108] sm:$0xff]
    %v3412 = vld [vmem:[%s3 + $0x110] sm:$0xff]
    %v3413 = vld [vmem:[%s3 + $0x118] sm:$0xff]
    %v3414 = vld [vmem:[%s3 + $0x120] sm:$0xff]
    %v3415 = vld [vmem:[%s3 + $0x128] sm:$0xff]
    %v3416 = vld [vmem:[%s3 + $0x130] sm:$0xff]
    %v3417 = vld [vmem:[%s3 + $0x138] sm:$0xff]
    %v3418 = vld [vmem:[%s3 + $0x140] sm:$0xff]
    %v3419 = vld [vmem:[%s3 + $0x148] sm:$0xff]
    %v3420 = vld [vmem:[%s3 + $0x150] sm:$0xff]
    %v3421 = vld [vmem:[%s3 + $0x158] sm:$0xff]
    %v3422 = vld [vmem:[%s3 + $0x160] sm:$0xff]
    %v3423 = vld [vmem:[%s3 + $0x168] sm:$0xff]
    %v3424 = vld [vmem:[%s3 + $0x170] sm:$0xff]
    %v3425 = vld [vmem:[%s3 + $0x178] sm:$0xff]
    %v3426 = vld [vmem:[%s3 + $0x180] sm:$0xff]
    %v3427 = vld [vmem:[%s3 + $0x188] sm:$0xff]
    %v3428 = vld [vmem:[%s3 + $0x190] sm:$0xff]
    %v3429 = vld [vmem:[%s3 + $0x198] sm:$0xff]
    %v3430 = vld [vmem:[%s3 + $0x1a0] sm:$0xff]
    %v3431 = vld [vmem:[%s3 + $0x1a8] sm:$0xff]
    %v3432 = vld [vmem:[%s3 + $0x1b0] sm:$0xff]
    %v3433 = vld [vmem:[%s3 + $0x1b8] sm:$0xff]
    %v3434 = vld [vmem:[%s3 + $0x1c0] sm:$0xff]
    %v3435 = vld [vmem:[%s3 + $0x1c8] sm:$0xff]
    %v3436 = vld [vmem:[%s3 + $0x1d0] sm:$0xff]
    %v3437 = vld [vmem:[%s3 + $0x1d8] sm:$0xff]
    %v3438 = vld [vmem:[%s3 + $0x1e0] sm:$0xff]
    %v3439 = vld [vmem:[%s3 + $0x1e8] sm:$0xff]
    %v3440 = vld [vmem:[%s3 + $0x1f0] sm:$0xff]
    %v3441 = vld [vmem:[%s3 + $0x1f8] sm:$0xff]
    %v3442 = vld [vmem:[%s3 + $0x200] sm:$0xff]
    %v3443 = vld [vmem:[%s3 + $0x208] sm:$0xff]
    %v3444 = vld [vmem:[%s3 + $0x210] sm:$0xff]
    %v3445 = vld [vmem:[%s3 + $0x218] sm:$0xff]
    %v3446 = vld [vmem:[%s3 + $0x220] sm:$0xff]
    %v3447 = vld [vmem:[%s3 + $0x228] sm:$0xff]
    %v3448 = vld [vmem:[%s3 + $0x230] sm:$0xff]
    %v3449 = vld [vmem:[%s3 + $0x238] sm:$0xff]
    %v3450 = vld [vmem:[%s3 + $0x240] sm:$0xff]
    %v3451 = vld [vmem:[%s3 + $0x248] sm:$0xff]
    %v3452 = vld [vmem:[%s3 + $0x250] sm:$0xff]
    %v3453 = vld [vmem:[%s3 + $0x258] sm:$0xff]
    %v3454 = vld [vmem:[%s3 + $0x260] sm:$0xff]
    %v3455 = vld [vmem:[%s3 + $0x268] sm:$0xff]
    %v3456 = vld [vmem:[%s3 + $0x270] sm:$0xff]
    %v3457 = vld [vmem:[%s3 + $0x278] sm:$0xff]
    %v3458 = vld [vmem:[%s3 + $0x280] sm:$0xff]
    %v3459 = vld [vmem:[%s3 + $0x288] sm:$0xff]
    %v3460 = vld [vmem:[%s3 + $0x290] sm:$0xff]
    %v3461 = vld [vmem:[%s3 + $0x298] sm:$0xff]
    %v3462 = vld [vmem:[%s3 + $0x2a0] sm:$0xff]
    %v3463 = vld [vmem:[%s3 + $0x2a8] sm:$0xff]
    %v3464 = vld [vmem:[%s3 + $0x2b0] sm:$0xff]
    %v3465 = vld [vmem:[%s3 + $0x2b8] sm:$0xff]
    %v3466 = vld [vmem:[%s3 + $0x2c0] sm:$0xff]
    %v3467 = vld [vmem:[%s3 + $0x2c8] sm:$0xff]
    %v3468 = vld [vmem:[%s3 + $0x2d0] sm:$0xff]
    %v3469 = vld [vmem:[%s3 + $0x2d8] sm:$0xff]
    %v3470 = vld [vmem:[%s3 + $0x2e0] sm:$0xff]
    %v3471 = vld [vmem:[%s3 + $0x2e8] sm:$0xff]
    %v3472 = vld [vmem:[%s3 + $0x2f0] sm:$0xff]
    %v3473 = vld [vmem:[%s3 + $0x2f8] sm:$0xff]
    %v3474 = vld [vmem:[%s3 + $0x300] sm:$0xff]
    %v3475 = vld [vmem:[%s3 + $0x308] sm:$0xff]
    %v3476 = vld [vmem:[%s3 + $0x310] sm:$0xff]
    %v3477 = vld [vmem:[%s3 + $0x318] sm:$0xff]
    %v3478 = vld [vmem:[%s3 + $0x320] sm:$0xff]
    %v3479 = vld [vmem:[%s3 + $0x328] sm:$0xff]
    %v3480 = vld [vmem:[%s3 + $0x330] sm:$0xff]
    %v3481 = vld [vmem:[%s3 + $0x338] sm:$0xff]
    %v3482 = vld [vmem:[%s3 + $0x340] sm:$0xff]
    %v3483 = vld [vmem:[%s3 + $0x348] sm:$0xff]
    %v3484 = vld [vmem:[%s3 + $0x350] sm:$0xff]
    %v3485 = vld [vmem:[%s3 + $0x358] sm:$0xff]
    %v3486 = vld [vmem:[%s3 + $0x360] sm:$0xff]
    %v3487 = vld [vmem:[%s3 + $0x368] sm:$0xff]
    %v3488 = vld [vmem:[%s3 + $0x370] sm:$0xff]
    %v3489 = vld [vmem:[%s3 + $0x378] sm:$0xff]
    %v3490 = vld [vmem:[%s3 + $0x380] sm:$0xff]
    %v3491 = vld [vmem:[%s3 + $0x388] sm:$0xff]
    %v3492 = vld [vmem:[%s3 + $0x390] sm:$0xff]
    %v3493 = vld [vmem:[%s3 + $0x398] sm:$0xff]
    %v3494 = vld [vmem:[%s3 + $0x3a0] sm:$0xff]
    %v3495 = vld [vmem:[%s3 + $0x3a8] sm:$0xff]
    %v3496 = vld [vmem:[%s3 + $0x3b0] sm:$0xff]
    %v3497 = vld [vmem:[%s3 + $0x3b8] sm:$0xff]
    %v3498 = vld [vmem:[%s3 + $0x3c0] sm:$0xff]
    %v3499 = vld [vmem:[%s3 + $0x3c8] sm:$0xff]
    %v3500 = vld [vmem:[%s3 + $0x3d0] sm:$0xff]
    %v3501 = vld [vmem:[%s3 + $0x3d8] sm:$0xff]
    %v3502 = vld [vmem:[%s3 + $0x3e0] sm:$0xff]
    %v3503 = vld [vmem:[%s3 + $0x3e8] sm:$0xff]
    %v3504 = vld [vmem:[%s3 + $0x3f0] sm:$0xff]
    %v3505 = vld [vmem:[%s3 + $0x3f8] sm:$0xff]
    %v3506 = vld [vmem:[%s4] sm:$0x3]
    %v3508 = vperm.slane %v3506, 0
    %v3509 = vperm.slane %v3506, 1
    %v3640 = vunpack.c.l.b16 %v3378
    %v3641 = vunpack.c.h.b16 %v3378
    %v3642 = vunpack.c.l.b16 %v3379
    %v3643 = vunpack.c.h.b16 %v3379
    %v3644 = vunpack.c.l.b16 %v3380
    %v3645 = vunpack.c.h.b16 %v3380
    %v3646 = vunpack.c.l.b16 %v3381
    %v3647 = vunpack.c.h.b16 %v3381
    %v3648 = vunpack.c.l.b16 %v3382
    %v3649 = vunpack.c.h.b16 %v3382
    %v3650 = vunpack.c.l.b16 %v3383
    %v3651 = vunpack.c.h.b16 %v3383
    %v3652 = vunpack.c.l.b16 %v3384
    %v3653 = vunpack.c.h.b16 %v3384
    %v3654 = vunpack.c.l.b16 %v3385
    %v3655 = vunpack.c.h.b16 %v3385
    %v3656 = vunpack.c.l.b16 %v3386
    %v3657 = vunpack.c.h.b16 %v3386
    %v3658 = vunpack.c.l.b16 %v3387
    %v3659 = vunpack.c.h.b16 %v3387
    %v3660 = vunpack.c.l.b16 %v3388
    %v3661 = vunpack.c.h.b16 %v3388
    %v3662 = vunpack.c.l.b16 %v3389
    %v3663 = vunpack.c.h.b16 %v3389
    %v3664 = vunpack.c.l.b16 %v3390
    %v3665 = vunpack.c.h.b16 %v3390
    %v3666 = vunpack.c.l.b16 %v3391
    %v3667 = vunpack.c.h.b16 %v3391
    %v3668 = vunpack.c.l.b16 %v3392
    %v3669 = vunpack.c.h.b16 %v3392
    %v3670 = vunpack.c.l.b16 %v3393
    %v3671 = vunpack.c.h.b16 %v3393
    %v3672 = vunpack.c.l.b16 %v3394
    %v3673 = vunpack.c.h.b16 %v3394
    %v3674 = vunpack.c.l.b16 %v3395
    %v3675 = vunpack.c.h.b16 %v3395
    %v3676 = vunpack.c.l.b16 %v3396
    %v3677 = vunpack.c.h.b16 %v3396
    %v3678 = vunpack.c.l.b16 %v3397
    %v3679 = vunpack.c.h.b16 %v3397
    %v3680 = vunpack.c.l.b16 %v3398
    %v3681 = vunpack.c.h.b16 %v3398
    %v3682 = vunpack.c.l.b16 %v3399
    %v3683 = vunpack.c.h.b16 %v3399
    %v3684 = vunpack.c.l.b16 %v3400
    %v3685 = vunpack.c.h.b16 %v3400
    %v3686 = vunpack.c.l.b16 %v3401
    %v3687 = vunpack.c.h.b16 %v3401
    %v3688 = vunpack.c.l.b16 %v3402
    %v3689 = vunpack.c.h.b16 %v3402
    %v3690 = vunpack.c.l.b16 %v3403
    %v3691 = vunpack.c.h.b16 %v3403
    %v3692 = vunpack.c.l.b16 %v3404
    %v3693 = vunpack.c.h.b16 %v3404
    %v3694 = vunpack.c.l.b16 %v3405
    %v3695 = vunpack.c.h.b16 %v3405
    %v3696 = vunpack.c.l.b16 %v3406
    %v3697 = vunpack.c.h.b16 %v3406
    %v3698 = vunpack.c.l.b16 %v3407
    %v3699 = vunpack.c.h.b16 %v3407
    %v3700 = vunpack.c.l.b16 %v3408
    %v3701 = vunpack.c.h.b16 %v3408
    %v3702 = vunpack.c.l.b16 %v3409
    %v3703 = vunpack.c.h.b16 %v3409
    %v3704 = vunpack.c.l.b16 %v3410
    %v3705 = vunpack.c.h.b16 %v3410
    %v3706 = vunpack.c.l.b16 %v3411
    %v3707 = vunpack.c.h.b16 %v3411
    %v3708 = vunpack.c.l.b16 %v3412
    %v3709 = vunpack.c.h.b16 %v3412
    %v3710 = vunpack.c.l.b16 %v3413
    %v3711 = vunpack.c.h.b16 %v3413
    %v3712 = vunpack.c.l.b16 %v3414
    %v3713 = vunpack.c.h.b16 %v3414
    %v3714 = vunpack.c.l.b16 %v3415
    %v3715 = vunpack.c.h.b16 %v3415
    %v3716 = vunpack.c.l.b16 %v3416
    %v3717 = vunpack.c.h.b16 %v3416
    %v3718 = vunpack.c.l.b16 %v3417
    %v3719 = vunpack.c.h.b16 %v3417
    %v3720 = vunpack.c.l.b16 %v3418
    %v3721 = vunpack.c.h.b16 %v3418
    %v3722 = vunpack.c.l.b16 %v3419
    %v3723 = vunpack.c.h.b16 %v3419
    %v3724 = vunpack.c.l.b16 %v3420
    %v3725 = vunpack.c.h.b16 %v3420
    %v3726 = vunpack.c.l.b16 %v3421
    %v3727 = vunpack.c.h.b16 %v3421
    %v3728 = vunpack.c.l.b16 %v3422
    %v3729 = vunpack.c.h.b16 %v3422
    %v3730 = vunpack.c.l.b16 %v3423
    %v3731 = vunpack.c.h.b16 %v3423
    %v3732 = vunpack.c.l.b16 %v3424
    %v3733 = vunpack.c.h.b16 %v3424
    %v3734 = vunpack.c.l.b16 %v3425
    %v3735 = vunpack.c.h.b16 %v3425
    %v3736 = vunpack.c.l.b16 %v3426
    %v3737 = vunpack.c.h.b16 %v3426
    %v3738 = vunpack.c.l.b16 %v3427
    %v3739 = vunpack.c.h.b16 %v3427
    %v3740 = vunpack.c.l.b16 %v3428
    %v3741 = vunpack.c.h.b16 %v3428
    %v3742 = vunpack.c.l.b16 %v3429
    %v3743 = vunpack.c.h.b16 %v3429
    %v3744 = vunpack.c.l.b16 %v3430
    %v3745 = vunpack.c.h.b16 %v3430
    %v3746 = vunpack.c.l.b16 %v3431
    %v3747 = vunpack.c.h.b16 %v3431
    %v3748 = vunpack.c.l.b16 %v3432
    %v3749 = vunpack.c.h.b16 %v3432
    %v3750 = vunpack.c.l.b16 %v3433
    %v3751 = vunpack.c.h.b16 %v3433
    %v3752 = vunpack.c.l.b16 %v3434
    %v3753 = vunpack.c.h.b16 %v3434
    %v3754 = vunpack.c.l.b16 %v3435
    %v3755 = vunpack.c.h.b16 %v3435
    %v3756 = vunpack.c.l.b16 %v3436
    %v3757 = vunpack.c.h.b16 %v3436
    %v3758 = vunpack.c.l.b16 %v3437
    %v3759 = vunpack.c.h.b16 %v3437
    %v3760 = vunpack.c.l.b16 %v3438
    %v3761 = vunpack.c.h.b16 %v3438
    %v3762 = vunpack.c.l.b16 %v3439
    %v3763 = vunpack.c.h.b16 %v3439
    %v3764 = vunpack.c.l.b16 %v3440
    %v3765 = vunpack.c.h.b16 %v3440
    %v3766 = vunpack.c.l.b16 %v3441
    %v3767 = vunpack.c.h.b16 %v3441
    %v3768 = vunpack.c.l.b16 %v3442
    %v3769 = vunpack.c.h.b16 %v3442
    %v3770 = vunpack.c.l.b16 %v3443
    %v3771 = vunpack.c.h.b16 %v3443
    %v3772 = vunpack.c.l.b16 %v3444
    %v3773 = vunpack.c.h.b16 %v3444
    %v3774 = vunpack.c.l.b16 %v3445
    %v3775 = vunpack.c.h.b16 %v3445
    %v3776 = vunpack.c.l.b16 %v3446
    %v3777 = vunpack.c.h.b16 %v3446
    %v3778 = vunpack.c.l.b16 %v3447
    %v3779 = vunpack.c.h.b16 %v3447
    %v3780 = vunpack.c.l.b16 %v3448
    %v3781 = vunpack.c.h.b16 %v3448
    %v3782 = vunpack.c.l.b16 %v3449
    %v3783 = vunpack.c.h.b16 %v3449
    %v3784 = vunpack.c.l.b16 %v3450
    %v3785 = vunpack.c.h.b16 %v3450
    %v3786 = vunpack.c.l.b16 %v3451
    %v3787 = vunpack.c.h.b16 %v3451
    %v3788 = vunpack.c.l.b16 %v3452
    %v3789 = vunpack.c.h.b16 %v3452
    %v3790 = vunpack.c.l.b16 %v3453
    %v3791 = vunpack.c.h.b16 %v3453
    %v3792 = vunpack.c.l.b16 %v3454
    %v3793 = vunpack.c.h.b16 %v3454
    %v3794 = vunpack.c.l.b16 %v3455
    %v3795 = vunpack.c.h.b16 %v3455
    %v3796 = vunpack.c.l.b16 %v3456
    %v3797 = vunpack.c.h.b16 %v3456
    %v3798 = vunpack.c.l.b16 %v3457
    %v3799 = vunpack.c.h.b16 %v3457
    %v3800 = vunpack.c.l.b16 %v3458
    %v3801 = vunpack.c.h.b16 %v3458
    %v3802 = vunpack.c.l.b16 %v3459
    %v3803 = vunpack.c.h.b16 %v3459
    %v3804 = vunpack.c.l.b16 %v3460
    %v3805 = vunpack.c.h.b16 %v3460
    %v3806 = vunpack.c.l.b16 %v3461
    %v3807 = vunpack.c.h.b16 %v3461
    %v3808 = vunpack.c.l.b16 %v3462
    %v3809 = vunpack.c.h.b16 %v3462
    %v3810 = vunpack.c.l.b16 %v3463
    %v3811 = vunpack.c.h.b16 %v3463
    %v3812 = vunpack.c.l.b16 %v3464
    %v3813 = vunpack.c.h.b16 %v3464
    %v3814 = vunpack.c.l.b16 %v3465
    %v3815 = vunpack.c.h.b16 %v3465
    %v3816 = vunpack.c.l.b16 %v3466
    %v3817 = vunpack.c.h.b16 %v3466
    %v3818 = vunpack.c.l.b16 %v3467
    %v3819 = vunpack.c.h.b16 %v3467
    %v3820 = vunpack.c.l.b16 %v3468
    %v3821 = vunpack.c.h.b16 %v3468
    %v3822 = vunpack.c.l.b16 %v3469
    %v3823 = vunpack.c.h.b16 %v3469
    %v3824 = vunpack.c.l.b16 %v3470
    %v3825 = vunpack.c.h.b16 %v3470
    %v3826 = vunpack.c.l.b16 %v3471
    %v3827 = vunpack.c.h.b16 %v3471
    %v3828 = vunpack.c.l.b16 %v3472
    %v3829 = vunpack.c.h.b16 %v3472
    %v3830 = vunpack.c.l.b16 %v3473
    %v3831 = vunpack.c.h.b16 %v3473
    %v3832 = vunpack.c.l.b16 %v3474
    %v3833 = vunpack.c.h.b16 %v3474
    %v3834 = vunpack.c.l.b16 %v3475
    %v3835 = vunpack.c.h.b16 %v3475
    %v3836 = vunpack.c.l.b16 %v3476
    %v3837 = vunpack.c.h.b16 %v3476
    %v3838 = vunpack.c.l.b16 %v3477
    %v3839 = vunpack.c.h.b16 %v3477
    %v3840 = vunpack.c.l.b16 %v3478
    %v3841 = vunpack.c.h.b16 %v3478
    %v3842 = vunpack.c.l.b16 %v3479
    %v3843 = vunpack.c.h.b16 %v3479
    %v3844 = vunpack.c.l.b16 %v3480
    %v3845 = vunpack.c.h.b16 %v3480
    %v3846 = vunpack.c.l.b16 %v3481
    %v3847 = vunpack.c.h.b16 %v3481
    %v3848 = vunpack.c.l.b16 %v3482
    %v3849 = vunpack.c.h.b16 %v3482
    %v3850 = vunpack.c.l.b16 %v3483
    %v3851 = vunpack.c.h.b16 %v3483
    %v3852 = vunpack.c.l.b16 %v3484
    %v3853 = vunpack.c.h.b16 %v3484
    %v3854 = vunpack.c.l.b16 %v3485
    %v3855 = vunpack.c.h.b16 %v3485
    %v3856 = vunpack.c.l.b16 %v3486
    %v3857 = vunpack.c.h.b16 %v3486
    %v3858 = vunpack.c.l.b16 %v3487
    %v3859 = vunpack.c.h.b16 %v3487
    %v3860 = vunpack.c.l.b16 %v3488
    %v3861 = vunpack.c.h.b16 %v3488
    %v3862 = vunpack.c.l.b16 %v3489
    %v3863 = vunpack.c.h.b16 %v3489
    %v3864 = vunpack.c.l.b16 %v3490
    %v3865 = vunpack.c.h.b16 %v3490
    %v3866 = vunpack.c.l.b16 %v3491
    %v3867 = vunpack.c.h.b16 %v3491
    %v3868 = vunpack.c.l.b16 %v3492
    %v3869 = vunpack.c.h.b16 %v3492
    %v3870 = vunpack.c.l.b16 %v3493
    %v3871 = vunpack.c.h.b16 %v3493
    %v3872 = vunpack.c.l.b16 %v3494
    %v3873 = vunpack.c.h.b16 %v3494
    %v3874 = vunpack.c.l.b16 %v3495
    %v3875 = vunpack.c.h.b16 %v3495
    %v3876 = vunpack.c.l.b16 %v3496
    %v3877 = vunpack.c.h.b16 %v3496
    %v3878 = vunpack.c.l.b16 %v3497
    %v3879 = vunpack.c.h.b16 %v3497
    %v3880 = vunpack.c.l.b16 %v3498
    %v3881 = vunpack.c.h.b16 %v3498
    %v3882 = vunpack.c.l.b16 %v3499
    %v3883 = vunpack.c.h.b16 %v3499
    %v3884 = vunpack.c.l.b16 %v3500
    %v3885 = vunpack.c.h.b16 %v3500
    %v3886 = vunpack.c.l.b16 %v3501
    %v3887 = vunpack.c.h.b16 %v3501
    %v3888 = vunpack.c.l.b16 %v3502
    %v3889 = vunpack.c.h.b16 %v3502
    %v3890 = vunpack.c.l.b16 %v3503
    %v3891 = vunpack.c.h.b16 %v3503
    %v3892 = vunpack.c.l.b16 %v3504
    %v3893 = vunpack.c.h.b16 %v3504
    %v3894 = vunpack.c.l.b16 %v3505
    %v3895 = vunpack.c.h.b16 %v3505
    %v3896 = vpack.c.b16 %v3642, %v3640
    %v3897 = vpack.c.b16 %v3643, %v3641
    %v3898 = vpack.c.b16 %v3646, %v3644
    %v3899 = vpack.c.b16 %v3647, %v3645
    %v3900 = vpack.c.b16 %v3650, %v3648
    %v3901 = vpack.c.b16 %v3651, %v3649
    %v3902 = vpack.c.b16 %v3654, %v3652
    %v3903 = vpack.c.b16 %v3655, %v3653
    %v3904 = vpack.c.b16 %v3658, %v3656
    %v3905 = vpack.c.b16 %v3659, %v3657
    %v3906 = vpack.c.b16 %v3662, %v3660
    %v3907 = vpack.c.b16 %v3663, %v3661
    %v3908 = vpack.c.b16 %v3666, %v3664
    %v3909 = vpack.c.b16 %v3667, %v3665
    %v3910 = vpack.c.b16 %v3670, %v3668
    %v3911 = vpack.c.b16 %v3671, %v3669
    %v3912 = vpack.c.b16 %v3674, %v3672
    %v3913 = vpack.c.b16 %v3675, %v3673
    %v3914 = vpack.c.b16 %v3678, %v3676
    %v3915 = vpack.c.b16 %v3679, %v3677
    %v3916 = vpack.c.b16 %v3682, %v3680
    %v3917 = vpack.c.b16 %v3683, %v3681
    %v3918 = vpack.c.b16 %v3686, %v3684
    %v3919 = vpack.c.b16 %v3687, %v3685
    %v3920 = vpack.c.b16 %v3690, %v3688
    %v3921 = vpack.c.b16 %v3691, %v3689
    %v3922 = vpack.c.b16 %v3694, %v3692
    %v3923 = vpack.c.b16 %v3695, %v3693
    %v3924 = vpack.c.b16 %v3698, %v3696
    %v3925 = vpack.c.b16 %v3699, %v3697
    %v3926 = vpack.c.b16 %v3702, %v3700
    %v3927 = vpack.c.b16 %v3703, %v3701
    %v3928 = vpack.c.b16 %v3706, %v3704
    %v3929 = vpack.c.b16 %v3707, %v3705
    %v3930 = vpack.c.b16 %v3710, %v3708
    %v3931 = vpack.c.b16 %v3711, %v3709
    %v3932 = vpack.c.b16 %v3714, %v3712
    %v3933 = vpack.c.b16 %v3715, %v3713
    %v3934 = vpack.c.b16 %v3718, %v3716
    %v3935 = vpack.c.b16 %v3719, %v3717
    %v3936 = vpack.c.b16 %v3722, %v3720
    %v3937 = vpack.c.b16 %v3723, %v3721
    %v3938 = vpack.c.b16 %v3726, %v3724
    %v3939 = vpack.c.b16 %v3727, %v3725
    %v3940 = vpack.c.b16 %v3730, %v3728
    %v3941 = vpack.c.b16 %v3731, %v3729
    %v3942 = vpack.c.b16 %v3734, %v3732
    %v3943 = vpack.c.b16 %v3735, %v3733
    %v3944 = vpack.c.b16 %v3738, %v3736
    %v3945 = vpack.c.b16 %v3739, %v3737
    %v3946 = vpack.c.b16 %v3742, %v3740
    %v3947 = vpack.c.b16 %v3743, %v3741
    %v3948 = vpack.c.b16 %v3746, %v3744
    %v3949 = vpack.c.b16 %v3747, %v3745
    %v3950 = vpack.c.b16 %v3750, %v3748
    %v3951 = vpack.c.b16 %v3751, %v3749
    %v3952 = vpack.c.b16 %v3754, %v3752
    %v3953 = vpack.c.b16 %v3755, %v3753
    %v3954 = vpack.c.b16 %v3758, %v3756
    %v3955 = vpack.c.b16 %v3759, %v3757
    %v3956 = vpack.c.b16 %v3762, %v3760
    %v3957 = vpack.c.b16 %v3763, %v3761
    %v3958 = vpack.c.b16 %v3766, %v3764
    %v3959 = vpack.c.b16 %v3767, %v3765
    %v3960 = vpack.c.b16 %v3770, %v3768
    %v3961 = vpack.c.b16 %v3771, %v3769
    %v3962 = vpack.c.b16 %v3774, %v3772
    %v3963 = vpack.c.b16 %v3775, %v3773
    %v3964 = vpack.c.b16 %v3778, %v3776
    %v3965 = vpack.c.b16 %v3779, %v3777
    %v3966 = vpack.c.b16 %v3782, %v3780
    %v3967 = vpack.c.b16 %v3783, %v3781
    %v3968 = vpack.c.b16 %v3786, %v3784
    %v3969 = vpack.c.b16 %v3787, %v3785
    %v3970 = vpack.c.b16 %v3790, %v3788
    %v3971 = vpack.c.b16 %v3791, %v3789
    %v3972 = vpack.c.b16 %v3794, %v3792
    %v3973 = vpack.c.b16 %v3795, %v3793
    %v3974 = vpack.c.b16 %v3798, %v3796
    %v3975 = vpack.c.b16 %v3799, %v3797
    %v3976 = vpack.c.b16 %v3802, %v3800
    %v3977 = vpack.c.b16 %v3803, %v3801
    %v3978 = vpack.c.b16 %v3806, %v3804
    %v3979 = vpack.c.b16 %v3807, %v3805
    %v3980 = vpack.c.b16 %v3810, %v3808
    %v3981 = vpack.c.b16 %v3811, %v3809
    %v3982 = vpack.c.b16 %v3814, %v3812
    %v3983 = vpack.c.b16 %v3815, %v3813
    %v3984 = vpack.c.b16 %v3818, %v3816
    %v3985 = vpack.c.b16 %v3819, %v3817
    %v3986 = vpack.c.b16 %v3822, %v3820
    %v3987 = vpack.c.b16 %v3823, %v3821
    %v3988 = vpack.c.b16 %v3826, %v3824
    %v3989 = vpack.c.b16 %v3827, %v3825
    %v3990 = vpack.c.b16 %v3830, %v3828
    %v3991 = vpack.c.b16 %v3831, %v3829
    %v3992 = vpack.c.b16 %v3834, %v3832
    %v3993 = vpack.c.b16 %v3835, %v3833
    %v3994 = vpack.c.b16 %v3838, %v3836
    %v3995 = vpack.c.b16 %v3839, %v3837
    %v3996 = vpack.c.b16 %v3842, %v3840
    %v3997 = vpack.c.b16 %v3843, %v3841
    %v3998 = vpack.c.b16 %v3846, %v3844
    %v3999 = vpack.c.b16 %v3847, %v3845
    %v4000 = vpack.c.b16 %v3850, %v3848
    %v4001 = vpack.c.b16 %v3851, %v3849
    %v4002 = vpack.c.b16 %v3854, %v3852
    %v4003 = vpack.c.b16 %v3855, %v3853
    %v4004 = vpack.c.b16 %v3858, %v3856
    %v4005 = vpack.c.b16 %v3859, %v3857
    %v4006 = vpack.c.b16 %v3862, %v3860
    %v4007 = vpack.c.b16 %v3863, %v3861
    %v4008 = vpack.c.b16 %v3866, %v3864
    %v4009 = vpack.c.b16 %v3867, %v3865
    %v4010 = vpack.c.b16 %v3870, %v3868
    %v4011 = vpack.c.b16 %v3871, %v3869
    %v4012 = vpack.c.b16 %v3874, %v3872
    %v4013 = vpack.c.b16 %v3875, %v3873
    %v4014 = vpack.c.b16 %v3878, %v3876
    %v4015 = vpack.c.b16 %v3879, %v3877
    %v4016 = vpack.c.b16 %v3882, %v3880
    %v4017 = vpack.c.b16 %v3883, %v3881
    %v4018 = vpack.c.b16 %v3886, %v3884
    %v4019 = vpack.c.b16 %v3887, %v3885
    %v4020 = vpack.c.b16 %v3890, %v3888
    %v4021 = vpack.c.b16 %v3891, %v3889
    %v4022 = vpack.c.b16 %v3894, %v3892
    %v4023 = vpack.c.b16 %v3895, %v3893
    %4152 = vmatpush.bf16.msra.mxu0 %v3910
    %4153 = vmatpush.bf16.msra.mxu0 %v3908
    %4154 = vmatpush.bf16.msra.mxu0 %v3906
    %4155 = vmatpush.bf16.msra.mxu0 %v3904
    %4156 = vmatpush.bf16.msra.mxu0 %v3902
    %4157 = vmatpush.bf16.msra.mxu0 %v3900
    %4158 = vmatpush.bf16.msra.mxu0 %v3898
    %4159 = vmatpush.bf16.msra.mxu0 %v3896
    %4160 = vmatmul.bf16.gmra.mxu0 %v3362
    %v4161 = vpop.f32.mrf.mxu0
    %v4162 = vadd.f32 %v3508, %v4161
    %v4163 = vpop.f32.mrf.mxu0
    %v4164 = vadd.f32 %v3508, %v4163
    %4165 = vmatmul.bf16.gmra.mxu0 %v3370
    %v4166 = vpop.f32.mrf.mxu0
    %v4167 = vadd.f32 %v3508, %v4166
    %v4168 = vpop.f32.mrf.mxu0
    %v4169 = vadd.f32 %v3508, %v4168
    %4170 = vdwg.mxu0
    %4171 = vmatpush.bf16.msra.mxu0 %v3926
    %4172 = vmatpush.bf16.msra.mxu0 %v3924
    %4173 = vmatpush.bf16.msra.mxu0 %v3922
    %4174 = vmatpush.bf16.msra.mxu0 %v3920
    %4175 = vmatpush.bf16.msra.mxu0 %v3918
    %4176 = vmatpush.bf16.msra.mxu0 %v3916
    %4177 = vmatpush.bf16.msra.mxu0 %v3914
    %4178 = vmatpush.bf16.msra.mxu0 %v3912
    %4179 = vmatmul.bf16.gmra.mxu0 %v3363
    %v4180 = vpop.f32.mrf.mxu0
    %v4181 = vadd.f32 %v4162, %v4180
    %v4182 = vpop.f32.mrf.mxu0
    %v4183 = vadd.f32 %v4164, %v4182
    %4184 = vmatmul.bf16.gmra.mxu0 %v3371
    %v4185 = vpop.f32.mrf.mxu0
    %v4186 = vadd.f32 %v4167, %v4185
    %v4187 = vpop.f32.mrf.mxu0
    %v4188 = vadd.f32 %v4169, %v4187
    %4189 = vdwg.mxu0
    %4190 = vmatpush.bf16.msra.mxu0 %v3942
    %4191 = vmatpush.bf16.msra.mxu0 %v3940
    %4192 = vmatpush.bf16.msra.mxu0 %v3938
    %4193 = vmatpush.bf16.msra.mxu0 %v3936
    %4194 = vmatpush.bf16.msra.mxu0 %v3934
    %4195 = vmatpush.bf16.msra.mxu0 %v3932
    %4196 = vmatpush.bf16.msra.mxu0 %v3930
    %4197 = vmatpush.bf16.msra.mxu0 %v3928
    %4198 = vmatmul.bf16.gmra.mxu0 %v3364
    %v4199 = vpop.f32.mrf.mxu0
    %v4200 = vadd.f32 %v4181, %v4199
    %v4201 = vpop.f32.mrf.mxu0
    %v4202 = vadd.f32 %v4183, %v4201
    %4203 = vmatmul.bf16.gmra.mxu0 %v3372
    %v4204 = vpop.f32.mrf.mxu0
    %v4205 = vadd.f32 %v4186, %v4204
    %v4206 = vpop.f32.mrf.mxu0
    %v4207 = vadd.f32 %v4188, %v4206
    %4208 = vdwg.mxu0
    %4209 = vmatpush.bf16.msra.mxu0 %v3958
    %4210 = vmatpush.bf16.msra.mxu0 %v3956
    %4211 = vmatpush.bf16.msra.mxu0 %v3954
    %4212 = vmatpush.bf16.msra.mxu0 %v3952
    %4213 = vmatpush.bf16.msra.mxu0 %v3950
    %4214 = vmatpush.bf16.msra.mxu0 %v3948
    %4215 = vmatpush.bf16.msra.mxu0 %v3946
    %4216 = vmatpush.bf16.msra.mxu0 %v3944
    %4217 = vmatmul.bf16.gmra.mxu0 %v3365
    %v4218 = vpop.f32.mrf.mxu0
    %v4219 = vadd.f32 %v4200, %v4218
    %v4220 = vpop.f32.mrf.mxu0
    %v4221 = vadd.f32 %v4202, %v4220
    %4222 = vmatmul.bf16.gmra.mxu0 %v3373
    %v4223 = vpop.f32.mrf.mxu0
    %v4224 = vadd.f32 %v4205, %v4223
    %v4225 = vpop.f32.mrf.mxu0
    %v4226 = vadd.f32 %v4207, %v4225
    %4227 = vdwg.mxu0
    %4228 = vmatpush.bf16.msra.mxu0 %v3974
    %4229 = vmatpush.bf16.msra.mxu0 %v3972
    %4230 = vmatpush.bf16.msra.mxu0 %v3970
    %4231 = vmatpush.bf16.msra.mxu0 %v3968
    %4232 = vmatpush.bf16.msra.mxu0 %v3966
    %4233 = vmatpush.bf16.msra.mxu0 %v3964
    %4234 = vmatpush.bf16.msra.mxu0 %v3962
    %4235 = vmatpush.bf16.msra.mxu0 %v3960
    %4236 = vmatmul.bf16.gmra.mxu0 %v3366
    %v4237 = vpop.f32.mrf.mxu0
    %v4238 = vadd.f32 %v4219, %v4237
    %v4239 = vpop.f32.mrf.mxu0
    %v4240 = vadd.f32 %v4221, %v4239
    %4241 = vmatmul.bf16.gmra.mxu0 %v3374
    %v4242 = vpop.f32.mrf.mxu0
    %v4243 = vadd.f32 %v4224, %v4242
    %v4244 = vpop.f32.mrf.mxu0
    %v4245 = vadd.f32 %v4226, %v4244
    %4246 = vdwg.mxu0
    %4247 = vmatpush.bf16.msra.mxu0 %v3990
    %4248 = vmatpush.bf16.msra.mxu0 %v3988
    %4249 = vmatpush.bf16.msra.mxu0 %v3986
    %4250 = vmatpush.bf16.msra.mxu0 %v3984
    %4251 = vmatpush.bf16.msra.mxu0 %v3982
    %4252 = vmatpush.bf16.msra.mxu0 %v3980
    %4253 = vmatpush.bf16.msra.mxu0 %v3978
    %4254 = vmatpush.bf16.msra.mxu0 %v3976
    %4255 = vmatmul.bf16.gmra.mxu0 %v3367
    %v4256 = vpop.f32.mrf.mxu0
    %v4257 = vadd.f32 %v4238, %v4256
    %v4258 = vpop.f32.mrf.mxu0
    %v4259 = vadd.f32 %v4240, %v4258
    %4260 = vmatmul.bf16.gmra.mxu0 %v3375
    %v4261 = vpop.f32.mrf.mxu0
    %v4262 = vadd.f32 %v4243, %v4261
    %v4263 = vpop.f32.mrf.mxu0
    %v4264 = vadd.f32 %v4245, %v4263
    %4265 = vdwg.mxu0
    %4266 = vmatpush.bf16.msra.mxu0 %v4006
    %4267 = vmatpush.bf16.msra.mxu0 %v4004
    %4268 = vmatpush.bf16.msra.mxu0 %v4002
    %4269 = vmatpush.bf16.msra.mxu0 %v4000
    %4270 = vmatpush.bf16.msra.mxu0 %v3998
    %4271 = vmatpush.bf16.msra.mxu0 %v3996
    %4272 = vmatpush.bf16.msra.mxu0 %v3994
    %4273 = vmatpush.bf16.msra.mxu0 %v3992
    %4274 = vmatmul.bf16.gmra.mxu0 %v3368
    %v4275 = vpop.f32.mrf.mxu0
    %v4276 = vadd.f32 %v4257, %v4275
    %v4277 = vpop.f32.mrf.mxu0
    %v4278 = vadd.f32 %v4259, %v4277
    %4279 = vmatmul.bf16.gmra.mxu0 %v3376
    %v4280 = vpop.f32.mrf.mxu0
    %v4281 = vadd.f32 %v4262, %v4280
    %v4282 = vpop.f32.mrf.mxu0
    %v4283 = vadd.f32 %v4264, %v4282
    %4284 = vdwg.mxu0
    %4285 = vmatpush.bf16.msra.mxu0 %v4022
    %4286 = vmatpush.bf16.msra.mxu0 %v4020
    %4287 = vmatpush.bf16.msra.mxu0 %v4018
    %4288 = vmatpush.bf16.msra.mxu0 %v4016
    %4289 = vmatpush.bf16.msra.mxu0 %v4014
    %4290 = vmatpush.bf16.msra.mxu0 %v4012
    %4291 = vmatpush.bf16.msra.mxu0 %v4010
    %4292 = vmatpush.bf16.msra.mxu0 %v4008
    %4293 = vmatmul.bf16.gmra.mxu0 %v3369
    %v4294 = vpop.f32.mrf.mxu0
    %v4295 = vadd.f32 %v4276, %v4294
    %v4296 = vpop.f32.mrf.mxu0
    %v4297 = vadd.f32 %v4278, %v4296
    %4298 = vmatmul.bf16.gmra.mxu0 %v3377
    %v4299 = vpop.f32.mrf.mxu0
    %v4300 = vadd.f32 %v4281, %v4299
    %v4301 = vpop.f32.mrf.mxu0
    %v4302 = vadd.f32 %v4283, %v4301
    %4303 = vdwg.mxu0
    %4304 = vmatpush.bf16.msra.mxu0 %v3911
    %4305 = vmatpush.bf16.msra.mxu0 %v3909
    %4306 = vmatpush.bf16.msra.mxu0 %v3907
    %4307 = vmatpush.bf16.msra.mxu0 %v3905
    %4308 = vmatpush.bf16.msra.mxu0 %v3903
    %4309 = vmatpush.bf16.msra.mxu0 %v3901
    %4310 = vmatpush.bf16.msra.mxu0 %v3899
    %4311 = vmatpush.bf16.msra.mxu0 %v3897
    %4312 = vmatmul.bf16.gmra.mxu0 %v3362
    %v4313 = vpop.f32.mrf.mxu0
    %v4314 = vadd.f32 %v3509, %v4313
    %v4315 = vpop.f32.mrf.mxu0
    %v4316 = vadd.f32 %v3509, %v4315
    %4317 = vmatmul.bf16.gmra.mxu0 %v3370
    %v4318 = vpop.f32.mrf.mxu0
    %v4319 = vadd.f32 %v3509, %v4318
    %v4320 = vpop.f32.mrf.mxu0
    %v4321 = vadd.f32 %v3509, %v4320
    %4322 = vdwg.mxu0
    %4323 = vmatpush.bf16.msra.mxu0 %v3927
    %4324 = vmatpush.bf16.msra.mxu0 %v3925
    %4325 = vmatpush.bf16.msra.mxu0 %v3923
    %4326 = vmatpush.bf16.msra.mxu0 %v3921
    %4327 = vmatpush.bf16.msra.mxu0 %v3919
    %4328 = vmatpush.bf16.msra.mxu0 %v3917
    %4329 = vmatpush.bf16.msra.mxu0 %v3915
    %4330 = vmatpush.bf16.msra.mxu0 %v3913
    %4331 = vmatmul.bf16.gmra.mxu0 %v3363
    %v4332 = vpop.f32.mrf.mxu0
    %v4333 = vadd.f32 %v4314, %v4332
    %v4334 = vpop.f32.mrf.mxu0
    %v4335 = vadd.f32 %v4316, %v4334
    %4336 = vmatmul.bf16.gmra.mxu0 %v3371
    %v4337 = vpop.f32.mrf.mxu0
    %v4338 = vadd.f32 %v4319, %v4337
    %v4339 = vpop.f32.mrf.mxu0
    %v4340 = vadd.f32 %v4321, %v4339
    %4341 = vdwg.mxu0
    %4342 = vmatpush.bf16.msra.mxu0 %v3943
    %4343 = vmatpush.bf16.msra.mxu0 %v3941
    %4344 = vmatpush.bf16.msra.mxu0 %v3939
    %4345 = vmatpush.bf16.msra.mxu0 %v3937
    %4346 = vmatpush.bf16.msra.mxu0 %v3935
    %4347 = vmatpush.bf16.msra.mxu0 %v3933
    %4348 = vmatpush.bf16.msra.mxu0 %v3931
    %4349 = vmatpush.bf16.msra.mxu0 %v3929
    %4350 = vmatmul.bf16.gmra.mxu0 %v3364
    %v4351 = vpop.f32.mrf.mxu0
    %v4352 = vadd.f32 %v4333, %v4351
    %v4353 = vpop.f32.mrf.mxu0
    %v4354 = vadd.f32 %v4335, %v4353
    %4355 = vmatmul.bf16.gmra.mxu0 %v3372
    %v4356 = vpop.f32.mrf.mxu0
    %v4357 = vadd.f32 %v4338, %v4356
    %v4358 = vpop.f32.mrf.mxu0
    %v4359 = vadd.f32 %v4340, %v4358
    %4360 = vdwg.mxu0
    %4361 = vmatpush.bf16.msra.mxu0 %v3959
    %4362 = vmatpush.bf16.msra.mxu0 %v3957
    %4363 = vmatpush.bf16.msra.mxu0 %v3955
    %4364 = vmatpush.bf16.msra.mxu0 %v3953
    %4365 = vmatpush.bf16.msra.mxu0 %v3951
    %4366 = vmatpush.bf16.msra.mxu0 %v3949
    %4367 = vmatpush.bf16.msra.mxu0 %v3947
    %4368 = vmatpush.bf16.msra.mxu0 %v3945
    %4369 = vmatmul.bf16.gmra.mxu0 %v3365
    %v4370 = vpop.f32.mrf.mxu0
    %v4371 = vadd.f32 %v4352, %v4370
    %v4372 = vpop.f32.mrf.mxu0
    %v4373 = vadd.f32 %v4354, %v4372
    %4374 = vmatmul.bf16.gmra.mxu0 %v3373
    %v4375 = vpop.f32.mrf.mxu0
    %v4376 = vadd.f32 %v4357, %v4375
    %v4377 = vpop.f32.mrf.mxu0
    %v4378 = vadd.f32 %v4359, %v4377
    %4379 = vdwg.mxu0
    %4380 = vmatpush.bf16.msra.mxu0 %v3975
    %4381 = vmatpush.bf16.msra.mxu0 %v3973
    %4382 = vmatpush.bf16.msra.mxu0 %v3971
    %4383 = vmatpush.bf16.msra.mxu0 %v3969
    %4384 = vmatpush.bf16.msra.mxu0 %v3967
    %4385 = vmatpush.bf16.msra.mxu0 %v3965
    %4386 = vmatpush.bf16.msra.mxu0 %v3963
    %4387 = vmatpush.bf16.msra.mxu0 %v3961
    %4388 = vmatmul.bf16.gmra.mxu0 %v3366
    %v4389 = vpop.f32.mrf.mxu0
    %v4390 = vadd.f32 %v4371, %v4389
    %v4391 = vpop.f32.mrf.mxu0
    %v4392 = vadd.f32 %v4373, %v4391
    %4393 = vmatmul.bf16.gmra.mxu0 %v3374
    %v4394 = vpop.f32.mrf.mxu0
    %v4395 = vadd.f32 %v4376, %v4394
    %v4396 = vpop.f32.mrf.mxu0
    %v4397 = vadd.f32 %v4378, %v4396
    %4398 = vdwg.mxu0
    %4399 = vmatpush.bf16.msra.mxu0 %v3991
    %4400 = vmatpush.bf16.msra.mxu0 %v3989
    %4401 = vmatpush.bf16.msra.mxu0 %v3987
    %4402 = vmatpush.bf16.msra.mxu0 %v3985
    %4403 = vmatpush.bf16.msra.mxu0 %v3983
    %4404 = vmatpush.bf16.msra.mxu0 %v3981
    %4405 = vmatpush.bf16.msra.mxu0 %v3979
    %4406 = vmatpush.bf16.msra.mxu0 %v3977
    %4407 = vmatmul.bf16.gmra.mxu0 %v3367
    %v4408 = vpop.f32.mrf.mxu0
    %v4409 = vadd.f32 %v4390, %v4408
    %v4410 = vpop.f32.mrf.mxu0
    %v4411 = vadd.f32 %v4392, %v4410
    %4412 = vmatmul.bf16.gmra.mxu0 %v3375
    %v4413 = vpop.f32.mrf.mxu0
    %v4414 = vadd.f32 %v4395, %v4413
    %v4415 = vpop.f32.mrf.mxu0
    %v4416 = vadd.f32 %v4397, %v4415
    %4417 = vdwg.mxu0
    %4418 = vmatpush.bf16.msra.mxu0 %v4007
    %4419 = vmatpush.bf16.msra.mxu0 %v4005
    %4420 = vmatpush.bf16.msra.mxu0 %v4003
    %4421 = vmatpush.bf16.msra.mxu0 %v4001
    %4422 = vmatpush.bf16.msra.mxu0 %v3999
    %4423 = vmatpush.bf16.msra.mxu0 %v3997
    %4424 = vmatpush.bf16.msra.mxu0 %v3995
    %4425 = vmatpush.bf16.msra.mxu0 %v3993
    %4426 = vmatmul.bf16.gmra.mxu0 %v3368
    %v4427 = vpop.f32.mrf.mxu0
    %v4428 = vadd.f32 %v4409, %v4427
    %v4429 = vpop.f32.mrf.mxu0
    %v4430 = vadd.f32 %v4411, %v4429
    %4431 = vmatmul.bf16.gmra.mxu0 %v3376
    %v4432 = vpop.f32.mrf.mxu0
    %v4433 = vadd.f32 %v4414, %v4432
    %v4434 = vpop.f32.mrf.mxu0
    %v4435 = vadd.f32 %v4416, %v4434
    %4436 = vdwg.mxu0
    %4437 = vmatpush.bf16.msra.mxu0 %v4023
    %4438 = vmatpush.bf16.msra.mxu0 %v4021
    %4439 = vmatpush.bf16.msra.mxu0 %v4019
    %4440 = vmatpush.bf16.msra.mxu0 %v4017
    %4441 = vmatpush.bf16.msra.mxu0 %v4015
    %4442 = vmatpush.bf16.msra.mxu0 %v4013
    %4443 = vmatpush.bf16.msra.mxu0 %v4011
    %4444 = vmatpush.bf16.msra.mxu0 %v4009
    %4445 = vmatmul.bf16.gmra.mxu0 %v3369
    %v4446 = vpop.f32.mrf.mxu0
    %v4447 = vadd.f32 %v4428, %v4446
    %v4448 = vpop.f32.mrf.mxu0
    %v4449 = vadd.f32 %v4430, %v4448
    %4450 = vmatmul.bf16.gmra.mxu0 %v3377
    %v4451 = vpop.f32.mrf.mxu0
    %v4452 = vadd.f32 %v4433, %v4451
    %v4453 = vpop.f32.mrf.mxu0
    %v4454 = vadd.f32 %v4435, %v4453
    %4455 = vdwg.mxu0
    %v4456 = vmax.f32 %v4295, 0.0
    %v4457 = vmax.f32 %v4447, 0.0
    %v4458 = vmax.f32 %v4297, 0.0
    %v4459 = vmax.f32 %v4449, 0.0
    %v4460 = vmax.f32 %v4300, 0.0
    %v4461 = vmax.f32 %v4452, 0.0
    %v4462 = vmax.f32 %v4302, 0.0
    %v4463 = vmax.f32 %v4454, 0.0
    %v4464 = vld [vmem:[%s5] sm:$0x3]
    %v4466 = vperm.slane %v4464, 0
    %v4467 = vperm.slane %v4464, 1
    %v4470 = vmul.f32 %v4456, %v4466
    %v4471 = vmul.f32 %v4457, %v4467
    %v4472 = vmul.f32 %v4458, %v4466
    %v4473 = vmul.f32 %v4459, %v4467
    %v4474 = vmul.f32 %v4460, %v4466
    %v4475 = vmul.f32 %v4461, %v4467
    %v4476 = vmul.f32 %v4462, %v4466
    %v4477 = vmul.f32 %v4463, %v4467
    %v4478 = vadd.f32 %v4470, %v4471
    %4479 = vadd.xlane.f32.xlu0 %v4478
    %v4480 = vpop.xlane.xlu0 %4479
    %v4481 = vadd.f32 %v4472, %v4473
    %4482 = vadd.xlane.f32.xlu0 %v4481
    %v4483 = vpop.xlane.xlu0 %4482
    %v4484 = vadd.f32 %v4474, %v4475
    %4485 = vadd.xlane.f32.xlu0 %v4484
    %v4486 = vpop.xlane.xlu0 %4485
    %v4487 = vadd.f32 %v4476, %v4477
    %4488 = vadd.xlane.f32.xlu0 %v4487
    %v4489 = vpop.xlane.xlu0 %4488
    %v4490 = vmax.f32 %v4480, %v4483
    %v4491 = vrot.slane %v4490, 4
    %v4492 = vmax.f32 %v4490, %v4491
    %v4493 = vrot.slane %v4492, 2
    %v4494 = vmax.f32 %v4492, %v4493
    %v4495 = vrot.slane %v4494, 1
    %v4496 = vmax.f32 %v4494, %v4495
    %v4497 = vmax.f32 %v4486, %v4489
    %v4498 = vrot.slane %v4497, 4
    %v4499 = vmax.f32 %v4497, %v4498
    %v4500 = vrot.slane %v4499, 2
    %v4501 = vmax.f32 %v4499, %v4500
    %v4502 = vrot.slane %v4501, 1
    %v4503 = vmax.f32 %v4501, %v4502
    %v4504 = vsub.f32 %v4480, %v4496
    %v4505 = vsub.f32 %v4483, %v4496
    %v4506 = vsub.f32 %v4486, %v4503
    %v4507 = vsub.f32 %v4489, %v4503
    %v4508 = vmul.f32 %v4504, 1.442695
    %v4509 = vpow.pop %v4508
    %v4510 = vmul.f32 %v4505, 1.442695
    %v4511 = vpow.pop %v4510
    %v4512 = vmul.f32 %v4506, 1.442695
    %v4513 = vpow.pop %v4512
    %v4514 = vmul.f32 %v4507, 1.442695
    %v4515 = vpow.pop %v4514
    %v4516 = vadd.f32 %v4509, %v4511
    %v4517 = vrot.slane %v4516, 4
    %v4518 = vadd.f32 %v4516, %v4517
    %v4519 = vrot.slane %v4518, 2
    %v4520 = vadd.f32 %v4518, %v4519
    %v4521 = vrot.slane %v4520, 1
    %v4522 = vadd.f32 %v4520, %v4521
    %v4523 = vadd.f32 %v4513, %v4515
    %v4524 = vrot.slane %v4523, 4
    %v4525 = vadd.f32 %v4523, %v4524
    %v4526 = vrot.slane %v4525, 2
    %v4527 = vadd.f32 %v4525, %v4526
    %v4528 = vrot.slane %v4527, 1
    %v4529 = vadd.f32 %v4527, %v4528
    %v4530 = vrcp.pop %v4522
    %v4531 = vrcp.pop %v4529
    %v4532 = vmul.f32 %v4509, %v4530
    %v4533 = vmul.f32 %v4511, %v4530
    %v4534 = vmul.f32 %v4513, %v4531
    %v4535 = vmul.f32 %v4515, %v4531
    %v4536 = vadd.f32 %v4532, 1.0
    %v4537 = vadd.f32 %v4533, 1.0
    %v4538 = vadd.f32 %v4534, 1.0
    %v4539 = vadd.f32 %v4535, 1.0
    %v4540 = vmul.f32 %v3330, %v4536
    %v4541 = vmul.f32 %v3331, %v4536
    %v4542 = vmul.f32 %v3332, %v4536
    %v4543 = vmul.f32 %v3333, %v4536
    %v4544 = vmul.f32 %v3334, %v4536
    %v4545 = vmul.f32 %v3335, %v4536
    %v4546 = vmul.f32 %v3336, %v4536
    %v4547 = vmul.f32 %v3337, %v4536
    %v4548 = vmul.f32 %v3338, %v4537
    %v4549 = vmul.f32 %v3339, %v4537
    %v4550 = vmul.f32 %v3340, %v4537
    %v4551 = vmul.f32 %v3341, %v4537
    %v4552 = vmul.f32 %v3342, %v4537
    %v4553 = vmul.f32 %v3343, %v4537
    %v4554 = vmul.f32 %v3344, %v4537
    %v4555 = vmul.f32 %v3345, %v4537
    %v4556 = vmul.f32 %v3346, %v4538
    %v4557 = vmul.f32 %v3347, %v4538
    %v4558 = vmul.f32 %v3348, %v4538
    %v4559 = vmul.f32 %v3349, %v4538
    %v4560 = vmul.f32 %v3350, %v4538
    %v4561 = vmul.f32 %v3351, %v4538
    %v4562 = vmul.f32 %v3352, %v4538
    %v4563 = vmul.f32 %v3353, %v4538
    %v4564 = vmul.f32 %v3354, %v4539
    %v4565 = vmul.f32 %v3355, %v4539
    %v4566 = vmul.f32 %v3356, %v4539
    %v4567 = vmul.f32 %v3357, %v4539
    %v4568 = vmul.f32 %v3358, %v4539
    %v4569 = vmul.f32 %v3359, %v4539
    %v4570 = vmul.f32 %v3360, %v4539
    %v4571 = vmul.f32 %v3361, %v4539
    %v4572 = vmax.f32 %v4540, %v4548
    %v4573 = vrot.slane %v4572, 4
    %v4574 = vmax.f32 %v4572, %v4573
    %v4575 = vrot.slane %v4574, 2
    %v4576 = vmax.f32 %v4574, %v4575
    %v4577 = vrot.slane %v4576, 1
    %v4578 = vmax.f32 %v4576, %v4577
    %v4579 = vmax.f32 %v4541, %v4549
    %v4580 = vrot.slane %v4579, 4
    %v4581 = vmax.f32 %v4579, %v4580
    %v4582 = vrot.slane %v4581, 2
    %v4583 = vmax.f32 %v4581, %v4582
    %v4584 = vrot.slane %v4583, 1
    %v4585 = vmax.f32 %v4583, %v4584
    %v4586 = vmax.f32 %v4542, %v4550
    %v4587 = vrot.slane %v4586, 4
    %v4588 = vmax.f32 %v4586, %v4587
    %v4589 = vrot.slane %v4588, 2
    %v4590 = vmax.f32 %v4588, %v4589
    %v4591 = vrot.slane %v4590, 1
    %v4592 = vmax.f32 %v4590, %v4591
    %v4593 = vmax.f32 %v4543, %v4551
    %v4594 = vrot.slane %v4593, 4
    %v4595 = vmax.f32 %v4593, %v4594
    %v4596 = vrot.slane %v4595, 2
    %v4597 = vmax.f32 %v4595, %v4596
    %v4598 = vrot.slane %v4597, 1
    %v4599 = vmax.f32 %v4597, %v4598
    %v4600 = vmax.f32 %v4544, %v4552
    %v4601 = vrot.slane %v4600, 4
    %v4602 = vmax.f32 %v4600, %v4601
    %v4603 = vrot.slane %v4602, 2
    %v4604 = vmax.f32 %v4602, %v4603
    %v4605 = vrot.slane %v4604, 1
    %v4606 = vmax.f32 %v4604, %v4605
    %v4607 = vmax.f32 %v4545, %v4553
    %v4608 = vrot.slane %v4607, 4
    %v4609 = vmax.f32 %v4607, %v4608
    %v4610 = vrot.slane %v4609, 2
    %v4611 = vmax.f32 %v4609, %v4610
    %v4612 = vrot.slane %v4611, 1
    %v4613 = vmax.f32 %v4611, %v4612
    %v4614 = vmax.f32 %v4546, %v4554
    %v4615 = vrot.slane %v4614, 4
    %v4616 = vmax.f32 %v4614, %v4615
    %v4617 = vrot.slane %v4616, 2
    %v4618 = vmax.f32 %v4616, %v4617
    %v4619 = vrot.slane %v4618, 1
    %v4620 = vmax.f32 %v4618, %v4619
    %v4621 = vmax.f32 %v4547, %v4555
    %v4622 = vrot.slane %v4621, 4
    %v4623 = vmax.f32 %v4621, %v4622
    %v4624 = vrot.slane %v4623, 2
    %v4625 = vmax.f32 %v4623, %v4624
    %v4626 = vrot.slane %v4625, 1
    %v4627 = vmax.f32 %v4625, %v4626
    %v4628 = vmax.f32 %v4556, %v4564
    %v4629 = vrot.slane %v4628, 4
    %v4630 = vmax.f32 %v4628, %v4629
    %v4631 = vrot.slane %v4630, 2
    %v4632 = vmax.f32 %v4630, %v4631
    %v4633 = vrot.slane %v4632, 1
    %v4634 = vmax.f32 %v4632, %v4633
    %v4635 = vmax.f32 %v4557, %v4565
    %v4636 = vrot.slane %v4635, 4
    %v4637 = vmax.f32 %v4635, %v4636
    %v4638 = vrot.slane %v4637, 2
    %v4639 = vmax.f32 %v4637, %v4638
    %v4640 = vrot.slane %v4639, 1
    %v4641 = vmax.f32 %v4639, %v4640
    %v4642 = vmax.f32 %v4558, %v4566
    %v4643 = vrot.slane %v4642, 4
    %v4644 = vmax.f32 %v4642, %v4643
    %v4645 = vrot.slane %v4644, 2
    %v4646 = vmax.f32 %v4644, %v4645
    %v4647 = vrot.slane %v4646, 1
    %v4648 = vmax.f32 %v4646, %v4647
    %v4649 = vmax.f32 %v4559, %v4567
    %v4650 = vrot.slane %v4649, 4
    %v4651 = vmax.f32 %v4649, %v4650
    %v4652 = vrot.slane %v4651, 2
    %v4653 = vmax.f32 %v4651, %v4652
    %v4654 = vrot.slane %v4653, 1
    %v4655 = vmax.f32 %v4653, %v4654
    %v4656 = vmax.f32 %v4560, %v4568
    %v4657 = vrot.slane %v4656, 4
    %v4658 = vmax.f32 %v4656, %v4657
    %v4659 = vrot.slane %v4658, 2
    %v4660 = vmax.f32 %v4658, %v4659
    %v4661 = vrot.slane %v4660, 1
    %v4662 = vmax.f32 %v4660, %v4661
    %v4663 = vmax.f32 %v4561, %v4569
    %v4664 = vrot.slane %v4663, 4
    %v4665 = vmax.f32 %v4663, %v4664
    %v4666 = vrot.slane %v4665, 2
    %v4667 = vmax.f32 %v4665, %v4666
    %v4668 = vrot.slane %v4667, 1
    %v4669 = vmax.f32 %v4667, %v4668
    %v4670 = vmax.f32 %v4562, %v4570
    %v4671 = vrot.slane %v4670, 4
    %v4672 = vmax.f32 %v4670, %v4671
    %v4673 = vrot.slane %v4672, 2
    %v4674 = vmax.f32 %v4672, %v4673
    %v4675 = vrot.slane %v4674, 1
    %v4676 = vmax.f32 %v4674, %v4675
    %v4677 = vmax.f32 %v4563, %v4571
    %v4678 = vrot.slane %v4677, 4
    %v4679 = vmax.f32 %v4677, %v4678
    %v4680 = vrot.slane %v4679, 2
    %v4681 = vmax.f32 %v4679, %v4680
    %v4682 = vrot.slane %v4681, 1
    %v4683 = vmax.f32 %v4681, %v4682
    %v4684 = vmul.f32 %v4578, %v4578
    %v4685 = vmul.f32 %v4585, %v4585
    %v4686 = vmul.f32 %v4592, %v4592
    %v4687 = vmul.f32 %v4599, %v4599
    %v4688 = vmul.f32 %v4606, %v4606
    %v4689 = vmul.f32 %v4613, %v4613
    %v4690 = vmul.f32 %v4620, %v4620
    %v4691 = vmul.f32 %v4627, %v4627
    %v4692 = vmul.f32 %v4634, %v4634
    %v4693 = vmul.f32 %v4641, %v4641
    %v4694 = vmul.f32 %v4648, %v4648
    %v4695 = vmul.f32 %v4655, %v4655
    %v4696 = vmul.f32 %v4662, %v4662
    %v4697 = vmul.f32 %v4669, %v4669
    %v4698 = vmul.f32 %v4676, %v4676
    %v4699 = vmul.f32 %v4683, %v4683
    %vm4716 = vcmask 1041409
    %v4717 = vsel %vm4716, %v4692, %v4684
    %v4718 = vsel %vm4716, %v4693, %v4685
    %v4719 = vsel %vm4716, %v4694, %v4686
    %v4720 = vsel %vm4716, %v4695, %v4687
    %v4721 = vsel %vm4716, %v4696, %v4688
    %v4722 = vsel %vm4716, %v4697, %v4689
    %v4723 = vsel %vm4716, %v4698, %v4690
    %v4724 = vsel %vm4716, %v4699, %v4691
    %vm4733 = vcmask 1041408
    %v4734 = vsel %vm4733, %v4717, 0.0
    %v4735 = vsel %vm4733, %v4718, 0.0
    %v4736 = vadd.f32 %v4734, %v4735
    %v4737 = vsel %vm4733, %v4719, 0.0
    %v4738 = vadd.f32 %v4736, %v4737
    %v4739 = vsel %vm4733, %v4720, 0.0
    %v4740 = vadd.f32 %v4738, %v4739
    %v4741 = vsel %vm4733, %v4721, 0.0
    %v4742 = vadd.f32 %v4740, %v4741
    %v4743 = vsel %vm4733, %v4722, 0.0
    %v4744 = vadd.f32 %v4742, %v4743
    %v4745 = vsel %vm4733, %v4723, 0.0
    %v4746 = vadd.f32 %v4744, %v4745
    %v4747 = vsel %vm4733, %v4724, 0.0
    %v4748 = vadd.f32 %v4746, %v4747
    %4749 = vadd.xlane.f32.xlu0 %v4748
    %v4750 = vpop.xlane.xlu0 %4749
    %v4751 = vmax.f32 %v4750, 1e-24
    %v4752 = vrsqrt.pop %v4751
    %v4753 = vmul.f32 %v4752, %v4751
    %v4754 = vmul.f32 %v4753, %v4752
    %v4755 = vmul.f32 0.5, %v4754
    %v4756 = vsub.f32 1.5, %v4755
    %v4757 = vmul.f32 %v4752, %v4756
    %vm4758 = vweird.f32 %v4751
    %vm4759 = vweird.f32 %v4752
    %vm4760 = vmor %vm4758, %vm4759
    %v4761 = vsel %vm4760, %v4752, %v4757
    %v4763 = vrot.slane %v4761, 1
    %v4766 = vmul.f32 %v4578, %v4761
    %v4767 = vmul.f32 %v4585, %v4761
    %v4768 = vmul.f32 %v4592, %v4761
    %v4769 = vmul.f32 %v4599, %v4761
    %v4770 = vmul.f32 %v4606, %v4761
    %v4771 = vmul.f32 %v4613, %v4761
    %v4772 = vmul.f32 %v4620, %v4761
    %v4773 = vmul.f32 %v4627, %v4761
    %v4774 = vmul.f32 %v4634, %v4763
    %v4775 = vmul.f32 %v4641, %v4763
    %v4776 = vmul.f32 %v4648, %v4763
    %v4777 = vmul.f32 %v4655, %v4763
    %v4778 = vmul.f32 %v4662, %v4763
    %v4779 = vmul.f32 %v4669, %v4763
    %v4780 = vmul.f32 %v4676, %v4763
    %v4781 = vmul.f32 %v4683, %v4763
    %v4798 = vrot.slane %v4767, 6
    %v4799 = vrot.slane %v4768, 4
    %v4800 = vrot.slane %v4769, 2
    %v4801 = vrot.slane %v4771, 6
    %v4802 = vrot.slane %v4772, 4
    %v4803 = vrot.slane %v4773, 2
    %v4804 = vrot.slane %v4775, 6
    %v4805 = vrot.slane %v4776, 4
    %v4806 = vrot.slane %v4777, 2
    %v4807 = vrot.slane %v4779, 6
    %v4808 = vrot.slane %v4780, 4
    %v4809 = vrot.slane %v4781, 2
    %v4810 = vsel %vm4733, %v4766, %v4798
    %vm4811 = vcmask 1045508
    %v4812 = vsel %vm4811, %v4799, %v4800
    %vm4813 = vcmask 1043456
    %v4814 = vsel %vm4813, %v4810, %v4812
    %v4815 = vsel %vm4733, %v4770, %v4801
    %v4816 = vsel %vm4811, %v4802, %v4803
    %v4817 = vsel %vm4813, %v4815, %v4816
    %v4818 = vsel %vm4733, %v4774, %v4804
    %v4819 = vsel %vm4811, %v4805, %v4806
    %v4820 = vsel %vm4813, %v4818, %v4819
    %v4821 = vsel %vm4733, %v4778, %v4807
    %v4822 = vsel %vm4811, %v4808, %v4809
    %v4823 = vsel %vm4813, %v4821, %v4822
    %vm4824 = vcmask 1044484
    %v4825 = vsel %vm4824, %v4814, %v4814
    %vm4826 = vcmask 1046534
    %v4827 = vsel %vm4826, %v4814, %v4825
    %v4828 = vrot.slane %v4820, 7
    %v4829 = vsel %vm4716, %v4828, %v4827
    %vm4830 = vcmask 1043459
    %v4831 = vsel %vm4830, %v4828, %v4829
    %vm4832 = vcmask 1045509
    %v4833 = vsel %vm4832, %v4828, %v4831
    %vm4834 = vcmask 1047559
    %v4835 = vsel %vm4834, %v4828, %v4833
    %v4836 = vsel %vm4824, %v4817, %v4817
    %v4837 = vsel %vm4826, %v4817, %v4836
    %v4838 = vrot.slane %v4823, 7
    %v4839 = vsel %vm4716, %v4838, %v4837
    %v4840 = vsel %vm4830, %v4838, %v4839
    %v4841 = vsel %vm4832, %v4838, %v4840
    %v4842 = vsel %vm4834, %v4838, %v4841
    %4845 = vst [vmem:[#allocation2] sm:$0xff] %v4835
    %4846 = vst [vmem:[#allocation2 + $0x8] sm:$0xff] %v4842
    // Predicated region
    $region26: #{attention_local_pallas.1} parent=1 // pred_check
      _
    $region27: #{attention_local_pallas.1} parent=1 // pred_check_branch
      %4848 = sbr.rel (0) target = $region29
    $region28: #{attention_local_pallas.1} parent=1 // pred_region
      %4850 = vsyncadd [#allocation3], 0
      %s4852 = sshll.u32 [#allocation2], 4
      %s4853 = int_to_ptr.vmem [resolvable:$true] %s4852
      %s4854 = sshll.u32 %s6, 4
      %s4855 = int_to_ptr.hbm [resolvable:$true] %s4854
      %4857 = dma.vmem_to_hbm [thread:$0]  %s4853, 256, %s4855, [#allocation3]
    $region29: #{attention_local_pallas.1} parent=1 // pred_fallthru
      _
    // Predicated region
    $region30: #{attention_local_pallas.1} parent=1 // pred_check
      _
    $region31: #{attention_local_pallas.1} parent=1 // pred_check_branch
      %4859 = sbr.rel (0) target = $region33
    $region32: #{attention_local_pallas.1} parent=1 // pred_region
      %4861 = dma.done [#allocation3], 256
    $region33: #{attention_local_pallas.1} parent=1 // pred_fallthru
      _
    %4862 = vsyncpa [#allocation3], 1

</llo_original>
